<compile_context>
chip_gen: v5e
topology: v5e:2x2
jax: 0.10.0
libtpu: 0.0.40
codegen_flags: <defaults>
</compile_context>

<pallas_src>
import math

import jax
import jax.numpy as jnp
from jax.experimental import pallas as pl
from jax.experimental.pallas import tpu as pltpu


# ------------------------------ helpers ------------------------------------ #

def _round_up(x, m):
    return (x + m - 1) // m * m


def _choose_h_tile(Ho, Wo, c4, cout, itemsize, budget_bytes=20 << 20):
    """Largest Ho tile whose blocks fit a conservative cross-gen VMEM budget, preferring
    MXU-friendly M = tHo*Wo (>=512, multiple of 256).  v5e/v6e (128 MiB VMEM) could use
    a ~2-4x larger budget; keep it conservative so the same choice is safe on v7x."""
    def bytes_for(t):
        in_b = 2 * t * Wo * c4 * itemsize                       # double-buffered input
        sc_b = (t + 1) * _round_up(Wo + 1, 8) * c4 * itemsize   # halo scratch
        out_b = 2 * t * Wo * cout * 4                           # double-buffered output
        acc_b = t * Wo * cout * 4                               # f32 accumulator
        lhs_b = t * Wo * 9 * (c4 // 4) * itemsize               # transient dot operands
        return in_b + sc_b + out_b + acc_b + lhs_b
    divisors = [t for t in range(1, Ho + 1) if Ho % t == 0]
    fitting = [t for t in divisors if bytes_for(t) <= budget_bytes] or [1]
    preferred = [t for t in fitting if t * Wo >= 512 and (t * Wo) % 256 == 0]
    return max(preferred) if preferred else max(fitting)


def _choose_c_tile(C, Ho, Wo, itemsize, budget_bytes=8 << 20):
    best = 1
    for t in range(1, C + 1):
        if C % t:
            continue
        blk = 2 * (4 * t * Ho * Wo * itemsize) + 2 * (t * Ho * Wo * 4)
        if blk <= budget_bytes:
            best = t
    return best


def _space_to_depth_conv(x_nchw):
    """NCHW -> (N, Ho, Wo, 4C) in one XLA copy; lane order p = dy*2+dx major over C."""
    N, C, H, W = x_nchw.shape
    # TODO(synk): odd H/W (PyTorch handles via asymmetric pad / floor pooling) is not
    # supported by this even-phase space-to-depth fast path.
    assert H % 2 == 0 and W % 2 == 0, "DownsamplePallas requires even H and W"
    x6 = x_nchw.reshape(N, C, H // 2, 2, W // 2, 2)
    return jnp.transpose(x6, (0, 2, 4, 3, 5, 1)).reshape(N, H // 2, W // 2, 4 * C)


def _space_to_depth_pool(x_nchw):
    """NCHW -> phase-major (N, 4, C, Ho, Wo) in one XLA copy (kernel emits NCHW)."""
    N, C, H, W = x_nchw.shape
    assert H % 2 == 0 and W % 2 == 0, "DownsamplePallas requires even H and W"
    x6 = x_nchw.reshape(N, C, H // 2, 2, W // 2, 2)
    return jnp.transpose(x6, (0, 3, 5, 1, 2, 4)).reshape(N, 4, C, H // 2, W // 2)


# ----------------------------- Pallas kernels ------------------------------ #

def _down_conv_kernel(y_ref, yh_ref, w_ref, b_ref, o_ref, yp_ref):
    """3x3/stride-2 conv on a space-to-depth tile as 5 trimmed per-shift MXU dots.

    y_ref : (1, tHo, Wo, 4C)   S2D activation tile, phase p = dy*2+dx major on lanes
    yh_ref: (1, 1, Wo, 4C)     next S2D row (bottom halo); clamped/garbage on last tile
    w_ref : (9C, Cout)         packed trimmed weights (see _fold_weight_trimmed)
    b_ref : (1, Cout)          f32 bias
    o_ref : (1, tHo, Wo, Cout) NHWC output tile
    yp_ref: (tHo+1, Wo+1, 4C)  compute-dtype scratch: tile + zero right col + bottom halo
    """
    _, tHo, Wo, C4 = y_ref.shape
    C = C4 // 4
    Cout = o_ref.shape[-1]
    M = tHo * Wo

    # ---- build the haloed tile in VMEM (only the halo itself is extra work) --------
    yp_ref[0:tHo, 0:Wo, :] = y_ref[0]
    is_last = pl.program_id(1) == pl.num_programs(1) - 1
    halo_row = yh_ref[0]                                         # (1, Wo, 4C)
    halo_row = jnp.where(is_last, jnp.zeros_like(halo_row), halo_row)
    yp_ref[tHo:tHo + 1, 0:Wo, :] = halo_row                      # next row / zero pad
    yp_ref[:, Wo:Wo + 1, :] = jnp.zeros((tHo + 1, 1, C4), yp_ref.dtype)  # right zero pad

    # ---- 5 per-shift dots, K totals 9C (zero-weight phase blocks trimmed) ----------
    # shift (0,0): taps (ky,kx) in {0,1}^2 -> all four phases, lanes [0:4C].
    lhs = yp_ref[0:tHo, 0:Wo, :].reshape(M, 4 * C)
    acc = jnp.dot(lhs, w_ref[0:4 * C, :], preferred_element_type=jnp.float32)
    # shift (1,0): taps (2,0),(2,1) -> dy=0 phases, lanes [0:2C], rows shifted by 1.
    lhs = yp_ref[1:tHo + 1, 0:Wo, 0:2 * C].reshape(M, 2 * C)
    acc += jnp.dot(lhs, w_ref[4 * C:6 * C, :], preferred_element_type=jnp.float32)
    # shift (0,1): taps (0,2),(1,2) -> dx=0 phases = lanes [0:C] and [2C:3C]
    # (two C-wide dots: the dx=0 pair is not lane-contiguous under p = dy*2+dx).
    lhs = yp_ref[0:tHo, 1:Wo + 1, 0:C].reshape(M, C)
    acc += jnp.dot(lhs, w_ref[6 * C:7 * C, :], preferred_element_type=jnp.float32)
    lhs = yp_ref[0:tHo, 1:Wo + 1, 2 * C:3 * C].reshape(M, C)
    acc += jnp.dot(lhs, w_ref[7 * C:8 * C, :], preferred_element_type=jnp.float32)
    # shift (1,1): tap (2,2) -> phase (0,0) only, lanes [0:C].
    lhs = yp_ref[1:tHo + 1, 1:Wo + 1, 0:C].reshape(M, C)
    acc += jnp.dot(lhs, w_ref[8 * C:9 * C, :], preferred_element_type=jnp.float32)

    acc = acc + b_ref[...].astype(jnp.float32)
    o_ref[0] = acc.reshape(tHo, Wo, Cout).astype(o_ref.dtype)


def _avg_pool_kernel(y_ref, o_ref):
    """2x2/stride-2 avg pool; phase-major input, NCHW output (no post-transpose).

    y_ref: (1, 4, Ct, Ho, Wo);  o_ref: (1, Ct, Ho, Wo)
    """
    s = (y_ref[0, 0].astype(jnp.float32) + y_ref[0, 1].astype(jnp.float32) +
         y_ref[0, 2].astype(jnp.float32) + y_ref[0, 3].astype(jnp.float32))
    o_ref[0] = (s * 0.25).astype(o_ref.dtype)


# ------------------------------ wrappers ----------------------------------- #

def downsample_conv(y_s2d, w_packed, bias2d, out_dtype, h_tile=None):
    N, Ho, Wo, C4 = y_s2d.shape
    C = C4 // 4
    Cout = w_packed.shape[-1]
    itm = y_s2d.dtype.itemsize
    tHo = h_tile if h_tile is not None else _choose_h_tile(Ho, Wo, C4, Cout, itm)
    assert Ho % tHo == 0, f"h_tile={tHo} must divide Ho={Ho}"
    nH = Ho // tHo

    # vmem limit derived from the actual working set (feedback item 7).
    in_blk = tHo * Wo * C4 * itm
    halo_blk = Wo * C4 * itm
    out_blk = tHo * Wo * Cout * jnp.dtype(out_dtype).itemsize
    scratch_b = (tHo + 1) * _round_up(Wo + 1, 8) * C4 * itm
    w_b = w_packed.size * w_packed.dtype.itemsize
    acc_b = tHo * Wo * Cout * 4
    lhs_b = tHo * Wo * 9 * C * itm
    ws = 2 * (in_blk + halo_blk + out_blk) + scratch_b + w_b + acc_b + lhs_b + (2 << 20)
    vmem_limit = int(min(64 << 20, max(32 << 20, int(ws * 1.5))))

    # Bottom-halo row = first S2D row of the next tile; clamped (unused & zeroed in the
    # kernel) on the last tile so the DMA never goes out of bounds.
    halo_map = lambda n, h: (n, jnp.minimum((h + 1) * tHo, Ho - 1), 0, 0)

    return pl.pallas_call(
        _down_conv_kernel,
        out_shape=jax.ShapeDtypeStruct((N, Ho, Wo, Cout), out_dtype),
        grid=(N, nH),
        in_specs=[
            pl.BlockSpec((1, tHo, Wo, C4), lambda n, h: (n, h, 0, 0)),
            pl.BlockSpec((1, 1, Wo, C4), halo_map),
            # Constant blocks: single-buffer to save VMEM (notably on v7x).
            pl.BlockSpec((9 * C, Cout), lambda n, h: (0, 0),
                         pipeline_mode=pl.Buffered(1)),
            pl.BlockSpec((1, Cout), lambda n, h: (0, 0),
                         pipeline_mode=pl.Buffered(1)),
        ],
        out_specs=pl.BlockSpec((1, tHo, Wo, Cout), lambda n, h: (n, h, 0, 0)),
        scratch_shapes=[pltpu.VMEM((tHo + 1, Wo + 1, C4), y_s2d.dtype)],
        compiler_params=pltpu.CompilerParams(
            dimension_semantics=("parallel", "parallel"),
            vmem_limit_bytes=vmem_limit),
    )(y_s2d, y_s2d, w_packed, bias2d)


def downsample_avg_pool(y_s2d, out_dtype, c_tile=None):
    N, _, C, Ho, Wo = y_s2d.shape
    itm = y_s2d.dtype.itemsize
    Ct = c_tile if c_tile is not None else _choose_c_tile(C, Ho, Wo, itm)
    assert C % Ct == 0
    in_blk = 4 * Ct * Ho * Wo * itm
    out_blk = Ct * Ho * Wo * jnp.dtype(out_dtype).itemsize
    ws = 2 * (in_blk + out_blk) + (2 << 20)
    vmem_limit = int(min(64 << 20, max(32 << 20, int(ws * 1.5))))
    return pl.pallas_call(
        _avg_pool_kernel,
        out_shape=jax.ShapeDtypeStruct((N, C, Ho, Wo), out_dtype),
        grid=(N, C // Ct),
        in_specs=[pl.BlockSpec((1, 4, Ct, Ho, Wo), lambda n, c: (n, 0, c, 0, 0))],
        out_specs=pl.BlockSpec((1, Ct, Ho, Wo), lambda n, c: (n, c, 0, 0)),
        compiler_params=pltpu.CompilerParams(
            dimension_semantics=("parallel", "parallel"),
            vmem_limit_bytes=vmem_limit),
    )(y_s2d)


# ------------------------------ module ------------------------------------- #

class DownsamplePallas:
    """Mirrors Backbone/unet_res.py::Downsample (eval mode)."""

    def __init__(self, key, in_channels, with_conv, compute_dtype=jnp.bfloat16,
                 h_tile=None, output_layout="NCHW"):
        # compute_dtype: MXU operand + halo-scratch dtype (accumulation is always f32).
        #   On v5e prefer jnp.float32 if bf16 sublane-offset slices show pack/unpack ops.
        self.in_channels = in_channels
        self.with_conv = with_conv
        self.compute_dtype = compute_dtype
        self.h_tile = h_tile
        self.output_layout = output_layout
        if with_conv:
            kw, kb = jax.random.split(key)
            bound = 1.0 / math.sqrt(in_channels * 9)        # PyTorch Conv2d default init
            self.w_hwio = jax.random.uniform(
                kw, (3, 3, in_channels, in_channels), jnp.float32, -bound, bound)
            self.bias = jax.random.uniform(
                kb, (in_channels,), jnp.float32, -bound, bound)
            self.w_packed = self._fold_weight_trimmed(self.w_hwio).astype(compute_dtype)
            self.bias2d = self.bias.reshape(1, in_channels)

    @staticmethod
    def _fold_weight_trimmed(w_hwio):
        """Pack the 9 taps into the (9*Ci, Co) layout the kernel's 5 dots expect.

        Row blocks (C each):
          [shift(0,0): taps (0,0),(0,1),(1,0),(1,1)]   rows [0:4C]
          [shift(1,0): taps (2,0),(2,1)]               rows [4C:6C]
          [shift(0,1): tap (0,2)] [tap (1,2)]          rows [6C:7C], [7C:8C]
          [shift(1,1): tap (2,2)]                      rows [8C:9C]
        The 7 structurally-zero (shift,phase) slots of the old 16C layout are removed.
        """
        taps = [(0, 0), (0, 1), (1, 0), (1, 1),
                (2, 0), (2, 1),
                (0, 2), (1, 2),
                (2, 2)]
        return jnp.concatenate([w_hwio[ky, kx] for ky, kx in taps], axis=0)

    def __call__(self, x_nchw):
        out_dtype = x_nchw.dtype
        if self.with_conv:
            # bf16 cast fuses into the same space-to-depth copy (halves activation DMA).
            y = _space_to_depth_conv(x_nchw).astype(self.compute_dtype)
            out = downsample_conv(y, self.w_packed, self.bias2d, out_dtype,
                                  h_tile=self.h_tile)
            if self.output_layout == "NHWC":
                return out               # NHWC consumers can skip the final transpose
            return jnp.transpose(out, (0, 3, 1, 2))        # NHWC -> NCHW
        y = _space_to_depth_pool(x_nchw)
        return downsample_avg_pool(y, out_dtype)            # kernel already writes NCHW

    # ---------- pure-JAX reference (same semantics as the PyTorch module) ----------
    def reference(self, x_nchw):
        if self.with_conv:
            xpad = jnp.pad(x_nchw, ((0, 0), (0, 0), (0, 1), (0, 1)))
            y = jax.lax.conv_general_dilated(
                xpad, self.w_hwio, window_strides=(2, 2), padding="VALID",
                dimension_numbers=("NCHW", "HWIO", "NCHW"),
                precision=jax.lax.Precision.HIGHEST)
            return y + self.bias[None, :, None, None]
        N, C, H, W = x_nchw.shape
        return x_nchw.reshape(N, C, H // 2, 2, W // 2, 2).mean(axis=(3, 5))


# -------------------------------- main -------------------------------------- #

if __name__ == "__main__":
    key = jax.random.PRNGKey(0)
    k_x, k_p = jax.random.split(key)

    # C multiple of 128 keeps the lane slices aligned; H=W=32 keeps Wo a multiple of the
    # bf16 sublane tile and lets us exercise the Ho-tiled / halo-row path.
    N, C, H, W = 2, 128, 32, 32
    x = jax.random.normal(k_x, (N, C, H, W), jnp.float32)

    # with_conv=True, f32 MXU operands, auto tile (single Ho tile at this size).
    ds_f32 = DownsamplePallas(k_p, C, with_conv=True, compute_dtype=jnp.float32)
    y_f32 = jax.block_until_ready(ds_f32(x))
    assert y_f32.shape == (N, C, H // 2, W // 2)
    y_ref = ds_f32.reference(x)
    err = float(jnp.max(jnp.abs(y_f32 - y_ref)))
    assert jnp.allclose(y_f32, y_ref, atol=3e-2, rtol=3e-2), f"conv f32 max err {err}"

    # with_conv=True, default bf16 operands, forced Ho tiling (exercises the halo row).
    ds_bf16 = DownsamplePallas(k_p, C, with_conv=True, h_tile=4)
    y_bf16 = jax.block_until_ready(ds_bf16(x))
    err = float(jnp.max(jnp.abs(y_bf16 - y_ref)))
    assert jnp.allclose(y_bf16, y_ref, atol=6e-2, rtol=6e-2), f"conv bf16 max err {err}"

    # with_conv=False (avg_pool2d path), NCHW out straight from the kernel.
    ds_pool = DownsamplePallas(k_p, C, with_conv=False)
    y_pool = jax.block_until_ready(ds_pool(x))
    assert y_pool.shape == (N, C, H // 2, W // 2)
    p_ref = ds_pool.reference(x)
    errp = float(jnp.max(jnp.abs(y_pool - p_ref)))
    assert jnp.allclose(y_pool, p_ref, atol=1e-5, rtol=1e-5), f"pool max err {errp}"

    print("KERNEL_OK")
</pallas_src>

<mosaic_0001>
module attributes {stable_mosaic.version = 11 : i64} {
  func.func @_down_conv_kernel(%arg0: i32, %arg1: i32, %arg2: memref<1x16x16x512xf32, #tpu.memory_space<vmem>>, %arg3: memref<1x1x16x512xf32, #tpu.memory_space<vmem>>, %arg4: memref<1152x128xf32, #tpu.memory_space<vmem>>, %arg5: memref<1x128xf32, #tpu.memory_space<vmem>>, %arg6: memref<1x16x16x128xf32, #tpu.memory_space<vmem>>, %arg7: memref<17x17x512xf32, #tpu.memory_space<vmem>>) attributes {dimension_semantics = [#tpu.dimension_semantics<parallel>, #tpu.dimension_semantics<parallel>], iteration_bounds = array<i64: 2, 1>, scalar_prefetch = 0 : i64, scratch_operands = 1 : i64, tpu.core_type = #tpu.core_type<tc>, window_params = [{transform_indices = @transform_0, window_bounds = array<i64: 1, 16, 16, 512>}, {transform_indices = @transform_1, window_bounds = array<i64: 1, 1, 16, 512>}, {pipeline_mode = #tpu.pipeline_mode<synchronous>, transform_indices = @transform_2, window_bounds = array<i64: 1152, 128>}, {pipeline_mode = #tpu.pipeline_mode<synchronous>, transform_indices = @transform_3, window_bounds = array<i64: 1, 128>}, {transform_indices = @transform_4, window_bounds = array<i64: 1, 16, 16, 128>}]} {
    %c0 = arith.constant 0 : index
    %c0_0 = arith.constant 0 : index
    %c0_1 = arith.constant 0 : index
    %c0_2 = arith.constant 0 : index
    %0 = vector.load %arg2[%c0, %c0_0, %c0_1, %c0_2] : memref<1x16x16x512xf32, #tpu.memory_space<vmem>>, vector<1x16x16x512xf32>
    %1 = vector.shape_cast %0 : vector<1x16x16x512xf32> to vector<16x16x512xf32>
    %c0_3 = arith.constant 0 : index
    %c0_4 = arith.constant 0 : index
    %c0_5 = arith.constant 0 : index
    %2 = vector.load %arg7[%c0_3, %c0_4, %c0_5] : memref<17x17x512xf32, #tpu.memory_space<vmem>>, vector<16x16x512xf32>
    tpu.vector_store %arg7[%c0_3, %c0_4, %c0_5], %1 {strides = array<i32>} : memref<17x17x512xf32, #tpu.memory_space<vmem>>, vector<16x16x512xf32>,
    %c0_i32 = arith.constant 0 : i32
    %3 = arith.cmpi eq, %arg1, %c0_i32 : i32
    %c0_6 = arith.constant 0 : index
    %c0_7 = arith.constant 0 : index
    %c0_8 = arith.constant 0 : index
    %c0_9 = arith.constant 0 : index
    %4 = vector.load %arg3[%c0_6, %c0_7, %c0_8, %c0_9] : memref<1x1x16x512xf32, #tpu.memory_space<vmem>>, vector<1x1x16x512xf32>
    %5 = vector.shape_cast %4 : vector<1x1x16x512xf32> to vector<1x16x512xf32>
    %cst = arith.constant 0.000000e+00 : f32
    %6 = vector.broadcast %cst : f32 to vector<1x16x512xf32>
    %7 = arith.select %3, %6, %5 : vector<1x16x512xf32>
    %c16 = arith.constant 16 : index
    %c0_10 = arith.constant 0 : index
    %c0_11 = arith.constant 0 : index
    %8 = vector.load %arg7[%c16, %c0_10, %c0_11] : memref<17x17x512xf32, #tpu.memory_space<vmem>>, vector<1x16x512xf32>
    tpu.vector_store %arg7[%c16, %c0_10, %c0_11], %7 {strides = array<i32>} : memref<17x17x512xf32, #tpu.memory_space<vmem>>, vector<1x16x512xf32>,
    %cst_12 = arith.constant 0.000000e+00 : f32
    %9 = vector.broadcast %cst_12 : f32 to vector<17x1x512xf32>
    %c0_13 = arith.constant 0 : index
    %c16_14 = arith.constant 16 : index
    %c0_15 = arith.constant 0 : index
    %10 = vector.load %arg7[%c0_13, %c16_14, %c0_15] : memref<17x17x512xf32, #tpu.memory_space<vmem>>, vector<17x1x512xf32>
    tpu.vector_store %arg7[%c0_13, %c16_14, %c0_15], %9 {strides = array<i32>} : memref<17x17x512xf32, #tpu.memory_space<vmem>>, vector<17x1x512xf32>,
    %c0_16 = arith.constant 0 : index
    %c0_17 = arith.constant 0 : index
    %c0_18 = arith.constant 0 : index
    %11 = vector.load %arg7[%c0_16, %c0_17, %c0_18] : memref<17x17x512xf32, #tpu.memory_space<vmem>>, vector<16x16x512xf32>
    %12 = vector.shape_cast %11 : vector<16x16x512xf32> to vector<256x512xf32>
    %c0_19 = arith.constant 0 : index
    %c0_20 = arith.constant 0 : index
    %13 = vector.load %arg4[%c0_19, %c0_20] : memref<1152x128xf32, #tpu.memory_space<vmem>>, vector<512x128xf32>
    %cst_21 = arith.constant dense<0.000000e+00> : vector<256x128xf32>
    %14 = tpu.matmul %12, %13, %cst_21 {dimension_numbers = #tpu.dot_dimension_numbers<[1], [0], [0], [1], [0, 0, 1, 1], [], []>} : vector<256x512xf32>, vector<512x128xf32>, vector<256x128xf32> -> vector<256x128xf32>
    %c1 = arith.constant 1 : index
    %c0_22 = arith.constant 0 : index
    %c0_23 = arith.constant 0 : index
    %15 = vector.load %arg7[%c1, %c0_22, %c0_23] : memref<17x17x512xf32, #tpu.memory_space<vmem>>, vector<16x16x256xf32>
    %16 = vector.shape_cast %15 : vector<16x16x256xf32> to vector<256x256xf32>
    %c512 = arith.constant 512 : index
    %c0_24 = arith.constant 0 : index
    %17 = vector.load %arg4[%c512, %c0_24] : memref<1152x128xf32, #tpu.memory_space<vmem>>, vector<256x128xf32>
    %cst_25 = arith.constant dense<0.000000e+00> : vector<256x128xf32>
    %18 = tpu.matmul %16, %17, %cst_25 {dimension_numbers = #tpu.dot_dimension_numbers<[1], [0], [0], [1], [0, 0, 1, 1], [], []>} : vector<256x256xf32>, vector<256x128xf32>, vector<256x128xf32> -> vector<256x128xf32>
    %19 = arith.addf %14, %18 : vector<256x128xf32>
    %c0_26 = arith.constant 0 : index
    %c1_27 = arith.constant 1 : index
    %c0_28 = arith.constant 0 : index
    %20 = vector.load %arg7[%c0_26, %c1_27, %c0_28] : memref<17x17x512xf32, #tpu.memory_space<vmem>>, vector<16x16x128xf32>
    %21 = vector.shape_cast %20 : vector<16x16x128xf32> to vector<256x128xf32>
    %c768 = arith.constant 768 : index
    %c0_29 = arith.constant 0 : index
    %22 = vector.load %arg4[%c768, %c0_29] : memref<1152x128xf32, #tpu.memory_space<vmem>>, vector<128x128xf32>
    %cst_30 = arith.constant dense<0.000000e+00> : vector<256x128xf32>
    %23 = tpu.matmul %21, %22, %cst_30 {dimension_numbers = #tpu.dot_dimension_numbers<[1], [0], [0], [1], [0, 0, 1, 1], [], []>} : vector<256x128xf32>, vector<128x128xf32>, vector<256x128xf32> -> vector<256x128xf32>
    %24 = arith.addf %19, %23 : vector<256x128xf32>
    %c0_31 = arith.constant 0 : index
    %c1_32 = arith.constant 1 : index
    %c256 = arith.constant 256 : index
    %25 = vector.load %arg7[%c0_31, %c1_32, %c256] : memref<17x17x512xf32, #tpu.memory_space<vmem>>, vector<16x16x128xf32>
    %26 = vector.shape_cast %25 : vector<16x16x128xf32> to vector<256x128xf32>
    %c896 = arith.constant 896 : index
    %c0_33 = arith.constant 0 : index
    %27 = vector.load %arg4[%c896, %c0_33] : memref<1152x128xf32, #tpu.memory_space<vmem>>, vector<128x128xf32>
    %cst_34 = arith.constant dense<0.000000e+00> : vector<256x128xf32>
    %28 = tpu.matmul %26, %27, %cst_34 {dimension_numbers = #tpu.dot_dimension_numbers<[1], [0], [0], [1], [0, 0, 1, 1], [], []>} : vector<256x128xf32>, vector<128x128xf32>, vector<256x128xf32> -> vector<256x128xf32>
    %29 = arith.addf %24, %28 : vector<256x128xf32>
    %c1_35 = arith.constant 1 : index
    %c1_36 = arith.constant 1 : index
    %c0_37 = arith.constant 0 : index
    %30 = vector.load %arg7[%c1_35, %c1_36, %c0_37] : memref<17x17x512xf32, #tpu.memory_space<vmem>>, vector<16x16x128xf32>
    %31 = vector.shape_cast %30 : vector<16x16x128xf32> to vector<256x128xf32>
    %c1024 = arith.constant 1024 : index
    %c0_38 = arith.constant 0 : index
    %32 = vector.load %arg4[%c1024, %c0_38] : memref<1152x128xf32, #tpu.memory_space<vmem>>, vector<128x128xf32>
    %cst_39 = arith.constant dense<0.000000e+00> : vector<256x128xf32>
    %33 = tpu.matmul %31, %32, %cst_39 {dimension_numbers = #tpu.dot_dimension_numbers<[1], [0], [0], [1], [0, 0, 1, 1], [], []>} : vector<256x128xf32>, vector<128x128xf32>, vector<256x128xf32> -> vector<256x128xf32>
    %34 = arith.addf %29, %33 : vector<256x128xf32>
    %c0_40 = arith.constant 0 : index
    %c0_41 = arith.constant 0 : index
    %35 = vector.load %arg5[%c0_40, %c0_41] : memref<1x128xf32, #tpu.memory_space<vmem>>, vector<1x128xf32>
    %36 = vector.broadcast %35 : vector<1x128xf32> to vector<256x128xf32>
    %37 = arith.addf %34, %36 : vector<256x128xf32>
    %38 = vector.shape_cast %37 : vector<256x128xf32> to vector<16x16x128xf32>
    %c0_42 = arith.constant 0 : index
    %c0_43 = arith.constant 0 : index
    %c0_44 = arith.constant 0 : index
    %c0_45 = arith.constant 0 : index
    %39 = vector.load %arg6[%c0_42, %c0_43, %c0_44, %c0_45] : memref<1x16x16x128xf32, #tpu.memory_space<vmem>>, vector<1x16x16x128xf32>
    %40 = vector.shape_cast %39 : vector<1x16x16x128xf32> to vector<16x16x128xf32>
    %41 = vector.shape_cast %38 : vector<16x16x128xf32> to vector<1x16x16x128xf32>
    tpu.vector_store %arg6[%c0_42, %c0_43, %c0_44, %c0_45], %41 {strides = array<i32>} : memref<1x16x16x128xf32, #tpu.memory_space<vmem>>, vector<1x16x16x128xf32>,
    return
  }
  func.func @transform_0(%arg0: i32, %arg1: i32) -> (i32, i32, i32, i32) {
    %c0_i32 = arith.constant 0 : i32
    %c0_i32_0 = arith.constant 0 : i32
    %c0_i32_1 = arith.constant 0 : i32
    return %arg0, %arg1, %c0_i32, %c0_i32_0 : i32, i32, i32, i32
  }
  func.func @transform_1(%arg0: i32, %arg1: i32) -> (i32, i32, i32, i32) {
    %c1_i32 = arith.constant 1 : i32
    %0 = arith.addi %arg1, %c1_i32 : i32
    %c16_i32 = arith.constant 16 : i32
    %1 = arith.muli %0, %c16_i32 : i32
    %c15_i32 = arith.constant 15 : i32
    %2 = arith.minsi %1, %c15_i32 : i32
    %c0_i32 = arith.constant 0 : i32
    %c0_i32_0 = arith.constant 0 : i32
    %c0_i32_1 = arith.constant 0 : i32
    return %arg0, %2, %c0_i32, %c0_i32_0 : i32, i32, i32, i32
  }
  func.func @transform_2(%arg0: i32, %arg1: i32) -> (i32, i32) {
    %c0_i32 = arith.constant 0 : i32
    %c0_i32_0 = arith.constant 0 : i32
    %c0_i32_1 = arith.constant 0 : i32
    return %c0_i32, %c0_i32_0 : i32, i32
  }
  func.func @transform_3(%arg0: i32, %arg1: i32) -> (i32, i32) {
    %c0_i32 = arith.constant 0 : i32
    %c0_i32_0 = arith.constant 0 : i32
    %c0_i32_1 = arith.constant 0 : i32
    return %c0_i32, %c0_i32_0 : i32, i32
  }
  func.func @transform_4(%arg0: i32, %arg1: i32) -> (i32, i32, i32, i32) {
    %c0_i32 = arith.constant 0 : i32
    %c0_i32_0 = arith.constant 0 : i32
    %c0_i32_1 = arith.constant 0 : i32
    return %arg0, %arg1, %c0_i32, %c0_i32_0 : i32, i32, i32, i32
  }
}

</mosaic_0001>

<llo_original>
// kernel: tpu_custom_call.1
$region0: #{tpu_custom_call.1}
  #allocation0 [shape = 'u32[]', space=smem, size = 0x4, offset = 0x4, fixed_abs, tag = 'smem constant byte address 0x4 - core index']
  #allocation1 [shape = 'u32[72,128]{1,0:T(1,128)}', space=vmem, size = 0x9000, scoped, tag = 'internal scratch']
  #allocation2 [shape = 'f32[17,17,512]{2,1,0:T(8,128)}', space=vmem, size = 0xcc000, scoped, tag = 'scratch operand']
  %s0 = inlined_call_operand.hbm [shape: f32[2,16,16,512], index: 0, kind: input, shape index: {}]
  %s1 = inlined_call_operand.hbm [shape: f32[2,16,16,512], index: 1, kind: input, shape index: {}]
  %s2 = inlined_call_operand.hbm [shape: f32[1152,128], index: 2, kind: input, shape index: {}]
  %s3 = inlined_call_operand.vmem [shape: f32[1,128], index: 3, kind: input, shape index: {}]
  %s4 = inlined_call_operand.hbm [shape: f32[2,16,16,128], index: 4, kind: output, shape index: {}]
  %s5 = sld [smem:[#allocation0]]
  $region61: #{tpu_custom_call.1} parent=0
    _
  %s7 = ssub.s32 1, %s5
  %s8 = scalar_select 0, %s7, %s5
  $region1: #{tpu_custom_call.1} parent=0
    #allocation3 [shape = 'u8[1048576]{0}', space=vmem, size = 0x100000, scoped, tag = 'input window, operand 0']
    #allocation4 [shape = 's32[2]{0}', space=sflag, size = 0x8, scoped, tag = 'scoped memory for tpu_custom_call.1']
    #allocation5 [shape = 's32[2]{0}', space=sflag, size = 0x8, scoped, tag = 'scoped memory for tpu_custom_call.1']
    #allocation6 [shape = 'u8[65536]{0}', space=vmem, size = 0x10000, scoped, tag = 'input window, operand 1']
    #allocation7 [shape = 's32[2]{0}', space=sflag, size = 0x8, scoped, tag = 'scoped memory for tpu_custom_call.1']
    #allocation8 [shape = 'u8[589824]{0}', space=vmem, size = 0x90000, scoped, tag = 'input window, operand 2, single buffered']
    #allocation9 [shape = 'u8[262144]{0}', space=vmem, size = 0x40000, scoped, tag = 'output window, operand 0']
    %9 = vsyncpa [#allocation4], 0
    %s10 = scalar_lea.sflag [#allocation4], 1
    %11 = vsyncpa %s10, 0
    %12 = vsyncpa [#allocation7], 0
    %s13 = scalar_lea.sflag [#allocation7], 1
    %14 = vsyncpa %s13, 0
    %15 = vsyncpa [#allocation5], 0
    %s16 = scalar_lea.sflag [#allocation5], 1
    %17 = vsyncpa %s16, 0
    loop: start=0, step=1, limit=4
    $region2: #{tpu_custom_call.1} parent=1 // loop_pre_header
      _
    $region3: #{tpu_custom_call.1} parent=1 // loop_header
      %s19 = sphi 0, %s23
      %p20 = scmp.ge.s32.totalorder %s19, 4
      %s26 = sphi 0, %s38
      %s27 = sphi 0, %s34
      %s28 = sphi 0, %s26
      %s29 = sphi 0, %s27
      %s30 = sphi 0, %s28
      %s31 = sphi 0, %s29
      %s43 = sphi 0, %s45
      %s46 = sphi 0, %s43
      %s47 = sphi 0, %s46
      %s63 = sphi 0, %s47
      %s79 = sphi 0, %s81
      %s82 = sphi 0, %s79
      %s83 = sphi 0, %s82
      %s99 = sphi 0, %s83
      %s103 = sphi 0, %s103
      %s105 = sphi 0, %s103
      %s106 = sphi 0, %s105
      %s120 = sphi 0, %s106
      %s124 = sphi 0, %s124
      %s126 = sphi 0, %s124
      %s127 = sphi 0, %s126
      %s141 = sphi 0, %s127
      %s149 = sphi 0, %s151
      %s152 = sphi 0, %s149
      %s153 = sphi 0, %s152
      %s169 = sphi 0, %s153
    $region4: #{tpu_custom_call.1} parent=1 // loop_header_branch
      %22 = sbr.rel (%p20) target = $region8
    $region5: #{tpu_custom_call.1} parent=1 // loop_body
      %s24 = ssub.s32 %s19, 1
      %s25 = ssub.s32 %s19, 2
      %s32 = sadd.s32 1, %s27
      %p33 = scmp.ge.s32.totalorder %s32, 1
      %s34 = scalar_select %p33, 0, %s32
      %s35 = sadd.s32 1, %s26
      %s36 = scalar_select %p33, %s35, %s26
      %p37 = scmp.ge.s32.totalorder %s36, 2
      %s38 = scalar_select %p37, 0, %s36
      %s39 = ssub.s32 %s26, %s38
      %s40 = ssub.s32 %s27, %s34
      %s41 = sor.u32 %s39, %s40
      %p42 = scmp.eq.s32.totalorder %s41, 0
      %s44 = sadd.s32 %s43, 1
      %s45 = scalar_select %p42, %s43, %s44
      %p48 = pneg %p42
      %p49 = scmp.eq.s32.totalorder %s19, 1
      %p50 = por %p48, %p49
      %p51 = scmp.ne.s32.totalorder %s43, %s46
      %p52 = scmp.eq.s32.totalorder %s19, 0
      %p53 = por %p51, %p52
      %p54 = scmp.ne.s32.totalorder %s43, %s46
      %p55 = scmp.eq.s32.totalorder %s24, 1
      %p56 = por %p54, %p55
      %p57 = scmp.ne.s32.totalorder %s46, %s47
      %p58 = scmp.eq.s32.totalorder %s24, 0
      %p59 = por %p57, %p58
      %p60 = scmp.ne.s32.totalorder %s46, %s47
      %p61 = scmp.eq.s32.totalorder %s25, 1
      %p62 = por %p60, %p61
      %p64 = scmp.ne.s32.totalorder %s47, %s63
      %p65 = scmp.eq.s32.totalorder %s25, 0
      %p66 = por %p64, %p65
      %s67 = sadd.s32 %s27, 1
      %s68 = smul.u32 %s67, 16
      %p69 = scmp.lt.s32.totalorder %s68, 15
      %s70 = scalar_select %p69, %s68, 15
      %s71 = sadd.s32 %s34, 1
      %s72 = smul.u32 %s71, 16
      %p73 = scmp.lt.s32.totalorder %s72, 15
      %s74 = scalar_select %p73, %s72, 15
      %s75 = ssub.s32 %s26, %s38
      %s76 = ssub.s32 %s70, %s74
      %s77 = sor.u32 %s75, %s76
      %p78 = scmp.eq.s32.totalorder %s77, 0
      %s80 = sadd.s32 %s79, 1
      %s81 = scalar_select %p78, %s79, %s80
      %p84 = pneg %p78
      %p85 = scmp.eq.s32.totalorder %s19, 1
      %p86 = por %p84, %p85
      %p87 = scmp.ne.s32.totalorder %s79, %s82
      %p88 = scmp.eq.s32.totalorder %s19, 0
      %p89 = por %p87, %p88
      %p90 = scmp.ne.s32.totalorder %s79, %s82
      %p91 = scmp.eq.s32.totalorder %s24, 1
      %p92 = por %p90, %p91
      %p93 = scmp.ne.s32.totalorder %s82, %s83
      %p94 = scmp.eq.s32.totalorder %s24, 0
      %p95 = por %p93, %p94
      %p96 = scmp.ne.s32.totalorder %s82, %s83
      %p97 = scmp.eq.s32.totalorder %s25, 1
      %p98 = por %p96, %p97
      %p100 = scmp.ne.s32.totalorder %s83, %s99
      %p101 = scmp.eq.s32.totalorder %s25, 0
      %p102 = por %p100, %p101
      %s104 = sadd.s32 %s103, 1
      %p107 = scmp.eq.s32.totalorder %s19, 1
      %p108 = scmp.ne.s32.totalorder %s103, %s105
      %p109 = scmp.eq.s32.totalorder %s19, 0
      %p110 = por %p108, %p109
      %p111 = scmp.ne.s32.totalorder %s103, %s105
      %p112 = scmp.eq.s32.totalorder %s24, 1
      %p113 = por %p111, %p112
      %p114 = scmp.ne.s32.totalorder %s105, %s106
      %p115 = scmp.eq.s32.totalorder %s24, 0
      %p116 = por %p114, %p115
      %p117 = scmp.ne.s32.totalorder %s105, %s106
      %p118 = scmp.eq.s32.totalorder %s25, 1
      %p119 = por %p117, %p118
      %p121 = scmp.ne.s32.totalorder %s106, %s120
      %p122 = scmp.eq.s32.totalorder %s25, 0
      %p123 = por %p121, %p122
      %s125 = sadd.s32 %s124, 1
      %p128 = scmp.eq.s32.totalorder %s19, 1
      %p129 = scmp.ne.s32.totalorder %s124, %s126
      %p130 = scmp.eq.s32.totalorder %s19, 0
      %p131 = por %p129, %p130
      %p132 = scmp.ne.s32.totalorder %s124, %s126
      %p133 = scmp.eq.s32.totalorder %s24, 1
      %p134 = por %p132, %p133
      %p135 = scmp.ne.s32.totalorder %s126, %s127
      %p136 = scmp.eq.s32.totalorder %s24, 0
      %p137 = por %p135, %p136
      %p138 = scmp.ne.s32.totalorder %s126, %s127
      %p139 = scmp.eq.s32.totalorder %s25, 1
      %p140 = por %p138, %p139
      %p142 = scmp.ne.s32.totalorder %s127, %s141
      %p143 = scmp.eq.s32.totalorder %s25, 0
      %p144 = por %p142, %p143
      %s145 = ssub.s32 %s26, %s38
      %s146 = ssub.s32 %s27, %s34
      %s147 = sor.u32 %s145, %s146
      %p148 = scmp.eq.s32.totalorder %s147, 0
      %s150 = sadd.s32 %s149, 1
      %s151 = scalar_select %p148, %s149, %s150
      %p154 = pneg %p148
      %p155 = scmp.eq.s32.totalorder %s19, 1
      %p156 = por %p154, %p155
      %p157 = scmp.ne.s32.totalorder %s149, %s152
      %p158 = scmp.eq.s32.totalorder %s19, 0
      %p159 = por %p157, %p158
      %p160 = scmp.ne.s32.totalorder %s149, %s152
      %p161 = scmp.eq.s32.totalorder %s24, 1
      %p162 = por %p160, %p161
      %p163 = scmp.ne.s32.totalorder %s152, %s153
      %p164 = scmp.eq.s32.totalorder %s24, 0
      %p165 = por %p163, %p164
      %p166 = scmp.ne.s32.totalorder %s152, %s153
      %p167 = scmp.eq.s32.totalorder %s25, 1
      %p168 = por %p166, %p167
      %p170 = scmp.ne.s32.totalorder %s153, %s169
      %p171 = scmp.eq.s32.totalorder %s25, 0
      %p172 = por %p170, %p171
      %p173 = scmp.le.s32.totalorder 1, %s19
      %p174 = scmp.lt.s32.totalorder %s19, 3
      %p175 = pnand %p173, %p174
      %p176 = pneg %p175
      // Predicated region
      $region9: #{tpu_custom_call.1} parent=5 // pred_check
        _
      $region10: #{tpu_custom_call.1} parent=5 // pred_check_branch
        %178 = sbr.rel (%p175) target = $region12
      $region11: #{tpu_custom_call.1} parent=5 // pred_region
        %s179 = ssub.s32 %s19, 1
        // Predicated region
        $region13: #{tpu_custom_call.1} parent=11 // pred_check
          %p180 = pneg %p116
        $region14: #{tpu_custom_call.1} parent=11 // pred_check_branch
          %182 = sbr.rel (%p180) target = $region16
        $region15: #{tpu_custom_call.1} parent=11 // pred_region
          %184 = vsyncadd [#allocation7], 0
          %s185 = sshll.u32 %s2, 4
          %s186 = int_to_ptr.hbm [resolvable:$true] %s185
          %s187 = sshll.u32 [#allocation8], 4
          %s188 = int_to_ptr.vmem [resolvable:$true] %s187
          %193 = dma.hbm_to_vmem [thread:$0]  %s186, 18432, %s188, [#allocation7], 128, 128, 8
        $region16: #{tpu_custom_call.1} parent=11 // pred_fallthru
          _
        // Predicated region
        $region17: #{tpu_custom_call.1} parent=11 // pred_check
          %p194 = pneg %p137
        $region18: #{tpu_custom_call.1} parent=11 // pred_check_branch
          %196 = sbr.rel (%p194) target = $region20
        $region19: #{tpu_custom_call.1} parent=11 // pred_region
          _
        $region20: #{tpu_custom_call.1} parent=11 // pred_fallthru
          _
      $region12: #{tpu_custom_call.1} parent=5 // pred_fallthru
        _
      %p197 = scmp.lt.s32.totalorder %s19, 2
      // Predicated region
      $region21: #{tpu_custom_call.1} parent=5 // pred_check
        %p198 = pneg %p197
      $region22: #{tpu_custom_call.1} parent=5 // pred_check_branch
        %200 = sbr.rel (%p198) target = $region24
      $region23: #{tpu_custom_call.1} parent=5 // pred_region
        // Predicated region
        $region25: #{tpu_custom_call.1} parent=23 // pred_check
          %p201 = pneg %p53
        $region26: #{tpu_custom_call.1} parent=23 // pred_check_branch
          %203 = sbr.rel (%p201) target = $region28
        $region27: #{tpu_custom_call.1} parent=23 // pred_region
          %s204 = sand.u32 %s43, 1
          %s205 = scalar_lea.sflag [#allocation4], %s204
          %s206 = sand.u32 %s43, 1
          %s207 = smul.addr %s206, 1024
          %s208 = scalar_lea.vmem [#allocation3], %s207
          %s209 = smul.u32 16, %s27
          %211 = vsyncadd %s205, 0
          %s212 = smul.addr %s209, 8
          %s213 = smul.addr %s26, 128
          %s214 = sadd.s32 %s212, %s213
          %s215 = smul.addr %s214, 8
          %s216 = scalar_lea.hbm %s0, %s215
          %s217 = sshll.u32 %s216, 4
          %s218 = int_to_ptr.hbm [resolvable:$true] %s217
          %s219 = sshll.u32 %s208, 4
          %s220 = int_to_ptr.vmem [resolvable:$true] %s219
          %225 = dma.hbm_to_vmem [thread:$0]  %s218, 16384, %s220, %s205, 512, 512, 32
        $region28: #{tpu_custom_call.1} parent=23 // pred_fallthru
          _
        // Predicated region
        $region29: #{tpu_custom_call.1} parent=23 // pred_check
          %p226 = pneg %p89
        $region30: #{tpu_custom_call.1} parent=23 // pred_check_branch
          %228 = sbr.rel (%p226) target = $region32
        $region31: #{tpu_custom_call.1} parent=23 // pred_region
          %s229 = sand.u32 %s19, 1
          %s230 = scalar_lea.sflag [#allocation7], %s229
          %s231 = sand.u32 %s79, 1
          %s232 = smul.addr %s231, 64
          %s233 = scalar_lea.vmem [#allocation6], %s232
          %s234 = sadd.s32 %s27, 1
          %s235 = smul.u32 %s234, 16
          %p236 = scmp.lt.s32.totalorder %s235, 15
          %s237 = scalar_select %p236, %s235, 15
          %239 = vsyncadd %s230, 0
          %s240 = smul.addr %s237, 8
          %s241 = smul.addr %s26, 128
          %s242 = sadd.s32 %s240, %s241
          %s243 = smul.addr %s242, 8
          %s244 = scalar_lea.hbm %s1, %s243
          %s245 = sshll.u32 %s244, 4
          %s246 = int_to_ptr.hbm [resolvable:$true] %s245
          %s247 = sshll.u32 %s233, 4
          %s248 = int_to_ptr.vmem [resolvable:$true] %s247
          %253 = dma.hbm_to_vmem [thread:$0]  %s246, 1024, %s248, %s230, 512, 512, 32
        $region32: #{tpu_custom_call.1} parent=23 // pred_fallthru
          _
      $region24: #{tpu_custom_call.1} parent=5 // pred_fallthru
        _
      %p254 = scmp.le.s32.totalorder 1, %s19
      %p255 = scmp.lt.s32.totalorder %s19, 3
      %p256 = pnand %p254, %p255
      %p257 = pneg %p256
      // Predicated region
      $region33: #{tpu_custom_call.1} parent=5 // pred_check
        _
      $region34: #{tpu_custom_call.1} parent=5 // pred_check_branch
        %259 = sbr.rel (%p256) target = $region36
      $region35: #{tpu_custom_call.1} parent=5 // pred_region
        %s260 = ssub.s32 %s19, 1
        %s261 = sand.u32 %s46, 1
        %s262 = scalar_lea.sflag [#allocation4], %s261
        %s263 = sand.u32 %s46, 1
        %s264 = smul.addr %s263, 1024
        %s265 = scalar_lea.vmem [#allocation3], %s264
        // Predicated region
        $region37: #{tpu_custom_call.1} parent=35 // pred_check
          %p266 = pneg %p59
        $region38: #{tpu_custom_call.1} parent=35 // pred_check_branch
          %268 = sbr.rel (%p266) target = $region40
        $region39: #{tpu_custom_call.1} parent=35 // pred_region
          %270 = dma.done %s262, 16384
        $region40: #{tpu_custom_call.1} parent=35 // pred_fallthru
          _
        %s271 = sand.u32 %s24, 1
        %s272 = scalar_lea.sflag [#allocation7], %s271
        %s273 = sand.u32 %s82, 1
        %s274 = smul.addr %s273, 64
        %s275 = scalar_lea.vmem [#allocation6], %s274
        // Predicated region
        $region41: #{tpu_custom_call.1} parent=35 // pred_check
          %p276 = pneg %p95
        $region42: #{tpu_custom_call.1} parent=35 // pred_check_branch
          %278 = sbr.rel (%p276) target = $region44
        $region43: #{tpu_custom_call.1} parent=35 // pred_region
          %280 = dma.done %s272, 1024
        $region44: #{tpu_custom_call.1} parent=35 // pred_fallthru
          _
        // Predicated region
        $region45: #{tpu_custom_call.1} parent=35 // pred_check
          %p281 = pneg %p116
        $region46: #{tpu_custom_call.1} parent=35 // pred_check_branch
          %283 = sbr.rel (%p281) target = $region48
        $region47: #{tpu_custom_call.1} parent=35 // pred_region
          %285 = dma.done [#allocation7], 18432
        $region48: #{tpu_custom_call.1} parent=35 // pred_fallthru
          _
        %s286 = sand.u32 %s46, 1
        %s287 = scalar_lea.sflag [#allocation4], %s286
        %s288 = sand.u32 %s46, 1
        %s289 = smul.addr %s288, 1024
        %s290 = scalar_lea.vmem [#allocation3], %s289
        %p291 = pneg %p59
        %p292 = pneg %p56
        %s293 = sand.u32 %s24, 1
        %s294 = scalar_lea.sflag [#allocation7], %s293
        %s295 = sand.u32 %s82, 1
        %s296 = smul.addr %s295, 64
        %s297 = scalar_lea.vmem [#allocation6], %s296
        %p298 = pneg %p95
        %p299 = pneg %p92
        %p300 = pneg %p116
        %p301 = pneg %p113
        %p302 = pneg %p137
        %p303 = pneg %p134
        %p304 = pneg %p165
        %p305 = pneg %p162
        %s306 = sand.u32 %s152, 1
        %s307 = scalar_lea.sflag [#allocation5], %s306
        %s308 = sand.u32 %s152, 1
        %s309 = smul.addr %s308, 256
        %s310 = scalar_lea.vmem [#allocation9], %s309
        %s311 = smul.u32 16, %s29
        %s312 = sadd.s32 %s29, 1
        %s313 = smul.u32 %s312, 16
        %p314 = scmp.lt.s32.totalorder %s313, 15
        %s315 = scalar_select %p314, %s313, 15
        %s316 = smul.u32 16, %s29
        %v317 = vld [vmem:[%s265] sm:$0xff]
        %v318 = vld [vmem:[%s265 + $0x8] sm:$0xff]
        %v319 = vld [vmem:[%s265 + $0x10] sm:$0xff]
        %v320 = vld [vmem:[%s265 + $0x18] sm:$0xff]
        %v321 = vld [vmem:[%s265 + $0x20] sm:$0xff]
        %v322 = vld [vmem:[%s265 + $0x28] sm:$0xff]
        %v323 = vld [vmem:[%s265 + $0x30] sm:$0xff]
        %v324 = vld [vmem:[%s265 + $0x38] sm:$0xff]
        %v325 = vld [vmem:[%s265 + $0x40] sm:$0xff]
        %v326 = vld [vmem:[%s265 + $0x48] sm:$0xff]
        %v327 = vld [vmem:[%s265 + $0x50] sm:$0xff]
        %v328 = vld [vmem:[%s265 + $0x58] sm:$0xff]
        %v329 = vld [vmem:[%s265 + $0x60] sm:$0xff]
        %v330 = vld [vmem:[%s265 + $0x68] sm:$0xff]
        %v331 = vld [vmem:[%s265 + $0x70] sm:$0xff]
        %v332 = vld [vmem:[%s265 + $0x78] sm:$0xff]
        %v333 = vld [vmem:[%s265 + $0x80] sm:$0xff]
        %v334 = vld [vmem:[%s265 + $0x88] sm:$0xff]
        %v335 = vld [vmem:[%s265 + $0x90] sm:$0xff]
        %v336 = vld [vmem:[%s265 + $0x98] sm:$0xff]
        %v337 = vld [vmem:[%s265 + $0xa0] sm:$0xff]
        %v338 = vld [vmem:[%s265 + $0xa8] sm:$0xff]
        %v339 = vld [vmem:[%s265 + $0xb0] sm:$0xff]
        %v340 = vld [vmem:[%s265 + $0xb8] sm:$0xff]
        %v341 = vld [vmem:[%s265 + $0xc0] sm:$0xff]
        %v342 = vld [vmem:[%s265 + $0xc8] sm:$0xff]
        %v343 = vld [vmem:[%s265 + $0xd0] sm:$0xff]
        %v344 = vld [vmem:[%s265 + $0xd8] sm:$0xff]
        %v345 = vld [vmem:[%s265 + $0xe0] sm:$0xff]
        %v346 = vld [vmem:[%s265 + $0xe8] sm:$0xff]
        %v347 = vld [vmem:[%s265 + $0xf0] sm:$0xff]
        %v348 = vld [vmem:[%s265 + $0xf8] sm:$0xff]
        %v349 = vld [vmem:[%s265 + $0x100] sm:$0xff]
        %v350 = vld [vmem:[%s265 + $0x108] sm:$0xff]
        %v351 = vld [vmem:[%s265 + $0x110] sm:$0xff]
        %v352 = vld [vmem:[%s265 + $0x118] sm:$0xff]
        %v353 = vld [vmem:[%s265 + $0x120] sm:$0xff]
        %v354 = vld [vmem:[%s265 + $0x128] sm:$0xff]
        %v355 = vld [vmem:[%s265 + $0x130] sm:$0xff]
        %v356 = vld [vmem:[%s265 + $0x138] sm:$0xff]
        %v357 = vld [vmem:[%s265 + $0x140] sm:$0xff]
        %v358 = vld [vmem:[%s265 + $0x148] sm:$0xff]
        %v359 = vld [vmem:[%s265 + $0x150] sm:$0xff]
        %v360 = vld [vmem:[%s265 + $0x158] sm:$0xff]
        %v361 = vld [vmem:[%s265 + $0x160] sm:$0xff]
        %v362 = vld [vmem:[%s265 + $0x168] sm:$0xff]
        %v363 = vld [vmem:[%s265 + $0x170] sm:$0xff]
        %v364 = vld [vmem:[%s265 + $0x178] sm:$0xff]
        %v365 = vld [vmem:[%s265 + $0x180] sm:$0xff]
        %v366 = vld [vmem:[%s265 + $0x188] sm:$0xff]
        %v367 = vld [vmem:[%s265 + $0x190] sm:$0xff]
        %v368 = vld [vmem:[%s265 + $0x198] sm:$0xff]
        %v369 = vld [vmem:[%s265 + $0x1a0] sm:$0xff]
        %v370 = vld [vmem:[%s265 + $0x1a8] sm:$0xff]
        %v371 = vld [vmem:[%s265 + $0x1b0] sm:$0xff]
        %v372 = vld [vmem:[%s265 + $0x1b8] sm:$0xff]
        %v373 = vld [vmem:[%s265 + $0x1c0] sm:$0xff]
        %v374 = vld [vmem:[%s265 + $0x1c8] sm:$0xff]
        %v375 = vld [vmem:[%s265 + $0x1d0] sm:$0xff]
        %v376 = vld [vmem:[%s265 + $0x1d8] sm:$0xff]
        %v377 = vld [vmem:[%s265 + $0x1e0] sm:$0xff]
        %v378 = vld [vmem:[%s265 + $0x1e8] sm:$0xff]
        %v379 = vld [vmem:[%s265 + $0x1f0] sm:$0xff]
        %v380 = vld [vmem:[%s265 + $0x1f8] sm:$0xff]
        %v381 = vld [vmem:[%s265 + $0x200] sm:$0xff]
        %v382 = vld [vmem:[%s265 + $0x208] sm:$0xff]
        %v383 = vld [vmem:[%s265 + $0x210] sm:$0xff]
        %v384 = vld [vmem:[%s265 + $0x218] sm:$0xff]
        %v385 = vld [vmem:[%s265 + $0x220] sm:$0xff]
        %v386 = vld [vmem:[%s265 + $0x228] sm:$0xff]
        %v387 = vld [vmem:[%s265 + $0x230] sm:$0xff]
        %v388 = vld [vmem:[%s265 + $0x238] sm:$0xff]
        %v389 = vld [vmem:[%s265 + $0x240] sm:$0xff]
        %v390 = vld [vmem:[%s265 + $0x248] sm:$0xff]
        %v391 = vld [vmem:[%s265 + $0x250] sm:$0xff]
        %v392 = vld [vmem:[%s265 + $0x258] sm:$0xff]
        %v393 = vld [vmem:[%s265 + $0x260] sm:$0xff]
        %v394 = vld [vmem:[%s265 + $0x268] sm:$0xff]
        %v395 = vld [vmem:[%s265 + $0x270] sm:$0xff]
        %v396 = vld [vmem:[%s265 + $0x278] sm:$0xff]
        %v397 = vld [vmem:[%s265 + $0x280] sm:$0xff]
        %v398 = vld [vmem:[%s265 + $0x288] sm:$0xff]
        %v399 = vld [vmem:[%s265 + $0x290] sm:$0xff]
        %v400 = vld [vmem:[%s265 + $0x298] sm:$0xff]
        %v401 = vld [vmem:[%s265 + $0x2a0] sm:$0xff]
        %v402 = vld [vmem:[%s265 + $0x2a8] sm:$0xff]
        %v403 = vld [vmem:[%s265 + $0x2b0] sm:$0xff]
        %v404 = vld [vmem:[%s265 + $0x2b8] sm:$0xff]
        %v405 = vld [vmem:[%s265 + $0x2c0] sm:$0xff]
        %v406 = vld [vmem:[%s265 + $0x2c8] sm:$0xff]
        %v407 = vld [vmem:[%s265 + $0x2d0] sm:$0xff]
        %v408 = vld [vmem:[%s265 + $0x2d8] sm:$0xff]
        %v409 = vld [vmem:[%s265 + $0x2e0] sm:$0xff]
        %v410 = vld [vmem:[%s265 + $0x2e8] sm:$0xff]
        %v411 = vld [vmem:[%s265 + $0x2f0] sm:$0xff]
        %v412 = vld [vmem:[%s265 + $0x2f8] sm:$0xff]
        %v413 = vld [vmem:[%s265 + $0x300] sm:$0xff]
        %v414 = vld [vmem:[%s265 + $0x308] sm:$0xff]
        %v415 = vld [vmem:[%s265 + $0x310] sm:$0xff]
        %v416 = vld [vmem:[%s265 + $0x318] sm:$0xff]
        %v417 = vld [vmem:[%s265 + $0x320] sm:$0xff]
        %v418 = vld [vmem:[%s265 + $0x328] sm:$0xff]
        %v419 = vld [vmem:[%s265 + $0x330] sm:$0xff]
        %v420 = vld [vmem:[%s265 + $0x338] sm:$0xff]
        %v421 = vld [vmem:[%s265 + $0x340] sm:$0xff]
        %v422 = vld [vmem:[%s265 + $0x348] sm:$0xff]
        %v423 = vld [vmem:[%s265 + $0x350] sm:$0xff]
        %v424 = vld [vmem:[%s265 + $0x358] sm:$0xff]
        %v425 = vld [vmem:[%s265 + $0x360] sm:$0xff]
        %v426 = vld [vmem:[%s265 + $0x368] sm:$0xff]
        %v427 = vld [vmem:[%s265 + $0x370] sm:$0xff]
        %v428 = vld [vmem:[%s265 + $0x378] sm:$0xff]
        %v429 = vld [vmem:[%s265 + $0x380] sm:$0xff]
        %v430 = vld [vmem:[%s265 + $0x388] sm:$0xff]
        %v431 = vld [vmem:[%s265 + $0x390] sm:$0xff]
        %v432 = vld [vmem:[%s265 + $0x398] sm:$0xff]
        %v433 = vld [vmem:[%s265 + $0x3a0] sm:$0xff]
        %v434 = vld [vmem:[%s265 + $0x3a8] sm:$0xff]
        %v435 = vld [vmem:[%s265 + $0x3b0] sm:$0xff]
        %v436 = vld [vmem:[%s265 + $0x3b8] sm:$0xff]
        %v437 = vld [vmem:[%s265 + $0x3c0] sm:$0xff]
        %v438 = vld [vmem:[%s265 + $0x3c8] sm:$0xff]
        %v439 = vld [vmem:[%s265 + $0x3d0] sm:$0xff]
        %v440 = vld [vmem:[%s265 + $0x3d8] sm:$0xff]
        %v441 = vld [vmem:[%s265 + $0x3e0] sm:$0xff]
        %v442 = vld [vmem:[%s265 + $0x3e8] sm:$0xff]
        %v443 = vld [vmem:[%s265 + $0x3f0] sm:$0xff]
        %v444 = vld [vmem:[%s265 + $0x3f8] sm:$0xff]
        %445 = vst [vmem:[#allocation2] sm:$0xff] %v317
        %446 = vst [vmem:[#allocation2 + $0x8] sm:$0xff] %v318
        %447 = vst [vmem:[#allocation2 + $0x10] sm:$0xff] %v319
        %448 = vst [vmem:[#allocation2 + $0x18] sm:$0xff] %v320
        %449 = vst [vmem:[#allocation2 + $0x20] sm:$0xff] %v321
        %450 = vst [vmem:[#allocation2 + $0x28] sm:$0xff] %v322
        %451 = vst [vmem:[#allocation2 + $0x30] sm:$0xff] %v323
        %452 = vst [vmem:[#allocation2 + $0x38] sm:$0xff] %v324
        %453 = vst [vmem:[#allocation2 + $0x60] sm:$0xff] %v325
        %454 = vst [vmem:[#allocation2 + $0x68] sm:$0xff] %v326
        %455 = vst [vmem:[#allocation2 + $0x70] sm:$0xff] %v327
        %456 = vst [vmem:[#allocation2 + $0x78] sm:$0xff] %v328
        %457 = vst [vmem:[#allocation2 + $0x80] sm:$0xff] %v329
        %458 = vst [vmem:[#allocation2 + $0x88] sm:$0xff] %v330
        %459 = vst [vmem:[#allocation2 + $0x90] sm:$0xff] %v331
        %460 = vst [vmem:[#allocation2 + $0x98] sm:$0xff] %v332
        %461 = vst [vmem:[#allocation2 + $0xc0] sm:$0xff] %v333
        %462 = vst [vmem:[#allocation2 + $0xc8] sm:$0xff] %v334
        %463 = vst [vmem:[#allocation2 + $0xd0] sm:$0xff] %v335
        %464 = vst [vmem:[#allocation2 + $0xd8] sm:$0xff] %v336
        %465 = vst [vmem:[#allocation2 + $0xe0] sm:$0xff] %v337
        %466 = vst [vmem:[#allocation2 + $0xe8] sm:$0xff] %v338
        %467 = vst [vmem:[#allocation2 + $0xf0] sm:$0xff] %v339
        %468 = vst [vmem:[#allocation2 + $0xf8] sm:$0xff] %v340
        %469 = vst [vmem:[#allocation2 + $0x120] sm:$0xff] %v341
        %470 = vst [vmem:[#allocation2 + $0x128] sm:$0xff] %v342
        %471 = vst [vmem:[#allocation2 + $0x130] sm:$0xff] %v343
        %472 = vst [vmem:[#allocation2 + $0x138] sm:$0xff] %v344
        %473 = vst [vmem:[#allocation2 + $0x140] sm:$0xff] %v345
        %474 = vst [vmem:[#allocation2 + $0x148] sm:$0xff] %v346
        %475 = vst [vmem:[#allocation2 + $0x150] sm:$0xff] %v347
        %476 = vst [vmem:[#allocation2 + $0x158] sm:$0xff] %v348
        %477 = vst [vmem:[#allocation2 + $0x180] sm:$0xff] %v349
        %478 = vst [vmem:[#allocation2 + $0x188] sm:$0xff] %v350
        %479 = vst [vmem:[#allocation2 + $0x190] sm:$0xff] %v351
        %480 = vst [vmem:[#allocation2 + $0x198] sm:$0xff] %v352
        %481 = vst [vmem:[#allocation2 + $0x1a0] sm:$0xff] %v353
        %482 = vst [vmem:[#allocation2 + $0x1a8] sm:$0xff] %v354
        %483 = vst [vmem:[#allocation2 + $0x1b0] sm:$0xff] %v355
        %484 = vst [vmem:[#allocation2 + $0x1b8] sm:$0xff] %v356
        %485 = vst [vmem:[#allocation2 + $0x1e0] sm:$0xff] %v357
        %486 = vst [vmem:[#allocation2 + $0x1e8] sm:$0xff] %v358
        %487 = vst [vmem:[#allocation2 + $0x1f0] sm:$0xff] %v359
        %488 = vst [vmem:[#allocation2 + $0x1f8] sm:$0xff] %v360
        %489 = vst [vmem:[#allocation2 + $0x200] sm:$0xff] %v361
        %490 = vst [vmem:[#allocation2 + $0x208] sm:$0xff] %v362
        %491 = vst [vmem:[#allocation2 + $0x210] sm:$0xff] %v363
        %492 = vst [vmem:[#allocation2 + $0x218] sm:$0xff] %v364
        %493 = vst [vmem:[#allocation2 + $0x240] sm:$0xff] %v365
        %494 = vst [vmem:[#allocation2 + $0x248] sm:$0xff] %v366
        %495 = vst [vmem:[#allocation2 + $0x250] sm:$0xff] %v367
        %496 = vst [vmem:[#allocation2 + $0x258] sm:$0xff] %v368
        %497 = vst [vmem:[#allocation2 + $0x260] sm:$0xff] %v369
        %498 = vst [vmem:[#allocation2 + $0x268] sm:$0xff] %v370
        %499 = vst [vmem:[#allocation2 + $0x270] sm:$0xff] %v371
        %500 = vst [vmem:[#allocation2 + $0x278] sm:$0xff] %v372
        %501 = vst [vmem:[#allocation2 + $0x2a0] sm:$0xff] %v373
        %502 = vst [vmem:[#allocation2 + $0x2a8] sm:$0xff] %v374
        %503 = vst [vmem:[#allocation2 + $0x2b0] sm:$0xff] %v375
        %504 = vst [vmem:[#allocation2 + $0x2b8] sm:$0xff] %v376
        %505 = vst [vmem:[#allocation2 + $0x2c0] sm:$0xff] %v377
        %506 = vst [vmem:[#allocation2 + $0x2c8] sm:$0xff] %v378
        %507 = vst [vmem:[#allocation2 + $0x2d0] sm:$0xff] %v379
        %508 = vst [vmem:[#allocation2 + $0x2d8] sm:$0xff] %v380
        %509 = vst [vmem:[#allocation2 + $0x300] sm:$0xff] %v381
        %510 = vst [vmem:[#allocation2 + $0x308] sm:$0xff] %v382
        %511 = vst [vmem:[#allocation2 + $0x310] sm:$0xff] %v383
        %512 = vst [vmem:[#allocation2 + $0x318] sm:$0xff] %v384
        %513 = vst [vmem:[#allocation2 + $0x320] sm:$0xff] %v385
        %514 = vst [vmem:[#allocation2 + $0x328] sm:$0xff] %v386
        %515 = vst [vmem:[#allocation2 + $0x330] sm:$0xff] %v387
        %516 = vst [vmem:[#allocation2 + $0x338] sm:$0xff] %v388
        %517 = vst [vmem:[#allocation2 + $0x360] sm:$0xff] %v389
        %518 = vst [vmem:[#allocation2 + $0x368] sm:$0xff] %v390
        %519 = vst [vmem:[#allocation2 + $0x370] sm:$0xff] %v391
        %520 = vst [vmem:[#allocation2 + $0x378] sm:$0xff] %v392
        %521 = vst [vmem:[#allocation2 + $0x380] sm:$0xff] %v393
        %522 = vst [vmem:[#allocation2 + $0x388] sm:$0xff] %v394
        %523 = vst [vmem:[#allocation2 + $0x390] sm:$0xff] %v395
        %524 = vst [vmem:[#allocation2 + $0x398] sm:$0xff] %v396
        %525 = vst [vmem:[#allocation2 + $0x3c0] sm:$0xff] %v397
        %526 = vst [vmem:[#allocation2 + $0x3c8] sm:$0xff] %v398
        %527 = vst [vmem:[#allocation2 + $0x3d0] sm:$0xff] %v399
        %528 = vst [vmem:[#allocation2 + $0x3d8] sm:$0xff] %v400
        %529 = vst [vmem:[#allocation2 + $0x3e0] sm:$0xff] %v401
        %530 = vst [vmem:[#allocation2 + $0x3e8] sm:$0xff] %v402
        %531 = vst [vmem:[#allocation2 + $0x3f0] sm:$0xff] %v403
        %532 = vst [vmem:[#allocation2 + $0x3f8] sm:$0xff] %v404
        %533 = vst [vmem:[#allocation2 + $0x420] sm:$0xff] %v405
        %534 = vst [vmem:[#allocation2 + $0x428] sm:$0xff] %v406
        %535 = vst [vmem:[#allocation2 + $0x430] sm:$0xff] %v407
        %536 = vst [vmem:[#allocation2 + $0x438] sm:$0xff] %v408
        %537 = vst [vmem:[#allocation2 + $0x440] sm:$0xff] %v409
        %538 = vst [vmem:[#allocation2 + $0x448] sm:$0xff] %v410
        %539 = vst [vmem:[#allocation2 + $0x450] sm:$0xff] %v411
        %540 = vst [vmem:[#allocation2 + $0x458] sm:$0xff] %v412
        %541 = vst [vmem:[#allocation2 + $0x480] sm:$0xff] %v413
        %542 = vst [vmem:[#allocation2 + $0x488] sm:$0xff] %v414
        %543 = vst [vmem:[#allocation2 + $0x490] sm:$0xff] %v415
        %544 = vst [vmem:[#allocation2 + $0x498] sm:$0xff] %v416
        %545 = vst [vmem:[#allocation2 + $0x4a0] sm:$0xff] %v417
        %546 = vst [vmem:[#allocation2 + $0x4a8] sm:$0xff] %v418
        %547 = vst [vmem:[#allocation2 + $0x4b0] sm:$0xff] %v419
        %548 = vst [vmem:[#allocation2 + $0x4b8] sm:$0xff] %v420
        %549 = vst [vmem:[#allocation2 + $0x4e0] sm:$0xff] %v421
        %550 = vst [vmem:[#allocation2 + $0x4e8] sm:$0xff] %v422
        %551 = vst [vmem:[#allocation2 + $0x4f0] sm:$0xff] %v423
        %552 = vst [vmem:[#allocation2 + $0x4f8] sm:$0xff] %v424
        %553 = vst [vmem:[#allocation2 + $0x500] sm:$0xff] %v425
        %554 = vst [vmem:[#allocation2 + $0x508] sm:$0xff] %v426
        %555 = vst [vmem:[#allocation2 + $0x510] sm:$0xff] %v427
        %556 = vst [vmem:[#allocation2 + $0x518] sm:$0xff] %v428
        %557 = vst [vmem:[#allocation2 + $0x540] sm:$0xff] %v429
        %558 = vst [vmem:[#allocation2 + $0x548] sm:$0xff] %v430
        %559 = vst [vmem:[#allocation2 + $0x550] sm:$0xff] %v431
        %560 = vst [vmem:[#allocation2 + $0x558] sm:$0xff] %v432
        %561 = vst [vmem:[#allocation2 + $0x560] sm:$0xff] %v433
        %562 = vst [vmem:[#allocation2 + $0x568] sm:$0xff] %v434
        %563 = vst [vmem:[#allocation2 + $0x570] sm:$0xff] %v435
        %564 = vst [vmem:[#allocation2 + $0x578] sm:$0xff] %v436
        %565 = vst [vmem:[#allocation2 + $0x5a0] sm:$0xff] %v437
        %566 = vst [vmem:[#allocation2 + $0x5a8] sm:$0xff] %v438
        %567 = vst [vmem:[#allocation2 + $0x5b0] sm:$0xff] %v439
        %568 = vst [vmem:[#allocation2 + $0x5b8] sm:$0xff] %v440
        %569 = vst [vmem:[#allocation2 + $0x5c0] sm:$0xff] %v441
        %570 = vst [vmem:[#allocation2 + $0x5c8] sm:$0xff] %v442
        %571 = vst [vmem:[#allocation2 + $0x5d0] sm:$0xff] %v443
        %572 = vst [vmem:[#allocation2 + $0x5d8] sm:$0xff] %v444
        %p573 = scmp.eq.s32.totalorder %s29, 0
        %v574 = vld [vmem:[%s275] sm:$0xff]
        %v575 = vld [vmem:[%s275 + $0x8] sm:$0xff]
        %v576 = vld [vmem:[%s275 + $0x10] sm:$0xff]
        %v577 = vld [vmem:[%s275 + $0x18] sm:$0xff]
        %v578 = vld [vmem:[%s275 + $0x20] sm:$0xff]
        %v579 = vld [vmem:[%s275 + $0x28] sm:$0xff]
        %v580 = vld [vmem:[%s275 + $0x30] sm:$0xff]
        %v581 = vld [vmem:[%s275 + $0x38] sm:$0xff]
        %s582 = scalar_select %p573, 1, 0
        %v583 = vstv %s582
        %vm584 = vcmp.eq.s32.totalorder %v583, 1
        %v585 = vsel %vm584, 0.0, %v574
        %v586 = vsel %vm584, 0.0, %v575
        %v587 = vsel %vm584, 0.0, %v576
        %v588 = vsel %vm584, 0.0, %v577
        %v589 = vsel %vm584, 0.0, %v578
        %v590 = vsel %vm584, 0.0, %v579
        %v591 = vsel %vm584, 0.0, %v580
        %v592 = vsel %vm584, 0.0, %v581
        %s593 = scalar_lea.vmem [#allocation2], 1536
        %594 = vst [vmem:[%s593] sm:$0xff] %v585
        %595 = vst [vmem:[%s593 + $0x8] sm:$0xff] %v586
        %596 = vst [vmem:[%s593 + $0x10] sm:$0xff] %v587
        %597 = vst [vmem:[%s593 + $0x18] sm:$0xff] %v588
        %598 = vst [vmem:[%s593 + $0x20] sm:$0xff] %v589
        %599 = vst [vmem:[%s593 + $0x28] sm:$0xff] %v590
        %600 = vst [vmem:[%s593 + $0x30] sm:$0xff] %v591
        %601 = vst [vmem:[%s593 + $0x38] sm:$0xff] %v592
        %v602 = vlaneseq
        %vm603 = vcmp.ge.s32.totalorder %v602, 0
        %vm604 = vcmp.lt.s32.totalorder %v602, 512
        %vm605 = vmand %vm603, %vm604
        %s606 = scalar_lea.vmem [#allocation2], 64
        %607 = vst.msk [vmem:[%s606] ss:$8 sm:$0xf] %vm605, 0.0
        %608 = vst.msk [vmem:[%s606] ss:$8 sm:$0x0] %vm605, 0.0
        %s609 = scalar_lea.vmem [#allocation2], 160
        %610 = vst.msk [vmem:[%s609] ss:$8 sm:$0xf] %vm605, 0.0
        %611 = vst.msk [vmem:[%s609] ss:$8 sm:$0x0] %vm605, 0.0
        %s612 = scalar_lea.vmem [#allocation2], 256
        %613 = vst.msk [vmem:[%s612] ss:$8 sm:$0xf] %vm605, 0.0
        %614 = vst.msk [vmem:[%s612] ss:$8 sm:$0x0] %vm605, 0.0
        %s615 = scalar_lea.vmem [#allocation2], 352
        %616 = vst.msk [vmem:[%s615] ss:$8 sm:$0xf] %vm605, 0.0
        %617 = vst.msk [vmem:[%s615] ss:$8 sm:$0x0] %vm605, 0.0
        %s618 = scalar_lea.vmem [#allocation2], 448
        %619 = vst.msk [vmem:[%s618] ss:$8 sm:$0xf] %vm605, 0.0
        %620 = vst.msk [vmem:[%s618] ss:$8 sm:$0x0] %vm605, 0.0
        %s621 = scalar_lea.vmem [#allocation2], 544
        %622 = vst.msk [vmem:[%s621] ss:$8 sm:$0xf] %vm605, 0.0
        %623 = vst.msk [vmem:[%s621] ss:$8 sm:$0x0] %vm605, 0.0
        %s624 = scalar_lea.vmem [#allocation2], 640
        %625 = vst.msk [vmem:[%s624] ss:$8 sm:$0xf] %vm605, 0.0
        %626 = vst.msk [vmem:[%s624] ss:$8 sm:$0x0] %vm605, 0.0
        %s627 = scalar_lea.vmem [#allocation2], 736
        %628 = vst.msk [vmem:[%s627] ss:$8 sm:$0xf] %vm605, 0.0
        %629 = vst.msk [vmem:[%s627] ss:$8 sm:$0x0] %vm605, 0.0
        %s630 = scalar_lea.vmem [#allocation2], 832
        %631 = vst.msk [vmem:[%s630] ss:$8 sm:$0xf] %vm605, 0.0
        %632 = vst.msk [vmem:[%s630] ss:$8 sm:$0x0] %vm605, 0.0
        %s633 = scalar_lea.vmem [#allocation2], 928
        %634 = vst.msk [vmem:[%s633] ss:$8 sm:$0xf] %vm605, 0.0
        %635 = vst.msk [vmem:[%s633] ss:$8 sm:$0x0] %vm605, 0.0
        %s636 = scalar_lea.vmem [#allocation2], 1024
        %637 = vst.msk [vmem:[%s636] ss:$8 sm:$0xf] %vm605, 0.0
        %638 = vst.msk [vmem:[%s636] ss:$8 sm:$0x0] %vm605, 0.0
        %s639 = scalar_lea.vmem [#allocation2], 1120
        %640 = vst.msk [vmem:[%s639] ss:$8 sm:$0xf] %vm605, 0.0
        %641 = vst.msk [vmem:[%s639] ss:$8 sm:$0x0] %vm605, 0.0
        %s642 = scalar_lea.vmem [#allocation2], 1216
        %643 = vst.msk [vmem:[%s642] ss:$8 sm:$0xf] %vm605, 0.0
        %644 = vst.msk [vmem:[%s642] ss:$8 sm:$0x0] %vm605, 0.0
        %s645 = scalar_lea.vmem [#allocation2], 1312
        %646 = vst.msk [vmem:[%s645] ss:$8 sm:$0xf] %vm605, 0.0
        %647 = vst.msk [vmem:[%s645] ss:$8 sm:$0x0] %vm605, 0.0
        %s648 = scalar_lea.vmem [#allocation2], 1408
        %649 = vst.msk [vmem:[%s648] ss:$8 sm:$0xf] %vm605, 0.0
        %650 = vst.msk [vmem:[%s648] ss:$8 sm:$0x0] %vm605, 0.0
        %s651 = scalar_lea.vmem [#allocation2], 1504
        %652 = vst.msk [vmem:[%s651] ss:$8 sm:$0xf] %vm605, 0.0
        %653 = vst.msk [vmem:[%s651] ss:$8 sm:$0x0] %vm605, 0.0
        %s654 = scalar_lea.vmem [#allocation2], 1600
        %655 = vst.msk [vmem:[%s654] ss:$8 sm:$0xf] %vm605, 0.0
        %656 = vst.msk [vmem:[%s654] ss:$8 sm:$0x0] %vm605, 0.0
        %v657 = vld [vmem:[#allocation2] sm:$0xff]
        %v658 = vld [vmem:[#allocation2 + $0x8] sm:$0xff]
        %v659 = vld [vmem:[#allocation2 + $0x10] sm:$0xff]
        %v660 = vld [vmem:[#allocation2 + $0x18] sm:$0xff]
        %v661 = vld [vmem:[#allocation2 + $0x20] sm:$0xff]
        %v662 = vld [vmem:[#allocation2 + $0x28] sm:$0xff]
        %v663 = vld [vmem:[#allocation2 + $0x30] sm:$0xff]
        %v664 = vld [vmem:[#allocation2 + $0x38] sm:$0xff]
        %v665 = vld [vmem:[#allocation2 + $0x60] sm:$0xff]
        %v666 = vld [vmem:[#allocation2 + $0x68] sm:$0xff]
        %v667 = vld [vmem:[#allocation2 + $0x70] sm:$0xff]
        %v668 = vld [vmem:[#allocation2 + $0x78] sm:$0xff]
        %v669 = vld [vmem:[#allocation2 + $0x80] sm:$0xff]
        %v670 = vld [vmem:[#allocation2 + $0x88] sm:$0xff]
        %v671 = vld [vmem:[#allocation2 + $0x90] sm:$0xff]
        %v672 = vld [vmem:[#allocation2 + $0x98] sm:$0xff]
        %v673 = vld [vmem:[#allocation2 + $0xc0] sm:$0xff]
        %v674 = vld [vmem:[#allocation2 + $0xc8] sm:$0xff]
        %v675 = vld [vmem:[#allocation2 + $0xd0] sm:$0xff]
        %v676 = vld [vmem:[#allocation2 + $0xd8] sm:$0xff]
        %v677 = vld [vmem:[#allocation2 + $0xe0] sm:$0xff]
        %v678 = vld [vmem:[#allocation2 + $0xe8] sm:$0xff]
        %v679 = vld [vmem:[#allocation2 + $0xf0] sm:$0xff]
        %v680 = vld [vmem:[#allocation2 + $0xf8] sm:$0xff]
        %v681 = vld [vmem:[#allocation2 + $0x120] sm:$0xff]
        %v682 = vld [vmem:[#allocation2 + $0x128] sm:$0xff]
        %v683 = vld [vmem:[#allocation2 + $0x130] sm:$0xff]
        %v684 = vld [vmem:[#allocation2 + $0x138] sm:$0xff]
        %v685 = vld [vmem:[#allocation2 + $0x140] sm:$0xff]
        %v686 = vld [vmem:[#allocation2 + $0x148] sm:$0xff]
        %v687 = vld [vmem:[#allocation2 + $0x150] sm:$0xff]
        %v688 = vld [vmem:[#allocation2 + $0x158] sm:$0xff]
        %v689 = vld [vmem:[#allocation2 + $0x180] sm:$0xff]
        %v690 = vld [vmem:[#allocation2 + $0x188] sm:$0xff]
        %v691 = vld [vmem:[#allocation2 + $0x190] sm:$0xff]
        %v692 = vld [vmem:[#allocation2 + $0x198] sm:$0xff]
        %v693 = vld [vmem:[#allocation2 + $0x1a0] sm:$0xff]
        %v694 = vld [vmem:[#allocation2 + $0x1a8] sm:$0xff]
        %v695 = vld [vmem:[#allocation2 + $0x1b0] sm:$0xff]
        %v696 = vld [vmem:[#allocation2 + $0x1b8] sm:$0xff]
        %v697 = vld [vmem:[#allocation2 + $0x1e0] sm:$0xff]
        %v698 = vld [vmem:[#allocation2 + $0x1e8] sm:$0xff]
        %v699 = vld [vmem:[#allocation2 + $0x1f0] sm:$0xff]
        %v700 = vld [vmem:[#allocation2 + $0x1f8] sm:$0xff]
        %v701 = vld [vmem:[#allocation2 + $0x200] sm:$0xff]
        %v702 = vld [vmem:[#allocation2 + $0x208] sm:$0xff]
        %v703 = vld [vmem:[#allocation2 + $0x210] sm:$0xff]
        %v704 = vld [vmem:[#allocation2 + $0x218] sm:$0xff]
        %v705 = vld [vmem:[#allocation2 + $0x240] sm:$0xff]
        %v706 = vld [vmem:[#allocation2 + $0x248] sm:$0xff]
        %v707 = vld [vmem:[#allocation2 + $0x250] sm:$0xff]
        %v708 = vld [vmem:[#allocation2 + $0x258] sm:$0xff]
        %v709 = vld [vmem:[#allocation2 + $0x260] sm:$0xff]
        %v710 = vld [vmem:[#allocation2 + $0x268] sm:$0xff]
        %v711 = vld [vmem:[#allocation2 + $0x270] sm:$0xff]
        %v712 = vld [vmem:[#allocation2 + $0x278] sm:$0xff]
        %v713 = vld [vmem:[#allocation2 + $0x2a0] sm:$0xff]
        %v714 = vld [vmem:[#allocation2 + $0x2a8] sm:$0xff]
        %v715 = vld [vmem:[#allocation2 + $0x2b0] sm:$0xff]
        %v716 = vld [vmem:[#allocation2 + $0x2b8] sm:$0xff]
        %v717 = vld [vmem:[#allocation2 + $0x2c0] sm:$0xff]
        %v718 = vld [vmem:[#allocation2 + $0x2c8] sm:$0xff]
        %v719 = vld [vmem:[#allocation2 + $0x2d0] sm:$0xff]
        %v720 = vld [vmem:[#allocation2 + $0x2d8] sm:$0xff]
        %v721 = vld [vmem:[#allocation2 + $0x300] sm:$0xff]
        %v722 = vld [vmem:[#allocation2 + $0x308] sm:$0xff]
        %v723 = vld [vmem:[#allocation2 + $0x310] sm:$0xff]
        %v724 = vld [vmem:[#allocation2 + $0x318] sm:$0xff]
        %v725 = vld [vmem:[#allocation2 + $0x320] sm:$0xff]
        %v726 = vld [vmem:[#allocation2 + $0x328] sm:$0xff]
        %v727 = vld [vmem:[#allocation2 + $0x330] sm:$0xff]
        %v728 = vld [vmem:[#allocation2 + $0x338] sm:$0xff]
        %v729 = vld [vmem:[#allocation2 + $0x360] sm:$0xff]
        %v730 = vld [vmem:[#allocation2 + $0x368] sm:$0xff]
        %v731 = vld [vmem:[#allocation2 + $0x370] sm:$0xff]
        %v732 = vld [vmem:[#allocation2 + $0x378] sm:$0xff]
        %v733 = vld [vmem:[#allocation2 + $0x380] sm:$0xff]
        %v734 = vld [vmem:[#allocation2 + $0x388] sm:$0xff]
        %v735 = vld [vmem:[#allocation2 + $0x390] sm:$0xff]
        %v736 = vld [vmem:[#allocation2 + $0x398] sm:$0xff]
        %v737 = vld [vmem:[#allocation2 + $0x3c0] sm:$0xff]
        %v738 = vld [vmem:[#allocation2 + $0x3c8] sm:$0xff]
        %v739 = vld [vmem:[#allocation2 + $0x3d0] sm:$0xff]
        %v740 = vld [vmem:[#allocation2 + $0x3d8] sm:$0xff]
        %v741 = vld [vmem:[#allocation2 + $0x3e0] sm:$0xff]
        %v742 = vld [vmem:[#allocation2 + $0x3e8] sm:$0xff]
        %v743 = vld [vmem:[#allocation2 + $0x3f0] sm:$0xff]
        %v744 = vld [vmem:[#allocation2 + $0x3f8] sm:$0xff]
        %v745 = vld [vmem:[#allocation2 + $0x420] sm:$0xff]
        %v746 = vld [vmem:[#allocation2 + $0x428] sm:$0xff]
        %v747 = vld [vmem:[#allocation2 + $0x430] sm:$0xff]
        %v748 = vld [vmem:[#allocation2 + $0x438] sm:$0xff]
        %v749 = vld [vmem:[#allocation2 + $0x440] sm:$0xff]
        %v750 = vld [vmem:[#allocation2 + $0x448] sm:$0xff]
        %v751 = vld [vmem:[#allocation2 + $0x450] sm:$0xff]
        %v752 = vld [vmem:[#allocation2 + $0x458] sm:$0xff]
        %v753 = vld [vmem:[#allocation2 + $0x480] sm:$0xff]
        %v754 = vld [vmem:[#allocation2 + $0x488] sm:$0xff]
        %v755 = vld [vmem:[#allocation2 + $0x490] sm:$0xff]
        %v756 = vld [vmem:[#allocation2 + $0x498] sm:$0xff]
        %v757 = vld [vmem:[#allocation2 + $0x4a0] sm:$0xff]
        %v758 = vld [vmem:[#allocation2 + $0x4a8] sm:$0xff]
        %v759 = vld [vmem:[#allocation2 + $0x4b0] sm:$0xff]
        %v760 = vld [vmem:[#allocation2 + $0x4b8] sm:$0xff]
        %v761 = vld [vmem:[#allocation2 + $0x4e0] sm:$0xff]
        %v762 = vld [vmem:[#allocation2 + $0x4e8] sm:$0xff]
        %v763 = vld [vmem:[#allocation2 + $0x4f0] sm:$0xff]
        %v764 = vld [vmem:[#allocation2 + $0x4f8] sm:$0xff]
        %v765 = vld [vmem:[#allocation2 + $0x500] sm:$0xff]
        %v766 = vld [vmem:[#allocation2 + $0x508] sm:$0xff]
        %v767 = vld [vmem:[#allocation2 + $0x510] sm:$0xff]
        %v768 = vld [vmem:[#allocation2 + $0x518] sm:$0xff]
        %v769 = vld [vmem:[#allocation2 + $0x540] sm:$0xff]
        %v770 = vld [vmem:[#allocation2 + $0x548] sm:$0xff]
        %v771 = vld [vmem:[#allocation2 + $0x550] sm:$0xff]
        %v772 = vld [vmem:[#allocation2 + $0x558] sm:$0xff]
        %v773 = vld [vmem:[#allocation2 + $0x560] sm:$0xff]
        %v774 = vld [vmem:[#allocation2 + $0x568] sm:$0xff]
        %v775 = vld [vmem:[#allocation2 + $0x570] sm:$0xff]
        %v776 = vld [vmem:[#allocation2 + $0x578] sm:$0xff]
        %v777 = vld [vmem:[#allocation2 + $0x5a0] sm:$0xff]
        %v778 = vld [vmem:[#allocation2 + $0x5a8] sm:$0xff]
        %v779 = vld [vmem:[#allocation2 + $0x5b0] sm:$0xff]
        %v780 = vld [vmem:[#allocation2 + $0x5b8] sm:$0xff]
        %v781 = vld [vmem:[#allocation2 + $0x5c0] sm:$0xff]
        %v782 = vld [vmem:[#allocation2 + $0x5c8] sm:$0xff]
        %v783 = vld [vmem:[#allocation2 + $0x5d0] sm:$0xff]
        %v784 = vld [vmem:[#allocation2 + $0x5d8] sm:$0xff]
        %v785 = vld [vmem:[#allocation8] sm:$0xff]
        %v786 = vld [vmem:[#allocation8 + $0x8] sm:$0xff]
        %v787 = vld [vmem:[#allocation8 + $0x10] sm:$0xff]
        %v788 = vld [vmem:[#allocation8 + $0x18] sm:$0xff]
        %v789 = vld [vmem:[#allocation8 + $0x20] sm:$0xff]
        %v790 = vld [vmem:[#allocation8 + $0x28] sm:$0xff]
        %v791 = vld [vmem:[#allocation8 + $0x30] sm:$0xff]
        %v792 = vld [vmem:[#allocation8 + $0x38] sm:$0xff]
        %v793 = vld [vmem:[#allocation8 + $0x40] sm:$0xff]
        %v794 = vld [vmem:[#allocation8 + $0x48] sm:$0xff]
        %v795 = vld [vmem:[#allocation8 + $0x50] sm:$0xff]
        %v796 = vld [vmem:[#allocation8 + $0x58] sm:$0xff]
        %v797 = vld [vmem:[#allocation8 + $0x60] sm:$0xff]
        %v798 = vld [vmem:[#allocation8 + $0x68] sm:$0xff]
        %v799 = vld [vmem:[#allocation8 + $0x70] sm:$0xff]
        %v800 = vld [vmem:[#allocation8 + $0x78] sm:$0xff]
        %v801 = vld [vmem:[#allocation8 + $0x80] sm:$0xff]
        %v802 = vld [vmem:[#allocation8 + $0x88] sm:$0xff]
        %v803 = vld [vmem:[#allocation8 + $0x90] sm:$0xff]
        %v804 = vld [vmem:[#allocation8 + $0x98] sm:$0xff]
        %v805 = vld [vmem:[#allocation8 + $0xa0] sm:$0xff]
        %v806 = vld [vmem:[#allocation8 + $0xa8] sm:$0xff]
        %v807 = vld [vmem:[#allocation8 + $0xb0] sm:$0xff]
        %v808 = vld [vmem:[#allocation8 + $0xb8] sm:$0xff]
        %v809 = vld [vmem:[#allocation8 + $0xc0] sm:$0xff]
        %v810 = vld [vmem:[#allocation8 + $0xc8] sm:$0xff]
        %v811 = vld [vmem:[#allocation8 + $0xd0] sm:$0xff]
        %v812 = vld [vmem:[#allocation8 + $0xd8] sm:$0xff]
        %v813 = vld [vmem:[#allocation8 + $0xe0] sm:$0xff]
        %v814 = vld [vmem:[#allocation8 + $0xe8] sm:$0xff]
        %v815 = vld [vmem:[#allocation8 + $0xf0] sm:$0xff]
        %v816 = vld [vmem:[#allocation8 + $0xf8] sm:$0xff]
        %v817 = vld [vmem:[#allocation8 + $0x100] sm:$0xff]
        %v818 = vld [vmem:[#allocation8 + $0x108] sm:$0xff]
        %v819 = vld [vmem:[#allocation8 + $0x110] sm:$0xff]
        %v820 = vld [vmem:[#allocation8 + $0x118] sm:$0xff]
        %v821 = vld [vmem:[#allocation8 + $0x120] sm:$0xff]
        %v822 = vld [vmem:[#allocation8 + $0x128] sm:$0xff]
        %v823 = vld [vmem:[#allocation8 + $0x130] sm:$0xff]
        %v824 = vld [vmem:[#allocation8 + $0x138] sm:$0xff]
        %v825 = vld [vmem:[#allocation8 + $0x140] sm:$0xff]
        %v826 = vld [vmem:[#allocation8 + $0x148] sm:$0xff]
        %v827 = vld [vmem:[#allocation8 + $0x150] sm:$0xff]
        %v828 = vld [vmem:[#allocation8 + $0x158] sm:$0xff]
        %v829 = vld [vmem:[#allocation8 + $0x160] sm:$0xff]
        %v830 = vld [vmem:[#allocation8 + $0x168] sm:$0xff]
        %v831 = vld [vmem:[#allocation8 + $0x170] sm:$0xff]
        %v832 = vld [vmem:[#allocation8 + $0x178] sm:$0xff]
        %v833 = vld [vmem:[#allocation8 + $0x180] sm:$0xff]
        %v834 = vld [vmem:[#allocation8 + $0x188] sm:$0xff]
        %v835 = vld [vmem:[#allocation8 + $0x190] sm:$0xff]
        %v836 = vld [vmem:[#allocation8 + $0x198] sm:$0xff]
        %v837 = vld [vmem:[#allocation8 + $0x1a0] sm:$0xff]
        %v838 = vld [vmem:[#allocation8 + $0x1a8] sm:$0xff]
        %v839 = vld [vmem:[#allocation8 + $0x1b0] sm:$0xff]
        %v840 = vld [vmem:[#allocation8 + $0x1b8] sm:$0xff]
        %v841 = vld [vmem:[#allocation8 + $0x1c0] sm:$0xff]
        %v842 = vld [vmem:[#allocation8 + $0x1c8] sm:$0xff]
        %v843 = vld [vmem:[#allocation8 + $0x1d0] sm:$0xff]
        %v844 = vld [vmem:[#allocation8 + $0x1d8] sm:$0xff]
        %v845 = vld [vmem:[#allocation8 + $0x1e0] sm:$0xff]
        %v846 = vld [vmem:[#allocation8 + $0x1e8] sm:$0xff]
        %v847 = vld [vmem:[#allocation8 + $0x1f0] sm:$0xff]
        %v848 = vld [vmem:[#allocation8 + $0x1f8] sm:$0xff]
        %s849 = scalar_lea.vmem [#allocation2], 96
        %v850 = vld [vmem:[%s849] sm:$0xff]
        %v851 = vld [vmem:[%s849 + $0x8] sm:$0xff]
        %v852 = vld [vmem:[%s849 + $0x20] sm:$0xff]
        %v853 = vld [vmem:[%s849 + $0x28] sm:$0xff]
        %v854 = vld [vmem:[%s849 + $0x60] sm:$0xff]
        %v855 = vld [vmem:[%s849 + $0x68] sm:$0xff]
        %v856 = vld [vmem:[%s849 + $0x80] sm:$0xff]
        %v857 = vld [vmem:[%s849 + $0x88] sm:$0xff]
        %v858 = vld [vmem:[%s849 + $0xc0] sm:$0xff]
        %v859 = vld [vmem:[%s849 + $0xc8] sm:$0xff]
        %v860 = vld [vmem:[%s849 + $0xe0] sm:$0xff]
        %v861 = vld [vmem:[%s849 + $0xe8] sm:$0xff]
        %v862 = vld [vmem:[%s849 + $0x120] sm:$0xff]
        %v863 = vld [vmem:[%s849 + $0x128] sm:$0xff]
        %v864 = vld [vmem:[%s849 + $0x140] sm:$0xff]
        %v865 = vld [vmem:[%s849 + $0x148] sm:$0xff]
        %v866 = vld [vmem:[%s849 + $0x180] sm:$0xff]
        %v867 = vld [vmem:[%s849 + $0x188] sm:$0xff]
        %v868 = vld [vmem:[%s849 + $0x1a0] sm:$0xff]
        %v869 = vld [vmem:[%s849 + $0x1a8] sm:$0xff]
        %v870 = vld [vmem:[%s849 + $0x1e0] sm:$0xff]
        %v871 = vld [vmem:[%s849 + $0x1e8] sm:$0xff]
        %v872 = vld [vmem:[%s849 + $0x200] sm:$0xff]
        %v873 = vld [vmem:[%s849 + $0x208] sm:$0xff]
        %v874 = vld [vmem:[%s849 + $0x240] sm:$0xff]
        %v875 = vld [vmem:[%s849 + $0x248] sm:$0xff]
        %v876 = vld [vmem:[%s849 + $0x260] sm:$0xff]
        %v877 = vld [vmem:[%s849 + $0x268] sm:$0xff]
        %v878 = vld [vmem:[%s849 + $0x2a0] sm:$0xff]
        %v879 = vld [vmem:[%s849 + $0x2a8] sm:$0xff]
        %v880 = vld [vmem:[%s849 + $0x2c0] sm:$0xff]
        %v881 = vld [vmem:[%s849 + $0x2c8] sm:$0xff]
        %v882 = vld [vmem:[%s849 + $0x300] sm:$0xff]
        %v883 = vld [vmem:[%s849 + $0x308] sm:$0xff]
        %v884 = vld [vmem:[%s849 + $0x320] sm:$0xff]
        %v885 = vld [vmem:[%s849 + $0x328] sm:$0xff]
        %v886 = vld [vmem:[%s849 + $0x360] sm:$0xff]
        %v887 = vld [vmem:[%s849 + $0x368] sm:$0xff]
        %v888 = vld [vmem:[%s849 + $0x380] sm:$0xff]
        %v889 = vld [vmem:[%s849 + $0x388] sm:$0xff]
        %v890 = vld [vmem:[%s849 + $0x3c0] sm:$0xff]
        %v891 = vld [vmem:[%s849 + $0x3c8] sm:$0xff]
        %v892 = vld [vmem:[%s849 + $0x3e0] sm:$0xff]
        %v893 = vld [vmem:[%s849 + $0x3e8] sm:$0xff]
        %v894 = vld [vmem:[%s849 + $0x420] sm:$0xff]
        %v895 = vld [vmem:[%s849 + $0x428] sm:$0xff]
        %v896 = vld [vmem:[%s849 + $0x440] sm:$0xff]
        %v897 = vld [vmem:[%s849 + $0x448] sm:$0xff]
        %v898 = vld [vmem:[%s849 + $0x480] sm:$0xff]
        %v899 = vld [vmem:[%s849 + $0x488] sm:$0xff]
        %v900 = vld [vmem:[%s849 + $0x4a0] sm:$0xff]
        %v901 = vld [vmem:[%s849 + $0x4a8] sm:$0xff]
        %v902 = vld [vmem:[%s849 + $0x4e0] sm:$0xff]
        %v903 = vld [vmem:[%s849 + $0x4e8] sm:$0xff]
        %v904 = vld [vmem:[%s849 + $0x500] sm:$0xff]
        %v905 = vld [vmem:[%s849 + $0x508] sm:$0xff]
        %v906 = vld [vmem:[%s849 + $0x540] sm:$0xff]
        %v907 = vld [vmem:[%s849 + $0x548] sm:$0xff]
        %v908 = vld [vmem:[%s849 + $0x560] sm:$0xff]
        %v909 = vld [vmem:[%s849 + $0x568] sm:$0xff]
        %v910 = vld [vmem:[%s849 + $0x5a0] sm:$0xff]
        %v911 = vld [vmem:[%s849 + $0x5a8] sm:$0xff]
        %v912 = vld [vmem:[%s849 + $0x5c0] sm:$0xff]
        %v913 = vld [vmem:[%s849 + $0x5c8] sm:$0xff]
        %v914 = vld [vmem:[#allocation8 + $0x200] sm:$0xff]
        %v915 = vld [vmem:[#allocation8 + $0x208] sm:$0xff]
        %v916 = vld [vmem:[#allocation8 + $0x210] sm:$0xff]
        %v917 = vld [vmem:[#allocation8 + $0x218] sm:$0xff]
        %v918 = vld [vmem:[#allocation8 + $0x220] sm:$0xff]
        %v919 = vld [vmem:[#allocation8 + $0x228] sm:$0xff]
        %v920 = vld [vmem:[#allocation8 + $0x230] sm:$0xff]
        %v921 = vld [vmem:[#allocation8 + $0x238] sm:$0xff]
        %v922 = vld [vmem:[#allocation8 + $0x240] sm:$0xff]
        %v923 = vld [vmem:[#allocation8 + $0x248] sm:$0xff]
        %v924 = vld [vmem:[#allocation8 + $0x250] sm:$0xff]
        %v925 = vld [vmem:[#allocation8 + $0x258] sm:$0xff]
        %v926 = vld [vmem:[#allocation8 + $0x260] sm:$0xff]
        %v927 = vld [vmem:[#allocation8 + $0x268] sm:$0xff]
        %v928 = vld [vmem:[#allocation8 + $0x270] sm:$0xff]
        %v929 = vld [vmem:[#allocation8 + $0x278] sm:$0xff]
        %v930 = vld [vmem:[#allocation8 + $0x280] sm:$0xff]
        %v931 = vld [vmem:[#allocation8 + $0x288] sm:$0xff]
        %v932 = vld [vmem:[#allocation8 + $0x290] sm:$0xff]
        %v933 = vld [vmem:[#allocation8 + $0x298] sm:$0xff]
        %v934 = vld [vmem:[#allocation8 + $0x2a0] sm:$0xff]
        %v935 = vld [vmem:[#allocation8 + $0x2a8] sm:$0xff]
        %v936 = vld [vmem:[#allocation8 + $0x2b0] sm:$0xff]
        %v937 = vld [vmem:[#allocation8 + $0x2b8] sm:$0xff]
        %v938 = vld [vmem:[#allocation8 + $0x2c0] sm:$0xff]
        %v939 = vld [vmem:[#allocation8 + $0x2c8] sm:$0xff]
        %v940 = vld [vmem:[#allocation8 + $0x2d0] sm:$0xff]
        %v941 = vld [vmem:[#allocation8 + $0x2d8] sm:$0xff]
        %v942 = vld [vmem:[#allocation8 + $0x2e0] sm:$0xff]
        %v943 = vld [vmem:[#allocation8 + $0x2e8] sm:$0xff]
        %v944 = vld [vmem:[#allocation8 + $0x2f0] sm:$0xff]
        %v945 = vld [vmem:[#allocation8 + $0x2f8] sm:$0xff]
        %946 = vmatpush.msra.mxu0 %v929
        %947 = vmatpush.msra.mxu0 %v928
        %948 = vmatpush.msra.mxu0 %v927
        %949 = vmatpush.msra.mxu0 %v926
        %950 = vmatpush.msra.mxu0 %v925
        %951 = vmatpush.msra.mxu0 %v924
        %952 = vmatpush.msra.mxu0 %v923
        %953 = vmatpush.msra.mxu0 %v922
        %954 = vmatpush.msra.mxu0 %v921
        %955 = vmatpush.msra.mxu0 %v920
        %956 = vmatpush.msra.mxu0 %v919
        %957 = vmatpush.msra.mxu0 %v918
        %958 = vmatpush.msra.mxu0 %v917
        %959 = vmatpush.msra.mxu0 %v916
        %960 = vmatpush.msra.mxu0 %v915
        %961 = vmatpush.msra.mxu0 %v914
        %962 = vmatmul.f32.gmra.mxu0 %v850
        %v963 = vpop.f32.mrf.mxu0
        %v964 = vadd.f32 0.0, %v963
        %965 = vmatmul.f32.gmra.mxu0 %v852
        %v966 = vpop.f32.mrf.mxu0
        %v967 = vadd.f32 0.0, %v966
        %968 = vmatmul.f32.gmra.mxu0 %v854
        %v969 = vpop.f32.mrf.mxu0
        %v970 = vadd.f32 0.0, %v969
        %971 = vmatmul.f32.gmra.mxu0 %v856
        %v972 = vpop.f32.mrf.mxu0
        %v973 = vadd.f32 0.0, %v972
        %974 = vmatmul.f32.gmra.mxu0 %v858
        %v975 = vpop.f32.mrf.mxu0
        %v976 = vadd.f32 0.0, %v975
        %977 = vmatmul.f32.gmra.mxu0 %v860
        %v978 = vpop.f32.mrf.mxu0
        %v979 = vadd.f32 0.0, %v978
        %980 = vmatmul.f32.gmra.mxu0 %v862
        %v981 = vpop.f32.mrf.mxu0
        %v982 = vadd.f32 0.0, %v981
        %983 = vmatmul.f32.gmra.mxu0 %v864
        %v984 = vpop.f32.mrf.mxu0
        %v985 = vadd.f32 0.0, %v984
        %986 = vmatmul.f32.gmra.mxu0 %v866
        %v987 = vpop.f32.mrf.mxu0
        %v988 = vadd.f32 0.0, %v987
        %989 = vmatmul.f32.gmra.mxu0 %v868
        %v990 = vpop.f32.mrf.mxu0
        %v991 = vadd.f32 0.0, %v990
        %992 = vmatmul.f32.gmra.mxu0 %v870
        %v993 = vpop.f32.mrf.mxu0
        %v994 = vadd.f32 0.0, %v993
        %995 = vmatmul.f32.gmra.mxu0 %v872
        %v996 = vpop.f32.mrf.mxu0
        %v997 = vadd.f32 0.0, %v996
        %998 = vmatmul.f32.gmra.mxu0 %v874
        %v999 = vpop.f32.mrf.mxu0
        %v1000 = vadd.f32 0.0, %v999
        %1001 = vmatmul.f32.gmra.mxu0 %v876
        %v1002 = vpop.f32.mrf.mxu0
        %v1003 = vadd.f32 0.0, %v1002
        %1004 = vmatmul.f32.gmra.mxu0 %v878
        %v1005 = vpop.f32.mrf.mxu0
        %v1006 = vadd.f32 0.0, %v1005
        %1007 = vmatmul.f32.gmra.mxu0 %v880
        %v1008 = vpop.f32.mrf.mxu0
        %v1009 = vadd.f32 0.0, %v1008
        %1010 = vmatmul.f32.gmra.mxu0 %v882
        %v1011 = vpop.f32.mrf.mxu0
        %v1012 = vadd.f32 0.0, %v1011
        %1013 = vmatmul.f32.gmra.mxu0 %v884
        %v1014 = vpop.f32.mrf.mxu0
        %v1015 = vadd.f32 0.0, %v1014
        %1016 = vmatmul.f32.gmra.mxu0 %v886
        %v1017 = vpop.f32.mrf.mxu0
        %v1018 = vadd.f32 0.0, %v1017
        %1019 = vmatmul.f32.gmra.mxu0 %v888
        %v1020 = vpop.f32.mrf.mxu0
        %v1021 = vadd.f32 0.0, %v1020
        %1022 = vmatmul.f32.gmra.mxu0 %v890
        %v1023 = vpop.f32.mrf.mxu0
        %v1024 = vadd.f32 0.0, %v1023
        %1025 = vmatmul.f32.gmra.mxu0 %v892
        %v1026 = vpop.f32.mrf.mxu0
        %v1027 = vadd.f32 0.0, %v1026
        %1028 = vmatmul.f32.gmra.mxu0 %v894
        %v1029 = vpop.f32.mrf.mxu0
        %v1030 = vadd.f32 0.0, %v1029
        %1031 = vmatmul.f32.gmra.mxu0 %v896
        %v1032 = vpop.f32.mrf.mxu0
        %v1033 = vadd.f32 0.0, %v1032
        %1034 = vmatmul.f32.gmra.mxu0 %v898
        %v1035 = vpop.f32.mrf.mxu0
        %v1036 = vadd.f32 0.0, %v1035
        %1037 = vmatmul.f32.gmra.mxu0 %v900
        %v1038 = vpop.f32.mrf.mxu0
        %v1039 = vadd.f32 0.0, %v1038
        %1040 = vmatmul.f32.gmra.mxu0 %v902
        %v1041 = vpop.f32.mrf.mxu0
        %v1042 = vadd.f32 0.0, %v1041
        %1043 = vmatmul.f32.gmra.mxu0 %v904
        %v1044 = vpop.f32.mrf.mxu0
        %v1045 = vadd.f32 0.0, %v1044
        %1046 = vmatmul.f32.gmra.mxu0 %v906
        %v1047 = vpop.f32.mrf.mxu0
        %v1048 = vadd.f32 0.0, %v1047
        %1049 = vmatmul.f32.gmra.mxu0 %v908
        %v1050 = vpop.f32.mrf.mxu0
        %v1051 = vadd.f32 0.0, %v1050
        %1052 = vmatmul.f32.gmra.mxu0 %v910
        %v1053 = vpop.f32.mrf.mxu0
        %v1054 = vadd.f32 0.0, %v1053
        %1055 = vmatmul.f32.gmra.mxu0 %v912
        %v1056 = vpop.f32.mrf.mxu0
        %v1057 = vadd.f32 0.0, %v1056
        %1058 = vdwg.mxu0
        %1059 = vmatpush.msra.mxu0 %v945
        %1060 = vmatpush.msra.mxu0 %v944
        %1061 = vmatpush.msra.mxu0 %v943
        %1062 = vmatpush.msra.mxu0 %v942
        %1063 = vmatpush.msra.mxu0 %v941
        %1064 = vmatpush.msra.mxu0 %v940
        %1065 = vmatpush.msra.mxu0 %v939
        %1066 = vmatpush.msra.mxu0 %v938
        %1067 = vmatpush.msra.mxu0 %v937
        %1068 = vmatpush.msra.mxu0 %v936
        %1069 = vmatpush.msra.mxu0 %v935
        %1070 = vmatpush.msra.mxu0 %v934
        %1071 = vmatpush.msra.mxu0 %v933
        %1072 = vmatpush.msra.mxu0 %v932
        %1073 = vmatpush.msra.mxu0 %v931
        %1074 = vmatpush.msra.mxu0 %v930
        %1075 = vmatmul.f32.gmra.mxu0 %v851
        %v1076 = vpop.f32.mrf.mxu0
        %v1077 = vadd.f32 %v964, %v1076
        %1078 = vmatmul.f32.gmra.mxu0 %v853
        %v1079 = vpop.f32.mrf.mxu0
        %v1080 = vadd.f32 %v967, %v1079
        %1081 = vmatmul.f32.gmra.mxu0 %v855
        %v1082 = vpop.f32.mrf.mxu0
        %v1083 = vadd.f32 %v970, %v1082
        %1084 = vmatmul.f32.gmra.mxu0 %v857
        %v1085 = vpop.f32.mrf.mxu0
        %v1086 = vadd.f32 %v973, %v1085
        %1087 = vmatmul.f32.gmra.mxu0 %v859
        %v1088 = vpop.f32.mrf.mxu0
        %v1089 = vadd.f32 %v976, %v1088
        %1090 = vmatmul.f32.gmra.mxu0 %v861
        %v1091 = vpop.f32.mrf.mxu0
        %v1092 = vadd.f32 %v979, %v1091
        %1093 = vmatmul.f32.gmra.mxu0 %v863
        %v1094 = vpop.f32.mrf.mxu0
        %v1095 = vadd.f32 %v982, %v1094
        %1096 = vmatmul.f32.gmra.mxu0 %v865
        %v1097 = vpop.f32.mrf.mxu0
        %v1098 = vadd.f32 %v985, %v1097
        %1099 = vmatmul.f32.gmra.mxu0 %v867
        %v1100 = vpop.f32.mrf.mxu0
        %v1101 = vadd.f32 %v988, %v1100
        %1102 = vmatmul.f32.gmra.mxu0 %v869
        %v1103 = vpop.f32.mrf.mxu0
        %v1104 = vadd.f32 %v991, %v1103
        %1105 = vmatmul.f32.gmra.mxu0 %v871
        %v1106 = vpop.f32.mrf.mxu0
        %v1107 = vadd.f32 %v994, %v1106
        %1108 = vmatmul.f32.gmra.mxu0 %v873
        %v1109 = vpop.f32.mrf.mxu0
        %v1110 = vadd.f32 %v997, %v1109
        %1111 = vmatmul.f32.gmra.mxu0 %v875
        %v1112 = vpop.f32.mrf.mxu0
        %v1113 = vadd.f32 %v1000, %v1112
        %1114 = vmatmul.f32.gmra.mxu0 %v877
        %v1115 = vpop.f32.mrf.mxu0
        %v1116 = vadd.f32 %v1003, %v1115
        %1117 = vmatmul.f32.gmra.mxu0 %v879
        %v1118 = vpop.f32.mrf.mxu0
        %v1119 = vadd.f32 %v1006, %v1118
        %1120 = vmatmul.f32.gmra.mxu0 %v881
        %v1121 = vpop.f32.mrf.mxu0
        %v1122 = vadd.f32 %v1009, %v1121
        %1123 = vmatmul.f32.gmra.mxu0 %v883
        %v1124 = vpop.f32.mrf.mxu0
        %v1125 = vadd.f32 %v1012, %v1124
        %1126 = vmatmul.f32.gmra.mxu0 %v885
        %v1127 = vpop.f32.mrf.mxu0
        %v1128 = vadd.f32 %v1015, %v1127
        %1129 = vmatmul.f32.gmra.mxu0 %v887
        %v1130 = vpop.f32.mrf.mxu0
        %v1131 = vadd.f32 %v1018, %v1130
        %1132 = vmatmul.f32.gmra.mxu0 %v889
        %v1133 = vpop.f32.mrf.mxu0
        %v1134 = vadd.f32 %v1021, %v1133
        %1135 = vmatmul.f32.gmra.mxu0 %v891
        %v1136 = vpop.f32.mrf.mxu0
        %v1137 = vadd.f32 %v1024, %v1136
        %1138 = vmatmul.f32.gmra.mxu0 %v893
        %v1139 = vpop.f32.mrf.mxu0
        %v1140 = vadd.f32 %v1027, %v1139
        %1141 = vmatmul.f32.gmra.mxu0 %v895
        %v1142 = vpop.f32.mrf.mxu0
        %v1143 = vadd.f32 %v1030, %v1142
        %1144 = vmatmul.f32.gmra.mxu0 %v897
        %v1145 = vpop.f32.mrf.mxu0
        %v1146 = vadd.f32 %v1033, %v1145
        %1147 = vmatmul.f32.gmra.mxu0 %v899
        %v1148 = vpop.f32.mrf.mxu0
        %v1149 = vadd.f32 %v1036, %v1148
        %1150 = vmatmul.f32.gmra.mxu0 %v901
        %v1151 = vpop.f32.mrf.mxu0
        %v1152 = vadd.f32 %v1039, %v1151
        %1153 = vmatmul.f32.gmra.mxu0 %v903
        %v1154 = vpop.f32.mrf.mxu0
        %v1155 = vadd.f32 %v1042, %v1154
        %1156 = vmatmul.f32.gmra.mxu0 %v905
        %v1157 = vpop.f32.mrf.mxu0
        %v1158 = vadd.f32 %v1045, %v1157
        %1159 = vmatmul.f32.gmra.mxu0 %v907
        %v1160 = vpop.f32.mrf.mxu0
        %v1161 = vadd.f32 %v1048, %v1160
        %1162 = vmatmul.f32.gmra.mxu0 %v909
        %v1163 = vpop.f32.mrf.mxu0
        %v1164 = vadd.f32 %v1051, %v1163
        %1165 = vmatmul.f32.gmra.mxu0 %v911
        %v1166 = vpop.f32.mrf.mxu0
        %v1167 = vadd.f32 %v1054, %v1166
        %1168 = vmatmul.f32.gmra.mxu0 %v913
        %v1169 = vpop.f32.mrf.mxu0
        %v1170 = vadd.f32 %v1057, %v1169
        %1171 = vdwg.mxu0
        %1172 = vmatpush.msra.mxu0 %v800
        %1173 = vmatpush.msra.mxu0 %v799
        %1174 = vmatpush.msra.mxu0 %v798
        %1175 = vmatpush.msra.mxu0 %v797
        %1176 = vmatpush.msra.mxu0 %v796
        %1177 = vmatpush.msra.mxu0 %v795
        %1178 = vmatpush.msra.mxu0 %v794
        %1179 = vmatpush.msra.mxu0 %v793
        %1180 = vmatpush.msra.mxu0 %v792
        %1181 = vmatpush.msra.mxu0 %v791
        %1182 = vmatpush.msra.mxu0 %v790
        %1183 = vmatpush.msra.mxu0 %v789
        %1184 = vmatpush.msra.mxu0 %v788
        %1185 = vmatpush.msra.mxu0 %v787
        %1186 = vmatpush.msra.mxu0 %v786
        %1187 = vmatpush.msra.mxu0 %v785
        %1188 = vmatmul.f32.gmra.mxu0 %v657
        %v1189 = vpop.f32.mrf.mxu0
        %v1190 = vadd.f32 %v1077, %v1189
        %1191 = vmatmul.f32.gmra.mxu0 %v661
        %v1192 = vpop.f32.mrf.mxu0
        %v1193 = vadd.f32 %v1080, %v1192
        %1194 = vmatmul.f32.gmra.mxu0 %v665
        %v1195 = vpop.f32.mrf.mxu0
        %v1196 = vadd.f32 %v1083, %v1195
        %1197 = vmatmul.f32.gmra.mxu0 %v669
        %v1198 = vpop.f32.mrf.mxu0
        %v1199 = vadd.f32 %v1086, %v1198
        %1200 = vmatmul.f32.gmra.mxu0 %v673
        %v1201 = vpop.f32.mrf.mxu0
        %v1202 = vadd.f32 %v1089, %v1201
        %1203 = vmatmul.f32.gmra.mxu0 %v677
        %v1204 = vpop.f32.mrf.mxu0
        %v1205 = vadd.f32 %v1092, %v1204
        %1206 = vmatmul.f32.gmra.mxu0 %v681
        %v1207 = vpop.f32.mrf.mxu0
        %v1208 = vadd.f32 %v1095, %v1207
        %1209 = vmatmul.f32.gmra.mxu0 %v685
        %v1210 = vpop.f32.mrf.mxu0
        %v1211 = vadd.f32 %v1098, %v1210
        %1212 = vmatmul.f32.gmra.mxu0 %v689
        %v1213 = vpop.f32.mrf.mxu0
        %v1214 = vadd.f32 %v1101, %v1213
        %1215 = vmatmul.f32.gmra.mxu0 %v693
        %v1216 = vpop.f32.mrf.mxu0
        %v1217 = vadd.f32 %v1104, %v1216
        %1218 = vmatmul.f32.gmra.mxu0 %v697
        %v1219 = vpop.f32.mrf.mxu0
        %v1220 = vadd.f32 %v1107, %v1219
        %1221 = vmatmul.f32.gmra.mxu0 %v701
        %v1222 = vpop.f32.mrf.mxu0
        %v1223 = vadd.f32 %v1110, %v1222
        %1224 = vmatmul.f32.gmra.mxu0 %v705
        %v1225 = vpop.f32.mrf.mxu0
        %v1226 = vadd.f32 %v1113, %v1225
        %1227 = vmatmul.f32.gmra.mxu0 %v709
        %v1228 = vpop.f32.mrf.mxu0
        %v1229 = vadd.f32 %v1116, %v1228
        %1230 = vmatmul.f32.gmra.mxu0 %v713
        %v1231 = vpop.f32.mrf.mxu0
        %v1232 = vadd.f32 %v1119, %v1231
        %1233 = vmatmul.f32.gmra.mxu0 %v717
        %v1234 = vpop.f32.mrf.mxu0
        %v1235 = vadd.f32 %v1122, %v1234
        %1236 = vmatmul.f32.gmra.mxu0 %v721
        %v1237 = vpop.f32.mrf.mxu0
        %v1238 = vadd.f32 %v1125, %v1237
        %1239 = vmatmul.f32.gmra.mxu0 %v725
        %v1240 = vpop.f32.mrf.mxu0
        %v1241 = vadd.f32 %v1128, %v1240
        %1242 = vmatmul.f32.gmra.mxu0 %v729
        %v1243 = vpop.f32.mrf.mxu0
        %v1244 = vadd.f32 %v1131, %v1243
        %1245 = vmatmul.f32.gmra.mxu0 %v733
        %v1246 = vpop.f32.mrf.mxu0
        %v1247 = vadd.f32 %v1134, %v1246
        %1248 = vmatmul.f32.gmra.mxu0 %v737
        %v1249 = vpop.f32.mrf.mxu0
        %v1250 = vadd.f32 %v1137, %v1249
        %1251 = vmatmul.f32.gmra.mxu0 %v741
        %v1252 = vpop.f32.mrf.mxu0
        %v1253 = vadd.f32 %v1140, %v1252
        %1254 = vmatmul.f32.gmra.mxu0 %v745
        %v1255 = vpop.f32.mrf.mxu0
        %v1256 = vadd.f32 %v1143, %v1255
        %1257 = vmatmul.f32.gmra.mxu0 %v749
        %v1258 = vpop.f32.mrf.mxu0
        %v1259 = vadd.f32 %v1146, %v1258
        %1260 = vmatmul.f32.gmra.mxu0 %v753
        %v1261 = vpop.f32.mrf.mxu0
        %v1262 = vadd.f32 %v1149, %v1261
        %1263 = vmatmul.f32.gmra.mxu0 %v757
        %v1264 = vpop.f32.mrf.mxu0
        %v1265 = vadd.f32 %v1152, %v1264
        %1266 = vmatmul.f32.gmra.mxu0 %v761
        %v1267 = vpop.f32.mrf.mxu0
        %v1268 = vadd.f32 %v1155, %v1267
        %1269 = vmatmul.f32.gmra.mxu0 %v765
        %v1270 = vpop.f32.mrf.mxu0
        %v1271 = vadd.f32 %v1158, %v1270
        %1272 = vmatmul.f32.gmra.mxu0 %v769
        %v1273 = vpop.f32.mrf.mxu0
        %v1274 = vadd.f32 %v1161, %v1273
        %1275 = vmatmul.f32.gmra.mxu0 %v773
        %v1276 = vpop.f32.mrf.mxu0
        %v1277 = vadd.f32 %v1164, %v1276
        %1278 = vmatmul.f32.gmra.mxu0 %v777
        %v1279 = vpop.f32.mrf.mxu0
        %v1280 = vadd.f32 %v1167, %v1279
        %1281 = vmatmul.f32.gmra.mxu0 %v781
        %v1282 = vpop.f32.mrf.mxu0
        %v1283 = vadd.f32 %v1170, %v1282
        %1284 = vdwg.mxu0
        %1285 = vmatpush.msra.mxu0 %v816
        %1286 = vmatpush.msra.mxu0 %v815
        %1287 = vmatpush.msra.mxu0 %v814
        %1288 = vmatpush.msra.mxu0 %v813
        %1289 = vmatpush.msra.mxu0 %v812
        %1290 = vmatpush.msra.mxu0 %v811
        %1291 = vmatpush.msra.mxu0 %v810
        %1292 = vmatpush.msra.mxu0 %v809
        %1293 = vmatpush.msra.mxu0 %v808
        %1294 = vmatpush.msra.mxu0 %v807
        %1295 = vmatpush.msra.mxu0 %v806
        %1296 = vmatpush.msra.mxu0 %v805
        %1297 = vmatpush.msra.mxu0 %v804
        %1298 = vmatpush.msra.mxu0 %v803
        %1299 = vmatpush.msra.mxu0 %v802
        %1300 = vmatpush.msra.mxu0 %v801
        %1301 = vmatmul.f32.gmra.mxu0 %v658
        %v1302 = vpop.f32.mrf.mxu0
        %v1303 = vadd.f32 %v1190, %v1302
        %1304 = vmatmul.f32.gmra.mxu0 %v662
        %v1305 = vpop.f32.mrf.mxu0
        %v1306 = vadd.f32 %v1193, %v1305
        %1307 = vmatmul.f32.gmra.mxu0 %v666
        %v1308 = vpop.f32.mrf.mxu0
        %v1309 = vadd.f32 %v1196, %v1308
        %1310 = vmatmul.f32.gmra.mxu0 %v670
        %v1311 = vpop.f32.mrf.mxu0
        %v1312 = vadd.f32 %v1199, %v1311
        %1313 = vmatmul.f32.gmra.mxu0 %v674
        %v1314 = vpop.f32.mrf.mxu0
        %v1315 = vadd.f32 %v1202, %v1314
        %1316 = vmatmul.f32.gmra.mxu0 %v678
        %v1317 = vpop.f32.mrf.mxu0
        %v1318 = vadd.f32 %v1205, %v1317
        %1319 = vmatmul.f32.gmra.mxu0 %v682
        %v1320 = vpop.f32.mrf.mxu0
        %v1321 = vadd.f32 %v1208, %v1320
        %1322 = vmatmul.f32.gmra.mxu0 %v686
        %v1323 = vpop.f32.mrf.mxu0
        %v1324 = vadd.f32 %v1211, %v1323
        %1325 = vmatmul.f32.gmra.mxu0 %v690
        %v1326 = vpop.f32.mrf.mxu0
        %v1327 = vadd.f32 %v1214, %v1326
        %1328 = vmatmul.f32.gmra.mxu0 %v694
        %v1329 = vpop.f32.mrf.mxu0
        %v1330 = vadd.f32 %v1217, %v1329
        %1331 = vmatmul.f32.gmra.mxu0 %v698
        %v1332 = vpop.f32.mrf.mxu0
        %v1333 = vadd.f32 %v1220, %v1332
        %1334 = vmatmul.f32.gmra.mxu0 %v702
        %v1335 = vpop.f32.mrf.mxu0
        %v1336 = vadd.f32 %v1223, %v1335
        %1337 = vmatmul.f32.gmra.mxu0 %v706
        %v1338 = vpop.f32.mrf.mxu0
        %v1339 = vadd.f32 %v1226, %v1338
        %1340 = vmatmul.f32.gmra.mxu0 %v710
        %v1341 = vpop.f32.mrf.mxu0
        %v1342 = vadd.f32 %v1229, %v1341
        %1343 = vmatmul.f32.gmra.mxu0 %v714
        %v1344 = vpop.f32.mrf.mxu0
        %v1345 = vadd.f32 %v1232, %v1344
        %1346 = vmatmul.f32.gmra.mxu0 %v718
        %v1347 = vpop.f32.mrf.mxu0
        %v1348 = vadd.f32 %v1235, %v1347
        %1349 = vmatmul.f32.gmra.mxu0 %v722
        %v1350 = vpop.f32.mrf.mxu0
        %v1351 = vadd.f32 %v1238, %v1350
        %1352 = vmatmul.f32.gmra.mxu0 %v726
        %v1353 = vpop.f32.mrf.mxu0
        %v1354 = vadd.f32 %v1241, %v1353
        %1355 = vmatmul.f32.gmra.mxu0 %v730
        %v1356 = vpop.f32.mrf.mxu0
        %v1357 = vadd.f32 %v1244, %v1356
        %1358 = vmatmul.f32.gmra.mxu0 %v734
        %v1359 = vpop.f32.mrf.mxu0
        %v1360 = vadd.f32 %v1247, %v1359
        %1361 = vmatmul.f32.gmra.mxu0 %v738
        %v1362 = vpop.f32.mrf.mxu0
        %v1363 = vadd.f32 %v1250, %v1362
        %1364 = vmatmul.f32.gmra.mxu0 %v742
        %v1365 = vpop.f32.mrf.mxu0
        %v1366 = vadd.f32 %v1253, %v1365
        %1367 = vmatmul.f32.gmra.mxu0 %v746
        %v1368 = vpop.f32.mrf.mxu0
        %v1369 = vadd.f32 %v1256, %v1368
        %1370 = vmatmul.f32.gmra.mxu0 %v750
        %v1371 = vpop.f32.mrf.mxu0
        %v1372 = vadd.f32 %v1259, %v1371
        %1373 = vmatmul.f32.gmra.mxu0 %v754
        %v1374 = vpop.f32.mrf.mxu0
        %v1375 = vadd.f32 %v1262, %v1374
        %1376 = vmatmul.f32.gmra.mxu0 %v758
        %v1377 = vpop.f32.mrf.mxu0
        %v1378 = vadd.f32 %v1265, %v1377
        %1379 = vmatmul.f32.gmra.mxu0 %v762
        %v1380 = vpop.f32.mrf.mxu0
        %v1381 = vadd.f32 %v1268, %v1380
        %1382 = vmatmul.f32.gmra.mxu0 %v766
        %v1383 = vpop.f32.mrf.mxu0
        %v1384 = vadd.f32 %v1271, %v1383
        %1385 = vmatmul.f32.gmra.mxu0 %v770
        %v1386 = vpop.f32.mrf.mxu0
        %v1387 = vadd.f32 %v1274, %v1386
        %1388 = vmatmul.f32.gmra.mxu0 %v774
        %v1389 = vpop.f32.mrf.mxu0
        %v1390 = vadd.f32 %v1277, %v1389
        %1391 = vmatmul.f32.gmra.mxu0 %v778
        %v1392 = vpop.f32.mrf.mxu0
        %v1393 = vadd.f32 %v1280, %v1392
        %1394 = vmatmul.f32.gmra.mxu0 %v782
        %v1395 = vpop.f32.mrf.mxu0
        %v1396 = vadd.f32 %v1283, %v1395
        %1397 = vdwg.mxu0
        %1398 = vmatpush.msra.mxu0 %v832
        %1399 = vmatpush.msra.mxu0 %v831
        %1400 = vmatpush.msra.mxu0 %v830
        %1401 = vmatpush.msra.mxu0 %v829
        %1402 = vmatpush.msra.mxu0 %v828
        %1403 = vmatpush.msra.mxu0 %v827
        %1404 = vmatpush.msra.mxu0 %v826
        %1405 = vmatpush.msra.mxu0 %v825
        %1406 = vmatpush.msra.mxu0 %v824
        %1407 = vmatpush.msra.mxu0 %v823
        %1408 = vmatpush.msra.mxu0 %v822
        %1409 = vmatpush.msra.mxu0 %v821
        %1410 = vmatpush.msra.mxu0 %v820
        %1411 = vmatpush.msra.mxu0 %v819
        %1412 = vmatpush.msra.mxu0 %v818
        %1413 = vmatpush.msra.mxu0 %v817
        %1414 = vmatmul.f32.gmra.mxu0 %v659
        %v1415 = vpop.f32.mrf.mxu0
        %v1416 = vadd.f32 %v1303, %v1415
        %1417 = vmatmul.f32.gmra.mxu0 %v663
        %v1418 = vpop.f32.mrf.mxu0
        %v1419 = vadd.f32 %v1306, %v1418
        %1420 = vmatmul.f32.gmra.mxu0 %v667
        %v1421 = vpop.f32.mrf.mxu0
        %v1422 = vadd.f32 %v1309, %v1421
        %1423 = vmatmul.f32.gmra.mxu0 %v671
        %v1424 = vpop.f32.mrf.mxu0
        %v1425 = vadd.f32 %v1312, %v1424
        %1426 = vmatmul.f32.gmra.mxu0 %v675
        %v1427 = vpop.f32.mrf.mxu0
        %v1428 = vadd.f32 %v1315, %v1427
        %1429 = vmatmul.f32.gmra.mxu0 %v679
        %v1430 = vpop.f32.mrf.mxu0
        %v1431 = vadd.f32 %v1318, %v1430
        %1432 = vmatmul.f32.gmra.mxu0 %v683
        %v1433 = vpop.f32.mrf.mxu0
        %v1434 = vadd.f32 %v1321, %v1433
        %1435 = vmatmul.f32.gmra.mxu0 %v687
        %v1436 = vpop.f32.mrf.mxu0
        %v1437 = vadd.f32 %v1324, %v1436
        %1438 = vmatmul.f32.gmra.mxu0 %v691
        %v1439 = vpop.f32.mrf.mxu0
        %v1440 = vadd.f32 %v1327, %v1439
        %1441 = vmatmul.f32.gmra.mxu0 %v695
        %v1442 = vpop.f32.mrf.mxu0
        %v1443 = vadd.f32 %v1330, %v1442
        %1444 = vmatmul.f32.gmra.mxu0 %v699
        %v1445 = vpop.f32.mrf.mxu0
        %v1446 = vadd.f32 %v1333, %v1445
        %1447 = vmatmul.f32.gmra.mxu0 %v703
        %v1448 = vpop.f32.mrf.mxu0
        %v1449 = vadd.f32 %v1336, %v1448
        %1450 = vmatmul.f32.gmra.mxu0 %v707
        %v1451 = vpop.f32.mrf.mxu0
        %v1452 = vadd.f32 %v1339, %v1451
        %1453 = vmatmul.f32.gmra.mxu0 %v711
        %v1454 = vpop.f32.mrf.mxu0
        %v1455 = vadd.f32 %v1342, %v1454
        %1456 = vmatmul.f32.gmra.mxu0 %v715
        %v1457 = vpop.f32.mrf.mxu0
        %v1458 = vadd.f32 %v1345, %v1457
        %1459 = vmatmul.f32.gmra.mxu0 %v719
        %v1460 = vpop.f32.mrf.mxu0
        %v1461 = vadd.f32 %v1348, %v1460
        %1462 = vmatmul.f32.gmra.mxu0 %v723
        %v1463 = vpop.f32.mrf.mxu0
        %v1464 = vadd.f32 %v1351, %v1463
        %1465 = vmatmul.f32.gmra.mxu0 %v727
        %v1466 = vpop.f32.mrf.mxu0
        %v1467 = vadd.f32 %v1354, %v1466
        %1468 = vmatmul.f32.gmra.mxu0 %v731
        %v1469 = vpop.f32.mrf.mxu0
        %v1470 = vadd.f32 %v1357, %v1469
        %1471 = vmatmul.f32.gmra.mxu0 %v735
        %v1472 = vpop.f32.mrf.mxu0
        %v1473 = vadd.f32 %v1360, %v1472
        %1474 = vmatmul.f32.gmra.mxu0 %v739
        %v1475 = vpop.f32.mrf.mxu0
        %v1476 = vadd.f32 %v1363, %v1475
        %1477 = vmatmul.f32.gmra.mxu0 %v743
        %v1478 = vpop.f32.mrf.mxu0
        %v1479 = vadd.f32 %v1366, %v1478
        %1480 = vmatmul.f32.gmra.mxu0 %v747
        %v1481 = vpop.f32.mrf.mxu0
        %v1482 = vadd.f32 %v1369, %v1481
        %1483 = vmatmul.f32.gmra.mxu0 %v751
        %v1484 = vpop.f32.mrf.mxu0
        %v1485 = vadd.f32 %v1372, %v1484
        %1486 = vmatmul.f32.gmra.mxu0 %v755
        %v1487 = vpop.f32.mrf.mxu0
        %v1488 = vadd.f32 %v1375, %v1487
        %1489 = vmatmul.f32.gmra.mxu0 %v759
        %v1490 = vpop.f32.mrf.mxu0
        %v1491 = vadd.f32 %v1378, %v1490
        %1492 = vmatmul.f32.gmra.mxu0 %v763
        %v1493 = vpop.f32.mrf.mxu0
        %v1494 = vadd.f32 %v1381, %v1493
        %1495 = vmatmul.f32.gmra.mxu0 %v767
        %v1496 = vpop.f32.mrf.mxu0
        %v1497 = vadd.f32 %v1384, %v1496
        %1498 = vmatmul.f32.gmra.mxu0 %v771
        %v1499 = vpop.f32.mrf.mxu0
        %v1500 = vadd.f32 %v1387, %v1499
        %1501 = vmatmul.f32.gmra.mxu0 %v775
        %v1502 = vpop.f32.mrf.mxu0
        %v1503 = vadd.f32 %v1390, %v1502
        %1504 = vmatmul.f32.gmra.mxu0 %v779
        %v1505 = vpop.f32.mrf.mxu0
        %v1506 = vadd.f32 %v1393, %v1505
        %1507 = vmatmul.f32.gmra.mxu0 %v783
        %v1508 = vpop.f32.mrf.mxu0
        %v1509 = vadd.f32 %v1396, %v1508
        %1510 = vdwg.mxu0
        %1511 = vmatpush.msra.mxu0 %v848
        %1512 = vmatpush.msra.mxu0 %v847
        %1513 = vmatpush.msra.mxu0 %v846
        %1514 = vmatpush.msra.mxu0 %v845
        %1515 = vmatpush.msra.mxu0 %v844
        %1516 = vmatpush.msra.mxu0 %v843
        %1517 = vmatpush.msra.mxu0 %v842
        %1518 = vmatpush.msra.mxu0 %v841
        %1519 = vmatpush.msra.mxu0 %v840
        %1520 = vmatpush.msra.mxu0 %v839
        %1521 = vmatpush.msra.mxu0 %v838
        %1522 = vmatpush.msra.mxu0 %v837
        %1523 = vmatpush.msra.mxu0 %v836
        %1524 = vmatpush.msra.mxu0 %v835
        %1525 = vmatpush.msra.mxu0 %v834
        %1526 = vmatpush.msra.mxu0 %v833
        %1527 = vmatmul.f32.gmra.mxu0 %v660
        %v1528 = vpop.f32.mrf.mxu0
        %v1529 = vadd.f32 %v1416, %v1528
        %1530 = vmatmul.f32.gmra.mxu0 %v664
        %v1531 = vpop.f32.mrf.mxu0
        %v1532 = vadd.f32 %v1419, %v1531
        %1533 = vmatmul.f32.gmra.mxu0 %v668
        %v1534 = vpop.f32.mrf.mxu0
        %v1535 = vadd.f32 %v1422, %v1534
        %1536 = vmatmul.f32.gmra.mxu0 %v672
        %v1537 = vpop.f32.mrf.mxu0
        %v1538 = vadd.f32 %v1425, %v1537
        %1539 = vmatmul.f32.gmra.mxu0 %v676
        %v1540 = vpop.f32.mrf.mxu0
        %v1541 = vadd.f32 %v1428, %v1540
        %1542 = vmatmul.f32.gmra.mxu0 %v680
        %v1543 = vpop.f32.mrf.mxu0
        %v1544 = vadd.f32 %v1431, %v1543
        %1545 = vmatmul.f32.gmra.mxu0 %v684
        %v1546 = vpop.f32.mrf.mxu0
        %v1547 = vadd.f32 %v1434, %v1546
        %1548 = vmatmul.f32.gmra.mxu0 %v688
        %v1549 = vpop.f32.mrf.mxu0
        %v1550 = vadd.f32 %v1437, %v1549
        %1551 = vmatmul.f32.gmra.mxu0 %v692
        %v1552 = vpop.f32.mrf.mxu0
        %v1553 = vadd.f32 %v1440, %v1552
        %1554 = vmatmul.f32.gmra.mxu0 %v696
        %v1555 = vpop.f32.mrf.mxu0
        %v1556 = vadd.f32 %v1443, %v1555
        %1557 = vmatmul.f32.gmra.mxu0 %v700
        %v1558 = vpop.f32.mrf.mxu0
        %v1559 = vadd.f32 %v1446, %v1558
        %1560 = vmatmul.f32.gmra.mxu0 %v704
        %v1561 = vpop.f32.mrf.mxu0
        %v1562 = vadd.f32 %v1449, %v1561
        %1563 = vmatmul.f32.gmra.mxu0 %v708
        %v1564 = vpop.f32.mrf.mxu0
        %v1565 = vadd.f32 %v1452, %v1564
        %1566 = vmatmul.f32.gmra.mxu0 %v712
        %v1567 = vpop.f32.mrf.mxu0
        %v1568 = vadd.f32 %v1455, %v1567
        %1569 = vmatmul.f32.gmra.mxu0 %v716
        %v1570 = vpop.f32.mrf.mxu0
        %v1571 = vadd.f32 %v1458, %v1570
        %1572 = vmatmul.f32.gmra.mxu0 %v720
        %v1573 = vpop.f32.mrf.mxu0
        %v1574 = vadd.f32 %v1461, %v1573
        %1575 = vmatmul.f32.gmra.mxu0 %v724
        %v1576 = vpop.f32.mrf.mxu0
        %v1577 = vadd.f32 %v1464, %v1576
        %1578 = vmatmul.f32.gmra.mxu0 %v728
        %v1579 = vpop.f32.mrf.mxu0
        %v1580 = vadd.f32 %v1467, %v1579
        %1581 = vmatmul.f32.gmra.mxu0 %v732
        %v1582 = vpop.f32.mrf.mxu0
        %v1583 = vadd.f32 %v1470, %v1582
        %1584 = vmatmul.f32.gmra.mxu0 %v736
        %v1585 = vpop.f32.mrf.mxu0
        %v1586 = vadd.f32 %v1473, %v1585
        %1587 = vmatmul.f32.gmra.mxu0 %v740
        %v1588 = vpop.f32.mrf.mxu0
        %v1589 = vadd.f32 %v1476, %v1588
        %1590 = vmatmul.f32.gmra.mxu0 %v744
        %v1591 = vpop.f32.mrf.mxu0
        %v1592 = vadd.f32 %v1479, %v1591
        %1593 = vmatmul.f32.gmra.mxu0 %v748
        %v1594 = vpop.f32.mrf.mxu0
        %v1595 = vadd.f32 %v1482, %v1594
        %1596 = vmatmul.f32.gmra.mxu0 %v752
        %v1597 = vpop.f32.mrf.mxu0
        %v1598 = vadd.f32 %v1485, %v1597
        %1599 = vmatmul.f32.gmra.mxu0 %v756
        %v1600 = vpop.f32.mrf.mxu0
        %v1601 = vadd.f32 %v1488, %v1600
        %1602 = vmatmul.f32.gmra.mxu0 %v760
        %v1603 = vpop.f32.mrf.mxu0
        %v1604 = vadd.f32 %v1491, %v1603
        %1605 = vmatmul.f32.gmra.mxu0 %v764
        %v1606 = vpop.f32.mrf.mxu0
        %v1607 = vadd.f32 %v1494, %v1606
        %1608 = vmatmul.f32.gmra.mxu0 %v768
        %v1609 = vpop.f32.mrf.mxu0
        %v1610 = vadd.f32 %v1497, %v1609
        %1611 = vmatmul.f32.gmra.mxu0 %v772
        %v1612 = vpop.f32.mrf.mxu0
        %v1613 = vadd.f32 %v1500, %v1612
        %1614 = vmatmul.f32.gmra.mxu0 %v776
        %v1615 = vpop.f32.mrf.mxu0
        %v1616 = vadd.f32 %v1503, %v1615
        %1617 = vmatmul.f32.gmra.mxu0 %v780
        %v1618 = vpop.f32.mrf.mxu0
        %v1619 = vadd.f32 %v1506, %v1618
        %1620 = vmatmul.f32.gmra.mxu0 %v784
        %v1621 = vpop.f32.mrf.mxu0
        %v1622 = vadd.f32 %v1509, %v1621
        %1623 = vdwg.mxu0
        %v1624 = vld [vmem:[#allocation2] sm:$0xfe]
        %v1625 = vld [vmem:[#allocation2 + $0x20] sm:$0xff]
        %v1626 = vld [vmem:[#allocation2 + $0x40] sm:$0x1]
        %v1627 = vld [vmem:[#allocation2 + $0x60] sm:$0xfe]
        %v1628 = vld [vmem:[#allocation2 + $0x80] sm:$0xff]
        %v1629 = vld [vmem:[#allocation2 + $0xa0] sm:$0x1]
        %v1630 = vld [vmem:[#allocation2 + $0xc0] sm:$0xfe]
        %v1631 = vld [vmem:[#allocation2 + $0xe0] sm:$0xff]
        %v1632 = vld [vmem:[#allocation2 + $0x100] sm:$0x1]
        %v1633 = vld [vmem:[#allocation2 + $0x120] sm:$0xfe]
        %v1634 = vld [vmem:[#allocation2 + $0x140] sm:$0xff]
        %v1635 = vld [vmem:[#allocation2 + $0x160] sm:$0x1]
        %v1636 = vld [vmem:[#allocation2 + $0x180] sm:$0xfe]
        %v1637 = vld [vmem:[#allocation2 + $0x1a0] sm:$0xff]
        %v1638 = vld [vmem:[#allocation2 + $0x1c0] sm:$0x1]
        %v1639 = vld [vmem:[#allocation2 + $0x1e0] sm:$0xfe]
        %v1640 = vld [vmem:[#allocation2 + $0x200] sm:$0xff]
        %v1641 = vld [vmem:[#allocation2 + $0x220] sm:$0x1]
        %v1642 = vld [vmem:[#allocation2 + $0x240] sm:$0xfe]
        %v1643 = vld [vmem:[#allocation2 + $0x260] sm:$0xff]
        %v1644 = vld [vmem:[#allocation2 + $0x280] sm:$0x1]
        %v1645 = vld [vmem:[#allocation2 + $0x2a0] sm:$0xfe]
        %v1646 = vld [vmem:[#allocation2 + $0x2c0] sm:$0xff]
        %v1647 = vld [vmem:[#allocation2 + $0x2e0] sm:$0x1]
        %v1648 = vld [vmem:[#allocation2 + $0x300] sm:$0xfe]
        %v1649 = vld [vmem:[#allocation2 + $0x320] sm:$0xff]
        %v1650 = vld [vmem:[#allocation2 + $0x340] sm:$0x1]
        %v1651 = vld [vmem:[#allocation2 + $0x360] sm:$0xfe]
        %v1652 = vld [vmem:[#allocation2 + $0x380] sm:$0xff]
        %v1653 = vld [vmem:[#allocation2 + $0x3a0] sm:$0x1]
        %v1654 = vld [vmem:[#allocation2 + $0x3c0] sm:$0xfe]
        %v1655 = vld [vmem:[#allocation2 + $0x3e0] sm:$0xff]
        %v1656 = vld [vmem:[#allocation2 + $0x400] sm:$0x1]
        %v1657 = vld [vmem:[#allocation2 + $0x420] sm:$0xfe]
        %v1658 = vld [vmem:[#allocation2 + $0x440] sm:$0xff]
        %v1659 = vld [vmem:[#allocation2 + $0x460] sm:$0x1]
        %v1660 = vld [vmem:[#allocation2 + $0x480] sm:$0xfe]
        %v1661 = vld [vmem:[#allocation2 + $0x4a0] sm:$0xff]
        %v1662 = vld [vmem:[#allocation2 + $0x4c0] sm:$0x1]
        %v1663 = vld [vmem:[#allocation2 + $0x4e0] sm:$0xfe]
        %v1664 = vld [vmem:[#allocation2 + $0x500] sm:$0xff]
        %v1665 = vld [vmem:[#allocation2 + $0x520] sm:$0x1]
        %v1666 = vld [vmem:[#allocation2 + $0x540] sm:$0xfe]
        %v1667 = vld [vmem:[#allocation2 + $0x560] sm:$0xff]
        %v1668 = vld [vmem:[#allocation2 + $0x580] sm:$0x1]
        %v1669 = vld [vmem:[#allocation2 + $0x5a0] sm:$0xfe]
        %v1670 = vld [vmem:[#allocation2 + $0x5c0] sm:$0xff]
        %v1671 = vld [vmem:[#allocation2 + $0x5e0] sm:$0x1]
        %vm1720 = vcmask 1046528
        %v1721 = vrot.slane %v1624, 1
        %v1722 = vrot.slane %v1625, 1
        %v1723 = vsel %vm1720, %v1721, %v1722
        %v1724 = vrot.slane %v1626, 1
        %v1725 = vsel %vm1720, %v1722, %v1724
        %v1726 = vrot.slane %v1627, 1
        %v1727 = vrot.slane %v1628, 1
        %v1728 = vsel %vm1720, %v1726, %v1727
        %v1729 = vrot.slane %v1629, 1
        %v1730 = vsel %vm1720, %v1727, %v1729
        %v1731 = vrot.slane %v1630, 1
        %v1732 = vrot.slane %v1631, 1
        %v1733 = vsel %vm1720, %v1731, %v1732
        %v1734 = vrot.slane %v1632, 1
        %v1735 = vsel %vm1720, %v1732, %v1734
        %v1736 = vrot.slane %v1633, 1
        %v1737 = vrot.slane %v1634, 1
        %v1738 = vsel %vm1720, %v1736, %v1737
        %v1739 = vrot.slane %v1635, 1
        %v1740 = vsel %vm1720, %v1737, %v1739
        %v1741 = vrot.slane %v1636, 1
        %v1742 = vrot.slane %v1637, 1
        %v1743 = vsel %vm1720, %v1741, %v1742
        %v1744 = vrot.slane %v1638, 1
        %v1745 = vsel %vm1720, %v1742, %v1744
        %v1746 = vrot.slane %v1639, 1
        %v1747 = vrot.slane %v1640, 1
        %v1748 = vsel %vm1720, %v1746, %v1747
        %v1749 = vrot.slane %v1641, 1
        %v1750 = vsel %vm1720, %v1747, %v1749
        %v1751 = vrot.slane %v1642, 1
        %v1752 = vrot.slane %v1643, 1
        %v1753 = vsel %vm1720, %v1751, %v1752
        %v1754 = vrot.slane %v1644, 1
        %v1755 = vsel %vm1720, %v1752, %v1754
        %v1756 = vrot.slane %v1645, 1
        %v1757 = vrot.slane %v1646, 1
        %v1758 = vsel %vm1720, %v1756, %v1757
        %v1759 = vrot.slane %v1647, 1
        %v1760 = vsel %vm1720, %v1757, %v1759
        %v1761 = vrot.slane %v1648, 1
        %v1762 = vrot.slane %v1649, 1
        %v1763 = vsel %vm1720, %v1761, %v1762
        %v1764 = vrot.slane %v1650, 1
        %v1765 = vsel %vm1720, %v1762, %v1764
        %v1766 = vrot.slane %v1651, 1
        %v1767 = vrot.slane %v1652, 1
        %v1768 = vsel %vm1720, %v1766, %v1767
        %v1769 = vrot.slane %v1653, 1
        %v1770 = vsel %vm1720, %v1767, %v1769
        %v1771 = vrot.slane %v1654, 1
        %v1772 = vrot.slane %v1655, 1
        %v1773 = vsel %vm1720, %v1771, %v1772
        %v1774 = vrot.slane %v1656, 1
        %v1775 = vsel %vm1720, %v1772, %v1774
        %v1776 = vrot.slane %v1657, 1
        %v1777 = vrot.slane %v1658, 1
        %v1778 = vsel %vm1720, %v1776, %v1777
        %v1779 = vrot.slane %v1659, 1
        %v1780 = vsel %vm1720, %v1777, %v1779
        %v1781 = vrot.slane %v1660, 1
        %v1782 = vrot.slane %v1661, 1
        %v1783 = vsel %vm1720, %v1781, %v1782
        %v1784 = vrot.slane %v1662, 1
        %v1785 = vsel %vm1720, %v1782, %v1784
        %v1786 = vrot.slane %v1663, 1
        %v1787 = vrot.slane %v1664, 1
        %v1788 = vsel %vm1720, %v1786, %v1787
        %v1789 = vrot.slane %v1665, 1
        %v1790 = vsel %vm1720, %v1787, %v1789
        %v1791 = vrot.slane %v1666, 1
        %v1792 = vrot.slane %v1667, 1
        %v1793 = vsel %vm1720, %v1791, %v1792
        %v1794 = vrot.slane %v1668, 1
        %v1795 = vsel %vm1720, %v1792, %v1794
        %v1796 = vrot.slane %v1669, 1
        %v1797 = vrot.slane %v1670, 1
        %v1798 = vsel %vm1720, %v1796, %v1797
        %v1799 = vrot.slane %v1671, 1
        %v1800 = vsel %vm1720, %v1797, %v1799
        %v1833 = vld [vmem:[#allocation8 + $0x300] sm:$0xff]
        %v1834 = vld [vmem:[#allocation8 + $0x308] sm:$0xff]
        %v1835 = vld [vmem:[#allocation8 + $0x310] sm:$0xff]
        %v1836 = vld [vmem:[#allocation8 + $0x318] sm:$0xff]
        %v1837 = vld [vmem:[#allocation8 + $0x320] sm:$0xff]
        %v1838 = vld [vmem:[#allocation8 + $0x328] sm:$0xff]
        %v1839 = vld [vmem:[#allocation8 + $0x330] sm:$0xff]
        %v1840 = vld [vmem:[#allocation8 + $0x338] sm:$0xff]
        %v1841 = vld [vmem:[#allocation8 + $0x340] sm:$0xff]
        %v1842 = vld [vmem:[#allocation8 + $0x348] sm:$0xff]
        %v1843 = vld [vmem:[#allocation8 + $0x350] sm:$0xff]
        %v1844 = vld [vmem:[#allocation8 + $0x358] sm:$0xff]
        %v1845 = vld [vmem:[#allocation8 + $0x360] sm:$0xff]
        %v1846 = vld [vmem:[#allocation8 + $0x368] sm:$0xff]
        %v1847 = vld [vmem:[#allocation8 + $0x370] sm:$0xff]
        %v1848 = vld [vmem:[#allocation8 + $0x378] sm:$0xff]
        %1849 = vmatpush.msra.mxu0 %v1848
        %1850 = vmatpush.msra.mxu0 %v1847
        %1851 = vmatpush.msra.mxu0 %v1846
        %1852 = vmatpush.msra.mxu0 %v1845
        %1853 = vmatpush.msra.mxu0 %v1844
        %1854 = vmatpush.msra.mxu0 %v1843
        %1855 = vmatpush.msra.mxu0 %v1842
        %1856 = vmatpush.msra.mxu0 %v1841
        %1857 = vmatpush.msra.mxu0 %v1840
        %1858 = vmatpush.msra.mxu0 %v1839
        %1859 = vmatpush.msra.mxu0 %v1838
        %1860 = vmatpush.msra.mxu0 %v1837
        %1861 = vmatpush.msra.mxu0 %v1836
        %1862 = vmatpush.msra.mxu0 %v1835
        %1863 = vmatpush.msra.mxu0 %v1834
        %1864 = vmatpush.msra.mxu0 %v1833
        %1865 = vmatmul.f32.gmra.mxu0 %v1723
        %v1866 = vpop.f32.mrf.mxu0
        %v1867 = vadd.f32 0.0, %v1866
        %1868 = vmatmul.f32.gmra.mxu0 %v1725
        %v1869 = vpop.f32.mrf.mxu0
        %v1870 = vadd.f32 0.0, %v1869
        %1871 = vmatmul.f32.gmra.mxu0 %v1728
        %v1872 = vpop.f32.mrf.mxu0
        %v1873 = vadd.f32 0.0, %v1872
        %1874 = vmatmul.f32.gmra.mxu0 %v1730
        %v1875 = vpop.f32.mrf.mxu0
        %v1876 = vadd.f32 0.0, %v1875
        %1877 = vmatmul.f32.gmra.mxu0 %v1733
        %v1878 = vpop.f32.mrf.mxu0
        %v1879 = vadd.f32 0.0, %v1878
        %1880 = vmatmul.f32.gmra.mxu0 %v1735
        %v1881 = vpop.f32.mrf.mxu0
        %v1882 = vadd.f32 0.0, %v1881
        %1883 = vmatmul.f32.gmra.mxu0 %v1738
        %v1884 = vpop.f32.mrf.mxu0
        %v1885 = vadd.f32 0.0, %v1884
        %1886 = vmatmul.f32.gmra.mxu0 %v1740
        %v1887 = vpop.f32.mrf.mxu0
        %v1888 = vadd.f32 0.0, %v1887
        %1889 = vmatmul.f32.gmra.mxu0 %v1743
        %v1890 = vpop.f32.mrf.mxu0
        %v1891 = vadd.f32 0.0, %v1890
        %1892 = vmatmul.f32.gmra.mxu0 %v1745
        %v1893 = vpop.f32.mrf.mxu0
        %v1894 = vadd.f32 0.0, %v1893
        %1895 = vmatmul.f32.gmra.mxu0 %v1748
        %v1896 = vpop.f32.mrf.mxu0
        %v1897 = vadd.f32 0.0, %v1896
        %1898 = vmatmul.f32.gmra.mxu0 %v1750
        %v1899 = vpop.f32.mrf.mxu0
        %v1900 = vadd.f32 0.0, %v1899
        %1901 = vmatmul.f32.gmra.mxu0 %v1753
        %v1902 = vpop.f32.mrf.mxu0
        %v1903 = vadd.f32 0.0, %v1902
        %1904 = vmatmul.f32.gmra.mxu0 %v1755
        %v1905 = vpop.f32.mrf.mxu0
        %v1906 = vadd.f32 0.0, %v1905
        %1907 = vmatmul.f32.gmra.mxu0 %v1758
        %v1908 = vpop.f32.mrf.mxu0
        %v1909 = vadd.f32 0.0, %v1908
        %1910 = vmatmul.f32.gmra.mxu0 %v1760
        %v1911 = vpop.f32.mrf.mxu0
        %v1912 = vadd.f32 0.0, %v1911
        %1913 = vmatmul.f32.gmra.mxu0 %v1763
        %v1914 = vpop.f32.mrf.mxu0
        %v1915 = vadd.f32 0.0, %v1914
        %1916 = vmatmul.f32.gmra.mxu0 %v1765
        %v1917 = vpop.f32.mrf.mxu0
        %v1918 = vadd.f32 0.0, %v1917
        %1919 = vmatmul.f32.gmra.mxu0 %v1768
        %v1920 = vpop.f32.mrf.mxu0
        %v1921 = vadd.f32 0.0, %v1920
        %1922 = vmatmul.f32.gmra.mxu0 %v1770
        %v1923 = vpop.f32.mrf.mxu0
        %v1924 = vadd.f32 0.0, %v1923
        %1925 = vmatmul.f32.gmra.mxu0 %v1773
        %v1926 = vpop.f32.mrf.mxu0
        %v1927 = vadd.f32 0.0, %v1926
        %1928 = vmatmul.f32.gmra.mxu0 %v1775
        %v1929 = vpop.f32.mrf.mxu0
        %v1930 = vadd.f32 0.0, %v1929
        %1931 = vmatmul.f32.gmra.mxu0 %v1778
        %v1932 = vpop.f32.mrf.mxu0
        %v1933 = vadd.f32 0.0, %v1932
        %1934 = vmatmul.f32.gmra.mxu0 %v1780
        %v1935 = vpop.f32.mrf.mxu0
        %v1936 = vadd.f32 0.0, %v1935
        %1937 = vmatmul.f32.gmra.mxu0 %v1783
        %v1938 = vpop.f32.mrf.mxu0
        %v1939 = vadd.f32 0.0, %v1938
        %1940 = vmatmul.f32.gmra.mxu0 %v1785
        %v1941 = vpop.f32.mrf.mxu0
        %v1942 = vadd.f32 0.0, %v1941
        %1943 = vmatmul.f32.gmra.mxu0 %v1788
        %v1944 = vpop.f32.mrf.mxu0
        %v1945 = vadd.f32 0.0, %v1944
        %1946 = vmatmul.f32.gmra.mxu0 %v1790
        %v1947 = vpop.f32.mrf.mxu0
        %v1948 = vadd.f32 0.0, %v1947
        %1949 = vmatmul.f32.gmra.mxu0 %v1793
        %v1950 = vpop.f32.mrf.mxu0
        %v1951 = vadd.f32 0.0, %v1950
        %1952 = vmatmul.f32.gmra.mxu0 %v1795
        %v1953 = vpop.f32.mrf.mxu0
        %v1954 = vadd.f32 0.0, %v1953
        %1955 = vmatmul.f32.gmra.mxu0 %v1798
        %v1956 = vpop.f32.mrf.mxu0
        %v1957 = vadd.f32 0.0, %v1956
        %1958 = vmatmul.f32.gmra.mxu0 %v1800
        %v1959 = vpop.f32.mrf.mxu0
        %v1960 = vadd.f32 0.0, %v1959
        %1961 = vdwg.mxu0
        %v1962 = vadd.f32 %v1529, %v1867
        %v1963 = vadd.f32 %v1532, %v1870
        %v1964 = vadd.f32 %v1535, %v1873
        %v1965 = vadd.f32 %v1538, %v1876
        %v1966 = vadd.f32 %v1541, %v1879
        %v1967 = vadd.f32 %v1544, %v1882
        %v1968 = vadd.f32 %v1547, %v1885
        %v1969 = vadd.f32 %v1550, %v1888
        %v1970 = vadd.f32 %v1553, %v1891
        %v1971 = vadd.f32 %v1556, %v1894
        %v1972 = vadd.f32 %v1559, %v1897
        %v1973 = vadd.f32 %v1562, %v1900
        %v1974 = vadd.f32 %v1565, %v1903
        %v1975 = vadd.f32 %v1568, %v1906
        %v1976 = vadd.f32 %v1571, %v1909
        %v1977 = vadd.f32 %v1574, %v1912
        %v1978 = vadd.f32 %v1577, %v1915
        %v1979 = vadd.f32 %v1580, %v1918
        %v1980 = vadd.f32 %v1583, %v1921
        %v1981 = vadd.f32 %v1586, %v1924
        %v1982 = vadd.f32 %v1589, %v1927
        %v1983 = vadd.f32 %v1592, %v1930
        %v1984 = vadd.f32 %v1595, %v1933
        %v1985 = vadd.f32 %v1598, %v1936
        %v1986 = vadd.f32 %v1601, %v1939
        %v1987 = vadd.f32 %v1604, %v1942
        %v1988 = vadd.f32 %v1607, %v1945
        %v1989 = vadd.f32 %v1610, %v1948
        %v1990 = vadd.f32 %v1613, %v1951
        %v1991 = vadd.f32 %v1616, %v1954
        %v1992 = vadd.f32 %v1619, %v1957
        %v1993 = vadd.f32 %v1622, %v1960
        %v1994 = vld [vmem:[#allocation2 + $0x10] sm:$0xfe]
        %v1995 = vld [vmem:[#allocation2 + $0x30] sm:$0xff]
        %v1996 = vld [vmem:[#allocation2 + $0x50] sm:$0x1]
        %v1997 = vld [vmem:[#allocation2 + $0x70] sm:$0xfe]
        %v1998 = vld [vmem:[#allocation2 + $0x90] sm:$0xff]
        %v1999 = vld [vmem:[#allocation2 + $0xb0] sm:$0x1]
        %v2000 = vld [vmem:[#allocation2 + $0xd0] sm:$0xfe]
        %v2001 = vld [vmem:[#allocation2 + $0xf0] sm:$0xff]
        %v2002 = vld [vmem:[#allocation2 + $0x110] sm:$0x1]
        %v2003 = vld [vmem:[#allocation2 + $0x130] sm:$0xfe]
        %v2004 = vld [vmem:[#allocation2 + $0x150] sm:$0xff]
        %v2005 = vld [vmem:[#allocation2 + $0x170] sm:$0x1]
        %v2006 = vld [vmem:[#allocation2 + $0x190] sm:$0xfe]
        %v2007 = vld [vmem:[#allocation2 + $0x1b0] sm:$0xff]
        %v2008 = vld [vmem:[#allocation2 + $0x1d0] sm:$0x1]
        %v2009 = vld [vmem:[#allocation2 + $0x1f0] sm:$0xfe]
        %v2010 = vld [vmem:[#allocation2 + $0x210] sm:$0xff]
        %v2011 = vld [vmem:[#allocation2 + $0x230] sm:$0x1]
        %v2012 = vld [vmem:[#allocation2 + $0x250] sm:$0xfe]
        %v2013 = vld [vmem:[#allocation2 + $0x270] sm:$0xff]
        %v2014 = vld [vmem:[#allocation2 + $0x290] sm:$0x1]
        %v2015 = vld [vmem:[#allocation2 + $0x2b0] sm:$0xfe]
        %v2016 = vld [vmem:[#allocation2 + $0x2d0] sm:$0xff]
        %v2017 = vld [vmem:[#allocation2 + $0x2f0] sm:$0x1]
        %v2018 = vld [vmem:[#allocation2 + $0x310] sm:$0xfe]
        %v2019 = vld [vmem:[#allocation2 + $0x330] sm:$0xff]
        %v2020 = vld [vmem:[#allocation2 + $0x350] sm:$0x1]
        %v2021 = vld [vmem:[#allocation2 + $0x370] sm:$0xfe]
        %v2022 = vld [vmem:[#allocation2 + $0x390] sm:$0xff]
        %v2023 = vld [vmem:[#allocation2 + $0x3b0] sm:$0x1]
        %v2024 = vld [vmem:[#allocation2 + $0x3d0] sm:$0xfe]
        %v2025 = vld [vmem:[#allocation2 + $0x3f0] sm:$0xff]
        %v2026 = vld [vmem:[#allocation2 + $0x410] sm:$0x1]
        %v2027 = vld [vmem:[#allocation2 + $0x430] sm:$0xfe]
        %v2028 = vld [vmem:[#allocation2 + $0x450] sm:$0xff]
        %v2029 = vld [vmem:[#allocation2 + $0x470] sm:$0x1]
        %v2030 = vld [vmem:[#allocation2 + $0x490] sm:$0xfe]
        %v2031 = vld [vmem:[#allocation2 + $0x4b0] sm:$0xff]
        %v2032 = vld [vmem:[#allocation2 + $0x4d0] sm:$0x1]
        %v2033 = vld [vmem:[#allocation2 + $0x4f0] sm:$0xfe]
        %v2034 = vld [vmem:[#allocation2 + $0x510] sm:$0xff]
        %v2035 = vld [vmem:[#allocation2 + $0x530] sm:$0x1]
        %v2036 = vld [vmem:[#allocation2 + $0x550] sm:$0xfe]
        %v2037 = vld [vmem:[#allocation2 + $0x570] sm:$0xff]
        %v2038 = vld [vmem:[#allocation2 + $0x590] sm:$0x1]
        %v2039 = vld [vmem:[#allocation2 + $0x5b0] sm:$0xfe]
        %v2040 = vld [vmem:[#allocation2 + $0x5d0] sm:$0xff]
        %v2041 = vld [vmem:[#allocation2 + $0x5f0] sm:$0x1]
        %v2090 = vrot.slane %v1994, 1
        %v2091 = vrot.slane %v1995, 1
        %v2092 = vsel %vm1720, %v2090, %v2091
        %v2093 = vrot.slane %v1996, 1
        %v2094 = vsel %vm1720, %v2091, %v2093
        %v2095 = vrot.slane %v1997, 1
        %v2096 = vrot.slane %v1998, 1
        %v2097 = vsel %vm1720, %v2095, %v2096
        %v2098 = vrot.slane %v1999, 1
        %v2099 = vsel %vm1720, %v2096, %v2098
        %v2100 = vrot.slane %v2000, 1
        %v2101 = vrot.slane %v2001, 1
        %v2102 = vsel %vm1720, %v2100, %v2101
        %v2103 = vrot.slane %v2002, 1
        %v2104 = vsel %vm1720, %v2101, %v2103
        %v2105 = vrot.slane %v2003, 1
        %v2106 = vrot.slane %v2004, 1
        %v2107 = vsel %vm1720, %v2105, %v2106
        %v2108 = vrot.slane %v2005, 1
        %v2109 = vsel %vm1720, %v2106, %v2108
        %v2110 = vrot.slane %v2006, 1
        %v2111 = vrot.slane %v2007, 1
        %v2112 = vsel %vm1720, %v2110, %v2111
        %v2113 = vrot.slane %v2008, 1
        %v2114 = vsel %vm1720, %v2111, %v2113
        %v2115 = vrot.slane %v2009, 1
        %v2116 = vrot.slane %v2010, 1
        %v2117 = vsel %vm1720, %v2115, %v2116
        %v2118 = vrot.slane %v2011, 1
        %v2119 = vsel %vm1720, %v2116, %v2118
        %v2120 = vrot.slane %v2012, 1
        %v2121 = vrot.slane %v2013, 1
        %v2122 = vsel %vm1720, %v2120, %v2121
        %v2123 = vrot.slane %v2014, 1
        %v2124 = vsel %vm1720, %v2121, %v2123
        %v2125 = vrot.slane %v2015, 1
        %v2126 = vrot.slane %v2016, 1
        %v2127 = vsel %vm1720, %v2125, %v2126
        %v2128 = vrot.slane %v2017, 1
        %v2129 = vsel %vm1720, %v2126, %v2128
        %v2130 = vrot.slane %v2018, 1
        %v2131 = vrot.slane %v2019, 1
        %v2132 = vsel %vm1720, %v2130, %v2131
        %v2133 = vrot.slane %v2020, 1
        %v2134 = vsel %vm1720, %v2131, %v2133
        %v2135 = vrot.slane %v2021, 1
        %v2136 = vrot.slane %v2022, 1
        %v2137 = vsel %vm1720, %v2135, %v2136
        %v2138 = vrot.slane %v2023, 1
        %v2139 = vsel %vm1720, %v2136, %v2138
        %v2140 = vrot.slane %v2024, 1
        %v2141 = vrot.slane %v2025, 1
        %v2142 = vsel %vm1720, %v2140, %v2141
        %v2143 = vrot.slane %v2026, 1
        %v2144 = vsel %vm1720, %v2141, %v2143
        %v2145 = vrot.slane %v2027, 1
        %v2146 = vrot.slane %v2028, 1
        %v2147 = vsel %vm1720, %v2145, %v2146
        %v2148 = vrot.slane %v2029, 1
        %v2149 = vsel %vm1720, %v2146, %v2148
        %v2150 = vrot.slane %v2030, 1
        %v2151 = vrot.slane %v2031, 1
        %v2152 = vsel %vm1720, %v2150, %v2151
        %v2153 = vrot.slane %v2032, 1
        %v2154 = vsel %vm1720, %v2151, %v2153
        %v2155 = vrot.slane %v2033, 1
        %v2156 = vrot.slane %v2034, 1
        %v2157 = vsel %vm1720, %v2155, %v2156
        %v2158 = vrot.slane %v2035, 1
        %v2159 = vsel %vm1720, %v2156, %v2158
        %v2160 = vrot.slane %v2036, 1
        %v2161 = vrot.slane %v2037, 1
        %v2162 = vsel %vm1720, %v2160, %v2161
        %v2163 = vrot.slane %v2038, 1
        %v2164 = vsel %vm1720, %v2161, %v2163
        %v2165 = vrot.slane %v2039, 1
        %v2166 = vrot.slane %v2040, 1
        %v2167 = vsel %vm1720, %v2165, %v2166
        %v2168 = vrot.slane %v2041, 1
        %v2169 = vsel %vm1720, %v2166, %v2168
        %v2202 = vld [vmem:[#allocation8 + $0x380] sm:$0xff]
        %v2203 = vld [vmem:[#allocation8 + $0x388] sm:$0xff]
        %v2204 = vld [vmem:[#allocation8 + $0x390] sm:$0xff]
        %v2205 = vld [vmem:[#allocation8 + $0x398] sm:$0xff]
        %v2206 = vld [vmem:[#allocation8 + $0x3a0] sm:$0xff]
        %v2207 = vld [vmem:[#allocation8 + $0x3a8] sm:$0xff]
        %v2208 = vld [vmem:[#allocation8 + $0x3b0] sm:$0xff]
        %v2209 = vld [vmem:[#allocation8 + $0x3b8] sm:$0xff]
        %v2210 = vld [vmem:[#allocation8 + $0x3c0] sm:$0xff]
        %v2211 = vld [vmem:[#allocation8 + $0x3c8] sm:$0xff]
        %v2212 = vld [vmem:[#allocation8 + $0x3d0] sm:$0xff]
        %v2213 = vld [vmem:[#allocation8 + $0x3d8] sm:$0xff]
        %v2214 = vld [vmem:[#allocation8 + $0x3e0] sm:$0xff]
        %v2215 = vld [vmem:[#allocation8 + $0x3e8] sm:$0xff]
        %v2216 = vld [vmem:[#allocation8 + $0x3f0] sm:$0xff]
        %v2217 = vld [vmem:[#allocation8 + $0x3f8] sm:$0xff]
        %2218 = vmatpush.msra.mxu0 %v2217
        %2219 = vmatpush.msra.mxu0 %v2216
        %2220 = vmatpush.msra.mxu0 %v2215
        %2221 = vmatpush.msra.mxu0 %v2214
        %2222 = vmatpush.msra.mxu0 %v2213
        %2223 = vmatpush.msra.mxu0 %v2212
        %2224 = vmatpush.msra.mxu0 %v2211
        %2225 = vmatpush.msra.mxu0 %v2210
        %2226 = vmatpush.msra.mxu0 %v2209
        %2227 = vmatpush.msra.mxu0 %v2208
        %2228 = vmatpush.msra.mxu0 %v2207
        %2229 = vmatpush.msra.mxu0 %v2206
        %2230 = vmatpush.msra.mxu0 %v2205
        %2231 = vmatpush.msra.mxu0 %v2204
        %2232 = vmatpush.msra.mxu0 %v2203
        %2233 = vmatpush.msra.mxu0 %v2202
        %2234 = vmatmul.f32.gmra.mxu0 %v2092
        %v2235 = vpop.f32.mrf.mxu0
        %v2236 = vadd.f32 0.0, %v2235
        %2237 = vmatmul.f32.gmra.mxu0 %v2094
        %v2238 = vpop.f32.mrf.mxu0
        %v2239 = vadd.f32 0.0, %v2238
        %2240 = vmatmul.f32.gmra.mxu0 %v2097
        %v2241 = vpop.f32.mrf.mxu0
        %v2242 = vadd.f32 0.0, %v2241
        %2243 = vmatmul.f32.gmra.mxu0 %v2099
        %v2244 = vpop.f32.mrf.mxu0
        %v2245 = vadd.f32 0.0, %v2244
        %2246 = vmatmul.f32.gmra.mxu0 %v2102
        %v2247 = vpop.f32.mrf.mxu0
        %v2248 = vadd.f32 0.0, %v2247
        %2249 = vmatmul.f32.gmra.mxu0 %v2104
        %v2250 = vpop.f32.mrf.mxu0
        %v2251 = vadd.f32 0.0, %v2250
        %2252 = vmatmul.f32.gmra.mxu0 %v2107
        %v2253 = vpop.f32.mrf.mxu0
        %v2254 = vadd.f32 0.0, %v2253
        %2255 = vmatmul.f32.gmra.mxu0 %v2109
        %v2256 = vpop.f32.mrf.mxu0
        %v2257 = vadd.f32 0.0, %v2256
        %2258 = vmatmul.f32.gmra.mxu0 %v2112
        %v2259 = vpop.f32.mrf.mxu0
        %v2260 = vadd.f32 0.0, %v2259
        %2261 = vmatmul.f32.gmra.mxu0 %v2114
        %v2262 = vpop.f32.mrf.mxu0
        %v2263 = vadd.f32 0.0, %v2262
        %2264 = vmatmul.f32.gmra.mxu0 %v2117
        %v2265 = vpop.f32.mrf.mxu0
        %v2266 = vadd.f32 0.0, %v2265
        %2267 = vmatmul.f32.gmra.mxu0 %v2119
        %v2268 = vpop.f32.mrf.mxu0
        %v2269 = vadd.f32 0.0, %v2268
        %2270 = vmatmul.f32.gmra.mxu0 %v2122
        %v2271 = vpop.f32.mrf.mxu0
        %v2272 = vadd.f32 0.0, %v2271
        %2273 = vmatmul.f32.gmra.mxu0 %v2124
        %v2274 = vpop.f32.mrf.mxu0
        %v2275 = vadd.f32 0.0, %v2274
        %2276 = vmatmul.f32.gmra.mxu0 %v2127
        %v2277 = vpop.f32.mrf.mxu0
        %v2278 = vadd.f32 0.0, %v2277
        %2279 = vmatmul.f32.gmra.mxu0 %v2129
        %v2280 = vpop.f32.mrf.mxu0
        %v2281 = vadd.f32 0.0, %v2280
        %2282 = vmatmul.f32.gmra.mxu0 %v2132
        %v2283 = vpop.f32.mrf.mxu0
        %v2284 = vadd.f32 0.0, %v2283
        %2285 = vmatmul.f32.gmra.mxu0 %v2134
        %v2286 = vpop.f32.mrf.mxu0
        %v2287 = vadd.f32 0.0, %v2286
        %2288 = vmatmul.f32.gmra.mxu0 %v2137
        %v2289 = vpop.f32.mrf.mxu0
        %v2290 = vadd.f32 0.0, %v2289
        %2291 = vmatmul.f32.gmra.mxu0 %v2139
        %v2292 = vpop.f32.mrf.mxu0
        %v2293 = vadd.f32 0.0, %v2292
        %2294 = vmatmul.f32.gmra.mxu0 %v2142
        %v2295 = vpop.f32.mrf.mxu0
        %v2296 = vadd.f32 0.0, %v2295
        %2297 = vmatmul.f32.gmra.mxu0 %v2144
        %v2298 = vpop.f32.mrf.mxu0
        %v2299 = vadd.f32 0.0, %v2298
        %2300 = vmatmul.f32.gmra.mxu0 %v2147
        %v2301 = vpop.f32.mrf.mxu0
        %v2302 = vadd.f32 0.0, %v2301
        %2303 = vmatmul.f32.gmra.mxu0 %v2149
        %v2304 = vpop.f32.mrf.mxu0
        %v2305 = vadd.f32 0.0, %v2304
        %2306 = vmatmul.f32.gmra.mxu0 %v2152
        %v2307 = vpop.f32.mrf.mxu0
        %v2308 = vadd.f32 0.0, %v2307
        %2309 = vmatmul.f32.gmra.mxu0 %v2154
        %v2310 = vpop.f32.mrf.mxu0
        %v2311 = vadd.f32 0.0, %v2310
        %2312 = vmatmul.f32.gmra.mxu0 %v2157
        %v2313 = vpop.f32.mrf.mxu0
        %v2314 = vadd.f32 0.0, %v2313
        %2315 = vmatmul.f32.gmra.mxu0 %v2159
        %v2316 = vpop.f32.mrf.mxu0
        %v2317 = vadd.f32 0.0, %v2316
        %2318 = vmatmul.f32.gmra.mxu0 %v2162
        %v2319 = vpop.f32.mrf.mxu0
        %v2320 = vadd.f32 0.0, %v2319
        %2321 = vmatmul.f32.gmra.mxu0 %v2164
        %v2322 = vpop.f32.mrf.mxu0
        %v2323 = vadd.f32 0.0, %v2322
        %2324 = vmatmul.f32.gmra.mxu0 %v2167
        %v2325 = vpop.f32.mrf.mxu0
        %v2326 = vadd.f32 0.0, %v2325
        %2327 = vmatmul.f32.gmra.mxu0 %v2169
        %v2328 = vpop.f32.mrf.mxu0
        %v2329 = vadd.f32 0.0, %v2328
        %2330 = vdwg.mxu0
        %v2331 = vadd.f32 %v1962, %v2236
        %v2332 = vadd.f32 %v1963, %v2239
        %v2333 = vadd.f32 %v1964, %v2242
        %v2334 = vadd.f32 %v1965, %v2245
        %v2335 = vadd.f32 %v1966, %v2248
        %v2336 = vadd.f32 %v1967, %v2251
        %v2337 = vadd.f32 %v1968, %v2254
        %v2338 = vadd.f32 %v1969, %v2257
        %v2339 = vadd.f32 %v1970, %v2260
        %v2340 = vadd.f32 %v1971, %v2263
        %v2341 = vadd.f32 %v1972, %v2266
        %v2342 = vadd.f32 %v1973, %v2269
        %v2343 = vadd.f32 %v1974, %v2272
        %v2344 = vadd.f32 %v1975, %v2275
        %v2345 = vadd.f32 %v1976, %v2278
        %v2346 = vadd.f32 %v1977, %v2281
        %v2347 = vadd.f32 %v1978, %v2284
        %v2348 = vadd.f32 %v1979, %v2287
        %v2349 = vadd.f32 %v1980, %v2290
        %v2350 = vadd.f32 %v1981, %v2293
        %v2351 = vadd.f32 %v1982, %v2296
        %v2352 = vadd.f32 %v1983, %v2299
        %v2353 = vadd.f32 %v1984, %v2302
        %v2354 = vadd.f32 %v1985, %v2305
        %v2355 = vadd.f32 %v1986, %v2308
        %v2356 = vadd.f32 %v1987, %v2311
        %v2357 = vadd.f32 %v1988, %v2314
        %v2358 = vadd.f32 %v1989, %v2317
        %v2359 = vadd.f32 %v1990, %v2320
        %v2360 = vadd.f32 %v1991, %v2323
        %v2361 = vadd.f32 %v1992, %v2326
        %v2362 = vadd.f32 %v1993, %v2329
        %v2363 = vld [vmem:[%s849] sm:$0xfe]
        %v2364 = vld [vmem:[%s849 + $0x20] sm:$0xff]
        %v2365 = vld [vmem:[%s849 + $0x40] sm:$0x1]
        %v2366 = vld [vmem:[%s849 + $0x60] sm:$0xfe]
        %v2367 = vld [vmem:[%s849 + $0x80] sm:$0xff]
        %v2368 = vld [vmem:[%s849 + $0xa0] sm:$0x1]
        %v2369 = vld [vmem:[%s849 + $0xc0] sm:$0xfe]
        %v2370 = vld [vmem:[%s849 + $0xe0] sm:$0xff]
        %v2371 = vld [vmem:[%s849 + $0x100] sm:$0x1]
        %v2372 = vld [vmem:[%s849 + $0x120] sm:$0xfe]
        %v2373 = vld [vmem:[%s849 + $0x140] sm:$0xff]
        %v2374 = vld [vmem:[%s849 + $0x160] sm:$0x1]
        %v2375 = vld [vmem:[%s849 + $0x180] sm:$0xfe]
        %v2376 = vld [vmem:[%s849 + $0x1a0] sm:$0xff]
        %v2377 = vld [vmem:[%s849 + $0x1c0] sm:$0x1]
        %v2378 = vld [vmem:[%s849 + $0x1e0] sm:$0xfe]
        %v2379 = vld [vmem:[%s849 + $0x200] sm:$0xff]
        %v2380 = vld [vmem:[%s849 + $0x220] sm:$0x1]
        %v2381 = vld [vmem:[%s849 + $0x240] sm:$0xfe]
        %v2382 = vld [vmem:[%s849 + $0x260] sm:$0xff]
        %v2383 = vld [vmem:[%s849 + $0x280] sm:$0x1]
        %v2384 = vld [vmem:[%s849 + $0x2a0] sm:$0xfe]
        %v2385 = vld [vmem:[%s849 + $0x2c0] sm:$0xff]
        %v2386 = vld [vmem:[%s849 + $0x2e0] sm:$0x1]
        %v2387 = vld [vmem:[%s849 + $0x300] sm:$0xfe]
        %v2388 = vld [vmem:[%s849 + $0x320] sm:$0xff]
        %v2389 = vld [vmem:[%s849 + $0x340] sm:$0x1]
        %v2390 = vld [vmem:[%s849 + $0x360] sm:$0xfe]
        %v2391 = vld [vmem:[%s849 + $0x380] sm:$0xff]
        %v2392 = vld [vmem:[%s849 + $0x3a0] sm:$0x1]
        %v2393 = vld [vmem:[%s849 + $0x3c0] sm:$0xfe]
        %v2394 = vld [vmem:[%s849 + $0x3e0] sm:$0xff]
        %v2395 = vld [vmem:[%s849 + $0x400] sm:$0x1]
        %v2396 = vld [vmem:[%s849 + $0x420] sm:$0xfe]
        %v2397 = vld [vmem:[%s849 + $0x440] sm:$0xff]
        %v2398 = vld [vmem:[%s849 + $0x460] sm:$0x1]
        %v2399 = vld [vmem:[%s849 + $0x480] sm:$0xfe]
        %v2400 = vld [vmem:[%s849 + $0x4a0] sm:$0xff]
        %v2401 = vld [vmem:[%s849 + $0x4c0] sm:$0x1]
        %v2402 = vld [vmem:[%s849 + $0x4e0] sm:$0xfe]
        %v2403 = vld [vmem:[%s849 + $0x500] sm:$0xff]
        %v2404 = vld [vmem:[%s849 + $0x520] sm:$0x1]
        %v2405 = vld [vmem:[%s849 + $0x540] sm:$0xfe]
        %v2406 = vld [vmem:[%s849 + $0x560] sm:$0xff]
        %v2407 = vld [vmem:[%s849 + $0x580] sm:$0x1]
        %v2408 = vld [vmem:[%s849 + $0x5a0] sm:$0xfe]
        %v2409 = vld [vmem:[%s849 + $0x5c0] sm:$0xff]
        %v2410 = vld [vmem:[%s849 + $0x5e0] sm:$0x1]
        %v2459 = vrot.slane %v2363, 1
        %v2460 = vrot.slane %v2364, 1
        %v2461 = vsel %vm1720, %v2459, %v2460
        %v2462 = vrot.slane %v2365, 1
        %v2463 = vsel %vm1720, %v2460, %v2462
        %v2464 = vrot.slane %v2366, 1
        %v2465 = vrot.slane %v2367, 1
        %v2466 = vsel %vm1720, %v2464, %v2465
        %v2467 = vrot.slane %v2368, 1
        %v2468 = vsel %vm1720, %v2465, %v2467
        %v2469 = vrot.slane %v2369, 1
        %v2470 = vrot.slane %v2370, 1
        %v2471 = vsel %vm1720, %v2469, %v2470
        %v2472 = vrot.slane %v2371, 1
        %v2473 = vsel %vm1720, %v2470, %v2472
        %v2474 = vrot.slane %v2372, 1
        %v2475 = vrot.slane %v2373, 1
        %v2476 = vsel %vm1720, %v2474, %v2475
        %v2477 = vrot.slane %v2374, 1
        %v2478 = vsel %vm1720, %v2475, %v2477
        %v2479 = vrot.slane %v2375, 1
        %v2480 = vrot.slane %v2376, 1
        %v2481 = vsel %vm1720, %v2479, %v2480
        %v2482 = vrot.slane %v2377, 1
        %v2483 = vsel %vm1720, %v2480, %v2482
        %v2484 = vrot.slane %v2378, 1
        %v2485 = vrot.slane %v2379, 1
        %v2486 = vsel %vm1720, %v2484, %v2485
        %v2487 = vrot.slane %v2380, 1
        %v2488 = vsel %vm1720, %v2485, %v2487
        %v2489 = vrot.slane %v2381, 1
        %v2490 = vrot.slane %v2382, 1
        %v2491 = vsel %vm1720, %v2489, %v2490
        %v2492 = vrot.slane %v2383, 1
        %v2493 = vsel %vm1720, %v2490, %v2492
        %v2494 = vrot.slane %v2384, 1
        %v2495 = vrot.slane %v2385, 1
        %v2496 = vsel %vm1720, %v2494, %v2495
        %v2497 = vrot.slane %v2386, 1
        %v2498 = vsel %vm1720, %v2495, %v2497
        %v2499 = vrot.slane %v2387, 1
        %v2500 = vrot.slane %v2388, 1
        %v2501 = vsel %vm1720, %v2499, %v2500
        %v2502 = vrot.slane %v2389, 1
        %v2503 = vsel %vm1720, %v2500, %v2502
        %v2504 = vrot.slane %v2390, 1
        %v2505 = vrot.slane %v2391, 1
        %v2506 = vsel %vm1720, %v2504, %v2505
        %v2507 = vrot.slane %v2392, 1
        %v2508 = vsel %vm1720, %v2505, %v2507
        %v2509 = vrot.slane %v2393, 1
        %v2510 = vrot.slane %v2394, 1
        %v2511 = vsel %vm1720, %v2509, %v2510
        %v2512 = vrot.slane %v2395, 1
        %v2513 = vsel %vm1720, %v2510, %v2512
        %v2514 = vrot.slane %v2396, 1
        %v2515 = vrot.slane %v2397, 1
        %v2516 = vsel %vm1720, %v2514, %v2515
        %v2517 = vrot.slane %v2398, 1
        %v2518 = vsel %vm1720, %v2515, %v2517
        %v2519 = vrot.slane %v2399, 1
        %v2520 = vrot.slane %v2400, 1
        %v2521 = vsel %vm1720, %v2519, %v2520
        %v2522 = vrot.slane %v2401, 1
        %v2523 = vsel %vm1720, %v2520, %v2522
        %v2524 = vrot.slane %v2402, 1
        %v2525 = vrot.slane %v2403, 1
        %v2526 = vsel %vm1720, %v2524, %v2525
        %v2527 = vrot.slane %v2404, 1
        %v2528 = vsel %vm1720, %v2525, %v2527
        %v2529 = vrot.slane %v2405, 1
        %v2530 = vrot.slane %v2406, 1
        %v2531 = vsel %vm1720, %v2529, %v2530
        %v2532 = vrot.slane %v2407, 1
        %v2533 = vsel %vm1720, %v2530, %v2532
        %v2534 = vrot.slane %v2408, 1
        %v2535 = vrot.slane %v2409, 1
        %v2536 = vsel %vm1720, %v2534, %v2535
        %v2537 = vrot.slane %v2410, 1
        %v2538 = vsel %vm1720, %v2535, %v2537
        %v2571 = vld [vmem:[#allocation8 + $0x400] sm:$0xff]
        %v2572 = vld [vmem:[#allocation8 + $0x408] sm:$0xff]
        %v2573 = vld [vmem:[#allocation8 + $0x410] sm:$0xff]
        %v2574 = vld [vmem:[#allocation8 + $0x418] sm:$0xff]
        %v2575 = vld [vmem:[#allocation8 + $0x420] sm:$0xff]
        %v2576 = vld [vmem:[#allocation8 + $0x428] sm:$0xff]
        %v2577 = vld [vmem:[#allocation8 + $0x430] sm:$0xff]
        %v2578 = vld [vmem:[#allocation8 + $0x438] sm:$0xff]
        %v2579 = vld [vmem:[#allocation8 + $0x440] sm:$0xff]
        %v2580 = vld [vmem:[#allocation8 + $0x448] sm:$0xff]
        %v2581 = vld [vmem:[#allocation8 + $0x450] sm:$0xff]
        %v2582 = vld [vmem:[#allocation8 + $0x458] sm:$0xff]
        %v2583 = vld [vmem:[#allocation8 + $0x460] sm:$0xff]
        %v2584 = vld [vmem:[#allocation8 + $0x468] sm:$0xff]
        %v2585 = vld [vmem:[#allocation8 + $0x470] sm:$0xff]
        %v2586 = vld [vmem:[#allocation8 + $0x478] sm:$0xff]
        %2587 = vmatpush.msra.mxu0 %v2586
        %2588 = vmatpush.msra.mxu0 %v2585
        %2589 = vmatpush.msra.mxu0 %v2584
        %2590 = vmatpush.msra.mxu0 %v2583
        %2591 = vmatpush.msra.mxu0 %v2582
        %2592 = vmatpush.msra.mxu0 %v2581
        %2593 = vmatpush.msra.mxu0 %v2580
        %2594 = vmatpush.msra.mxu0 %v2579
        %2595 = vmatpush.msra.mxu0 %v2578
        %2596 = vmatpush.msra.mxu0 %v2577
        %2597 = vmatpush.msra.mxu0 %v2576
        %2598 = vmatpush.msra.mxu0 %v2575
        %2599 = vmatpush.msra.mxu0 %v2574
        %2600 = vmatpush.msra.mxu0 %v2573
        %2601 = vmatpush.msra.mxu0 %v2572
        %2602 = vmatpush.msra.mxu0 %v2571
        %2603 = vmatmul.f32.gmra.mxu0 %v2461
        %v2604 = vpop.f32.mrf.mxu0
        %v2605 = vadd.f32 0.0, %v2604
        %2606 = vmatmul.f32.gmra.mxu0 %v2463
        %v2607 = vpop.f32.mrf.mxu0
        %v2608 = vadd.f32 0.0, %v2607
        %2609 = vmatmul.f32.gmra.mxu0 %v2466
        %v2610 = vpop.f32.mrf.mxu0
        %v2611 = vadd.f32 0.0, %v2610
        %2612 = vmatmul.f32.gmra.mxu0 %v2468
        %v2613 = vpop.f32.mrf.mxu0
        %v2614 = vadd.f32 0.0, %v2613
        %2615 = vmatmul.f32.gmra.mxu0 %v2471
        %v2616 = vpop.f32.mrf.mxu0
        %v2617 = vadd.f32 0.0, %v2616
        %2618 = vmatmul.f32.gmra.mxu0 %v2473
        %v2619 = vpop.f32.mrf.mxu0
        %v2620 = vadd.f32 0.0, %v2619
        %2621 = vmatmul.f32.gmra.mxu0 %v2476
        %v2622 = vpop.f32.mrf.mxu0
        %v2623 = vadd.f32 0.0, %v2622
        %2624 = vmatmul.f32.gmra.mxu0 %v2478
        %v2625 = vpop.f32.mrf.mxu0
        %v2626 = vadd.f32 0.0, %v2625
        %2627 = vmatmul.f32.gmra.mxu0 %v2481
        %v2628 = vpop.f32.mrf.mxu0
        %v2629 = vadd.f32 0.0, %v2628
        %2630 = vmatmul.f32.gmra.mxu0 %v2483
        %v2631 = vpop.f32.mrf.mxu0
        %v2632 = vadd.f32 0.0, %v2631
        %2633 = vmatmul.f32.gmra.mxu0 %v2486
        %v2634 = vpop.f32.mrf.mxu0
        %v2635 = vadd.f32 0.0, %v2634
        %2636 = vmatmul.f32.gmra.mxu0 %v2488
        %v2637 = vpop.f32.mrf.mxu0
        %v2638 = vadd.f32 0.0, %v2637
        %2639 = vmatmul.f32.gmra.mxu0 %v2491
        %v2640 = vpop.f32.mrf.mxu0
        %v2641 = vadd.f32 0.0, %v2640
        %2642 = vmatmul.f32.gmra.mxu0 %v2493
        %v2643 = vpop.f32.mrf.mxu0
        %v2644 = vadd.f32 0.0, %v2643
        %2645 = vmatmul.f32.gmra.mxu0 %v2496
        %v2646 = vpop.f32.mrf.mxu0
        %v2647 = vadd.f32 0.0, %v2646
        %2648 = vmatmul.f32.gmra.mxu0 %v2498
        %v2649 = vpop.f32.mrf.mxu0
        %v2650 = vadd.f32 0.0, %v2649
        %2651 = vmatmul.f32.gmra.mxu0 %v2501
        %v2652 = vpop.f32.mrf.mxu0
        %v2653 = vadd.f32 0.0, %v2652
        %2654 = vmatmul.f32.gmra.mxu0 %v2503
        %v2655 = vpop.f32.mrf.mxu0
        %v2656 = vadd.f32 0.0, %v2655
        %2657 = vmatmul.f32.gmra.mxu0 %v2506
        %v2658 = vpop.f32.mrf.mxu0
        %v2659 = vadd.f32 0.0, %v2658
        %2660 = vmatmul.f32.gmra.mxu0 %v2508
        %v2661 = vpop.f32.mrf.mxu0
        %v2662 = vadd.f32 0.0, %v2661
        %2663 = vmatmul.f32.gmra.mxu0 %v2511
        %v2664 = vpop.f32.mrf.mxu0
        %v2665 = vadd.f32 0.0, %v2664
        %2666 = vmatmul.f32.gmra.mxu0 %v2513
        %v2667 = vpop.f32.mrf.mxu0
        %v2668 = vadd.f32 0.0, %v2667
        %2669 = vmatmul.f32.gmra.mxu0 %v2516
        %v2670 = vpop.f32.mrf.mxu0
        %v2671 = vadd.f32 0.0, %v2670
        %2672 = vmatmul.f32.gmra.mxu0 %v2518
        %v2673 = vpop.f32.mrf.mxu0
        %v2674 = vadd.f32 0.0, %v2673
        %2675 = vmatmul.f32.gmra.mxu0 %v2521
        %v2676 = vpop.f32.mrf.mxu0
        %v2677 = vadd.f32 0.0, %v2676
        %2678 = vmatmul.f32.gmra.mxu0 %v2523
        %v2679 = vpop.f32.mrf.mxu0
        %v2680 = vadd.f32 0.0, %v2679
        %2681 = vmatmul.f32.gmra.mxu0 %v2526
        %v2682 = vpop.f32.mrf.mxu0
        %v2683 = vadd.f32 0.0, %v2682
        %2684 = vmatmul.f32.gmra.mxu0 %v2528
        %v2685 = vpop.f32.mrf.mxu0
        %v2686 = vadd.f32 0.0, %v2685
        %2687 = vmatmul.f32.gmra.mxu0 %v2531
        %v2688 = vpop.f32.mrf.mxu0
        %v2689 = vadd.f32 0.0, %v2688
        %2690 = vmatmul.f32.gmra.mxu0 %v2533
        %v2691 = vpop.f32.mrf.mxu0
        %v2692 = vadd.f32 0.0, %v2691
        %2693 = vmatmul.f32.gmra.mxu0 %v2536
        %v2694 = vpop.f32.mrf.mxu0
        %v2695 = vadd.f32 0.0, %v2694
        %2696 = vmatmul.f32.gmra.mxu0 %v2538
        %v2697 = vpop.f32.mrf.mxu0
        %v2698 = vadd.f32 0.0, %v2697
        %2699 = vdwg.mxu0
        %v2700 = vadd.f32 %v2331, %v2605
        %v2701 = vadd.f32 %v2332, %v2608
        %v2702 = vadd.f32 %v2333, %v2611
        %v2703 = vadd.f32 %v2334, %v2614
        %v2704 = vadd.f32 %v2335, %v2617
        %v2705 = vadd.f32 %v2336, %v2620
        %v2706 = vadd.f32 %v2337, %v2623
        %v2707 = vadd.f32 %v2338, %v2626
        %v2708 = vadd.f32 %v2339, %v2629
        %v2709 = vadd.f32 %v2340, %v2632
        %v2710 = vadd.f32 %v2341, %v2635
        %v2711 = vadd.f32 %v2342, %v2638
        %v2712 = vadd.f32 %v2343, %v2641
        %v2713 = vadd.f32 %v2344, %v2644
        %v2714 = vadd.f32 %v2345, %v2647
        %v2715 = vadd.f32 %v2346, %v2650
        %v2716 = vadd.f32 %v2347, %v2653
        %v2717 = vadd.f32 %v2348, %v2656
        %v2718 = vadd.f32 %v2349, %v2659
        %v2719 = vadd.f32 %v2350, %v2662
        %v2720 = vadd.f32 %v2351, %v2665
        %v2721 = vadd.f32 %v2352, %v2668
        %v2722 = vadd.f32 %v2353, %v2671
        %v2723 = vadd.f32 %v2354, %v2674
        %v2724 = vadd.f32 %v2355, %v2677
        %v2725 = vadd.f32 %v2356, %v2680
        %v2726 = vadd.f32 %v2357, %v2683
        %v2727 = vadd.f32 %v2358, %v2686
        %v2728 = vadd.f32 %v2359, %v2689
        %v2729 = vadd.f32 %v2360, %v2692
        %v2730 = vadd.f32 %v2361, %v2695
        %v2731 = vadd.f32 %v2362, %v2698
        %v2732 = vld [vmem:[%s3] sm:$0x1]
        %v2734 = vperm.slane %v2732, 0
        %v2736 = vadd.f32 %v2700, %v2734
        %v2737 = vadd.f32 %v2701, %v2734
        %v2738 = vadd.f32 %v2702, %v2734
        %v2739 = vadd.f32 %v2703, %v2734
        %v2740 = vadd.f32 %v2704, %v2734
        %v2741 = vadd.f32 %v2705, %v2734
        %v2742 = vadd.f32 %v2706, %v2734
        %v2743 = vadd.f32 %v2707, %v2734
        %v2744 = vadd.f32 %v2708, %v2734
        %v2745 = vadd.f32 %v2709, %v2734
        %v2746 = vadd.f32 %v2710, %v2734
        %v2747 = vadd.f32 %v2711, %v2734
        %v2748 = vadd.f32 %v2712, %v2734
        %v2749 = vadd.f32 %v2713, %v2734
        %v2750 = vadd.f32 %v2714, %v2734
        %v2751 = vadd.f32 %v2715, %v2734
        %v2752 = vadd.f32 %v2716, %v2734
        %v2753 = vadd.f32 %v2717, %v2734
        %v2754 = vadd.f32 %v2718, %v2734
        %v2755 = vadd.f32 %v2719, %v2734
        %v2756 = vadd.f32 %v2720, %v2734
        %v2757 = vadd.f32 %v2721, %v2734
        %v2758 = vadd.f32 %v2722, %v2734
        %v2759 = vadd.f32 %v2723, %v2734
        %v2760 = vadd.f32 %v2724, %v2734
        %v2761 = vadd.f32 %v2725, %v2734
        %v2762 = vadd.f32 %v2726, %v2734
        %v2763 = vadd.f32 %v2727, %v2734
        %v2764 = vadd.f32 %v2728, %v2734
        %v2765 = vadd.f32 %v2729, %v2734
        %v2766 = vadd.f32 %v2730, %v2734
        %v2767 = vadd.f32 %v2731, %v2734
        %2768 = vst [vmem:[%s310] sm:$0xff] %v2736
        %2769 = vst [vmem:[%s310 + $0x8] sm:$0xff] %v2737
        %2770 = vst [vmem:[%s310 + $0x10] sm:$0xff] %v2738
        %2771 = vst [vmem:[%s310 + $0x18] sm:$0xff] %v2739
        %2772 = vst [vmem:[%s310 + $0x20] sm:$0xff] %v2740
        %2773 = vst [vmem:[%s310 + $0x28] sm:$0xff] %v2741
        %2774 = vst [vmem:[%s310 + $0x30] sm:$0xff] %v2742
        %2775 = vst [vmem:[%s310 + $0x38] sm:$0xff] %v2743
        %2776 = vst [vmem:[%s310 + $0x40] sm:$0xff] %v2744
        %2777 = vst [vmem:[%s310 + $0x48] sm:$0xff] %v2745
        %2778 = vst [vmem:[%s310 + $0x50] sm:$0xff] %v2746
        %2779 = vst [vmem:[%s310 + $0x58] sm:$0xff] %v2747
        %2780 = vst [vmem:[%s310 + $0x60] sm:$0xff] %v2748
        %2781 = vst [vmem:[%s310 + $0x68] sm:$0xff] %v2749
        %2782 = vst [vmem:[%s310 + $0x70] sm:$0xff] %v2750
        %2783 = vst [vmem:[%s310 + $0x78] sm:$0xff] %v2751
        %2784 = vst [vmem:[%s310 + $0x80] sm:$0xff] %v2752
        %2785 = vst [vmem:[%s310 + $0x88] sm:$0xff] %v2753
        %2786 = vst [vmem:[%s310 + $0x90] sm:$0xff] %v2754
        %2787 = vst [vmem:[%s310 + $0x98] sm:$0xff] %v2755
        %2788 = vst [vmem:[%s310 + $0xa0] sm:$0xff] %v2756
        %2789 = vst [vmem:[%s310 + $0xa8] sm:$0xff] %v2757
        %2790 = vst [vmem:[%s310 + $0xb0] sm:$0xff] %v2758
        %2791 = vst [vmem:[%s310 + $0xb8] sm:$0xff] %v2759
        %2792 = vst [vmem:[%s310 + $0xc0] sm:$0xff] %v2760
        %2793 = vst [vmem:[%s310 + $0xc8] sm:$0xff] %v2761
        %2794 = vst [vmem:[%s310 + $0xd0] sm:$0xff] %v2762
        %2795 = vst [vmem:[%s310 + $0xd8] sm:$0xff] %v2763
        %2796 = vst [vmem:[%s310 + $0xe0] sm:$0xff] %v2764
        %2797 = vst [vmem:[%s310 + $0xe8] sm:$0xff] %v2765
        %2798 = vst [vmem:[%s310 + $0xf0] sm:$0xff] %v2766
        %2799 = vst [vmem:[%s310 + $0xf8] sm:$0xff] %v2767
        %s2800 = sand.u32 %s152, 1
        %s2801 = scalar_lea.sflag [#allocation5], %s2800
        %s2802 = sand.u32 %s152, 1
        %s2803 = smul.addr %s2802, 256
        %s2804 = scalar_lea.vmem [#allocation9], %s2803
        // Predicated region
        $region49: #{tpu_custom_call.1} parent=35 // pred_check
          %p2805 = pneg %p162
        $region50: #{tpu_custom_call.1} parent=35 // pred_check_branch
          %2807 = sbr.rel (%p2805) target = $region52
        $region51: #{tpu_custom_call.1} parent=35 // pred_region
          %s2808 = smul.u32 16, %s29
          %2810 = vsyncadd %s2801, 0
          %s2811 = smul.addr %s2808, 2
          %s2812 = smul.addr %s28, 32
          %s2813 = sadd.s32 %s2811, %s2812
          %s2814 = smul.addr %s2813, 8
          %s2815 = scalar_lea.hbm %s4, %s2814
          %s2816 = sshll.u32 %s2804, 4
          %s2817 = int_to_ptr.vmem [resolvable:$true] %s2816
          %s2818 = sshll.u32 %s2815, 4
          %s2819 = int_to_ptr.hbm [resolvable:$true] %s2818
          %2824 = dma.vmem_to_hbm [thread:$0]  %s2817, 4096, %s2819, %s2801, 128, 128, 8
        $region52: #{tpu_custom_call.1} parent=35 // pred_fallthru
          _
      $region36: #{tpu_custom_call.1} parent=5 // pred_fallthru
        _
      %p2825 = scmp.le.s32.totalorder 2, %s19
      // Predicated region
      $region53: #{tpu_custom_call.1} parent=5 // pred_check
        %p2826 = pneg %p2825
      $region54: #{tpu_custom_call.1} parent=5 // pred_check_branch
        %2828 = sbr.rel (%p2826) target = $region56
      $region55: #{tpu_custom_call.1} parent=5 // pred_region
        %s2829 = ssub.s32 %s19, 2
        // Predicated region
        $region57: #{tpu_custom_call.1} parent=55 // pred_check
          %p2830 = pneg %p168
        $region58: #{tpu_custom_call.1} parent=55 // pred_check_branch
          %2832 = sbr.rel (%p2830) target = $region60
        $region59: #{tpu_custom_call.1} parent=55 // pred_region
          %s2833 = sand.u32 %s153, 1
          %s2834 = scalar_lea.sflag [#allocation5], %s2833
          %s2835 = sand.u32 %s153, 1
          %s2836 = smul.addr %s2835, 256
          %s2837 = scalar_lea.vmem [#allocation9], %s2836
          %2839 = dma.done %s2834, 4096
        $region60: #{tpu_custom_call.1} parent=55 // pred_fallthru
          _
      $region56: #{tpu_custom_call.1} parent=5 // pred_fallthru
        _
    $region6: #{tpu_custom_call.1} parent=1 // loop_footer
      %s23 = sadd.s32 1, %s19
    $region7: #{tpu_custom_call.1} parent=1 // loop_footer_branch
      %18 = sbr.rel target = $region3
    $region8: #{tpu_custom_call.1} parent=1 // loop_exit
      _
    %2840 = vsyncpa [#allocation4], 1
    %s2841 = scalar_lea.sflag [#allocation4], 1
    %2842 = vsyncpa %s2841, 1
    %2843 = vsyncpa [#allocation7], 1
    %s2844 = scalar_lea.sflag [#allocation7], 1
    %2845 = vsyncpa %s2844, 1
    %2846 = vsyncpa [#allocation5], 1
    %s2847 = scalar_lea.sflag [#allocation5], 1
    %2848 = vsyncpa %s2847, 1

</llo_original>
